<compile_context>
chip_gen: v5e
topology: v5e:2x2
jax: 0.10.0
libtpu: 0.0.40
codegen_flags: <defaults>
</compile_context>

<pallas_src>
import math
from functools import partial

import jax
import jax.numpy as jnp
from jax import lax
from jax.experimental import pallas as pl
from jax.experimental.pallas import tpu as pltpu

# Module hyper-parameters (Attention(dim=DIM, heads=HEADS, dim_head=DIM_HEAD))
DIM = 8
HEADS = 4
DIM_HEAD = 32
HIDDEN = HEADS * DIM_HEAD          # 128
B, H, W = 2, 16, 16
N = H * W                          # 256
EPS = 1e-12                        # F.normalize eps; EPS**2 = 1e-24 is a normal f32

# dot_general dimension numbers: contract dim 0 of both operands ("lhs^T @ rhs").
_TN = (((0,), (0,)), ((), ()))


def attention_kernel(x_ref, wqkv_ref, wout_ref, bout_ref, o_ref, qkv_ref,
                     *, softmax_dtype):
    """Fused RMSNorm + qkv 1x1-conv + multi-head attention + output 1x1-conv.

    One batch element per grid step.

    x_ref    : (1, C, N)               channels-first, N = H*W on lanes
    wqkv_ref : (3*HIDDEN, C)      bf16 RMSNorm gain*sqrt(C), 1/sqrt(dh) folded in
    wout_ref : (HEADS, C, DIM_HEAD) bf16 per-head output-projection weight
    bout_ref : (C, 1)              f32 output 1x1-conv bias
    o_ref    : (1, C, N)
    qkv_ref  : (3*HIDDEN, N)      bf16 VMEM scratch
    """
    c = x_ref.shape[1]
    n = x_ref.shape[2]

    x = x_ref[0].astype(jnp.float32)                       # (C, N)

    # RMSNorm over channels (sublane axis): x / max(||x||_2, eps).
    # rsqrt(max(ssq, eps^2)) == 1 / max(sqrt(ssq), eps); gain*sqrt(C) folded in wqkv.
    ssq = jnp.sum(x * x, axis=0, keepdims=True)            # (1, N)
    inv_norm = lax.rsqrt(jnp.maximum(ssq, EPS * EPS))
    xn = (x * inv_norm).astype(jnp.bfloat16)                # (C, N)

    # 1x1 conv (no bias) == channel matmul; park qkv in VMEM scratch so only
    # the per-head (dh, N) slices ever become live vreg values.
    qkv_ref[...] = jnp.dot(wqkv_ref[...], xn,
                           preferred_element_type=jnp.float32
                           ).astype(jnp.bfloat16)           # (3*HIDDEN, N)

    # Running output-projection accumulator (C, N) -- tiny (2 vregs).
    y = jnp.zeros((c, n), jnp.float32)

    for hd in range(HEADS):                                 # sublane-aligned slices
        q = qkv_ref[hd * DIM_HEAD:(hd + 1) * DIM_HEAD, :]                     # (dh, N)
        k = qkv_ref[HIDDEN + hd * DIM_HEAD:HIDDEN + (hd + 1) * DIM_HEAD, :]   # (dh, N)
        v = qkv_ref[2 * HIDDEN + hd * DIM_HEAD:
                    2 * HIDDEN + (hd + 1) * DIM_HEAD, :]                      # (dh, N)

        # Transposed scores: sT[j, i] = sum_d k[d, j] q[d, i] (scale folded into Wq).
        # Softmax reductions run over axis=0 (sublanes); PV below is a plain NN
        # contraction -> no (N, N) transpose, no lane broadcasts.
        sT = lax.dot_general(k, q, _TN,
                             preferred_element_type=jnp.float32)              # (N, N)
        sT = sT.astype(softmax_dtype)
        mx = jnp.max(sT, axis=0, keepdims=True)                               # (1, N)
        p = jnp.exp(sT - mx)                                                  # un-normalized
        denom = jnp.sum(p, axis=0, keepdims=True, dtype=jnp.float32)          # (1, N) f32
        inv_d = pl.reciprocal(denom, approx=True)

        # Deferred normalization: PV on un-normalized p, scale the (dh, N) result.
        o_h = jnp.dot(v, p.astype(jnp.bfloat16),
                      preferred_element_type=jnp.float32)                     # (dh, N)
        o_h = (o_h * inv_d).astype(jnp.bfloat16)

        # Fold this head's slice of the output projection into the accumulator.
        y = y + jnp.dot(wout_ref[hd], o_h,
                        preferred_element_type=jnp.float32)                   # (C, N)

    o_ref[0] = (y + bout_ref[...]).astype(o_ref.dtype)


def _softmax_dtype():
    """bf16 softmax elementwise on chips with a bf16 VPU/EUP (v6e/v7x and newer).

    Purely a perf choice: either dtype is numerically fine for the 3e-2
    tolerance (denominator always accumulates in f32), so a misclassified
    device only loses a little throughput, never correctness or utilization.
    """
    try:
        kind = jax.devices()[0].device_kind.lower()
    except Exception:
        return jnp.float32
    if any(tag in kind for tag in ("v2", "v3", "v4", "v5")):
        return jnp.float32          # no bf16 VPU/EUP -> keep elementwise in f32
    return jnp.bfloat16


def attention_forward(x_nchw, g, w_qkv, w_out, b_out):
    """x_nchw: (B, C, H, W) float32 -> (B, C, H, W)."""
    b, c, h, w = x_nchw.shape
    n = h * w

    # Channels-first, flattened spatial: free reshape (no transpose).
    x_bcn = x_nchw.reshape(b, c, n)

    # Fold RMSNorm gain * sqrt(C) into the qkv weight columns (per input channel)
    # and the softmax scale 1/sqrt(dim_head) into the q rows; bf16 MXU operands.
    gscale = g.reshape(c) * math.sqrt(c)
    w2 = w_qkv.reshape(3 * HIDDEN, c) * gscale[None, :]
    w2 = jnp.concatenate([w2[:HIDDEN] * (DIM_HEAD ** -0.5), w2[HIDDEN:]], axis=0)
    wqkv = w2.astype(jnp.bfloat16)                                      # (3*HIDDEN, C)
    # Per-head output weight (HEADS, C, dh): head slices are leading-dim indexed.
    wout = (w_out.reshape(c, HEADS, DIM_HEAD)
            .transpose(1, 0, 2).astype(jnp.bfloat16))                   # (HEADS, C, dh)
    bout = b_out.reshape(c, 1).astype(jnp.float32)                      # (C, 1)

    kernel = partial(attention_kernel, softmax_dtype=_softmax_dtype())

    out_bcn = pl.pallas_call(
        kernel,
        out_shape=jax.ShapeDtypeStruct((b, c, n), x_nchw.dtype),
        grid_spec=pltpu.PrefetchScalarGridSpec(
            num_scalar_prefetch=0,
            grid=(b,),                                                  # one batch / step
            in_specs=[
                pl.BlockSpec((1, c, n), lambda i: (i, 0, 0)),           # x (channels-first)
                pl.BlockSpec((3 * HIDDEN, c), lambda i: (0, 0)),        # W_qkv (folded)
                pl.BlockSpec((HEADS, c, DIM_HEAD), lambda i: (0, 0, 0)),  # W_out per head
                pl.BlockSpec((c, 1), lambda i: (0, 0)),                 # b_out
            ],
            out_specs=pl.BlockSpec((1, c, n), lambda i: (i, 0, 0)),
            scratch_shapes=[pltpu.VMEM((3 * HIDDEN, n), jnp.bfloat16)],  # qkv
        ),
        compiler_params=pltpu.CompilerParams(dimension_semantics=("parallel",)),
    )(x_bcn, wqkv, wout, bout)

    # (B, C, N) -> NCHW: free reshape.
    return out_bcn.reshape(b, c, h, w)


def reference(x, g, w_qkv, w_out, b_out):
    """Pure-JAX NCHW reference mirroring the PyTorch forward."""
    b, c, h, w = x.shape
    l2 = jnp.sqrt(jnp.sum(x * x, axis=1, keepdims=True))
    xn = x / jnp.maximum(l2, EPS) * g.reshape(1, c, 1, 1) * math.sqrt(c)
    Wqkv = w_qkv.reshape(3 * HIDDEN, c)
    qkv = jnp.einsum('oc,bchw->bohw', Wqkv, xn)
    q, k, v = jnp.split(qkv, 3, axis=1)

    def to_heads(t):  # 'b (h c) x y -> b h (x y) c'
        return t.reshape(b, HEADS, DIM_HEAD, h * w).transpose(0, 1, 3, 2)

    q, k, v = map(to_heads, (q, k, v))
    sim = jnp.einsum('bhid,bhjd->bhij', q, k) * (DIM_HEAD ** -0.5)
    attn = jax.nn.softmax(sim, axis=-1)
    out = jnp.einsum('bhij,bhjd->bhid', attn, v)
    out = out.transpose(0, 1, 3, 2).reshape(b, HIDDEN, h, w)
    Wout = w_out.reshape(c, HIDDEN)
    return jnp.einsum('oc,bchw->bohw', Wout, out) + b_out.reshape(1, c, 1, 1)


if __name__ == "__main__":
    key = jax.random.PRNGKey(0)
    kx, kq, ko, kb, kg = jax.random.split(key, 5)

    # Deterministic synthetic parameters (shapes from the module __init__)
    x = jax.random.normal(kx, (B, DIM, H, W), dtype=jnp.float32)
    g = 1.0 + 0.1 * jax.random.normal(kg, (1, DIM, 1, 1), jnp.float32)   # RMSNorm.g
    w_qkv = jax.random.normal(kq, (3 * HIDDEN, DIM, 1, 1), jnp.float32) / math.sqrt(DIM)
    w_out = jax.random.normal(ko, (DIM, HIDDEN, 1, 1), jnp.float32) / math.sqrt(HIDDEN)
    b_out = jax.random.normal(kb, (DIM,), jnp.float32) * 0.01

    fwd = jax.jit(attention_forward)
    out = jax.block_until_ready(fwd(x, g, w_qkv, w_out, b_out))
    assert out.shape == (B, DIM, H, W)

    ref = reference(x, g, w_qkv, w_out, b_out)
    max_err = jnp.max(jnp.abs(out - ref))
    # bf16 MXU operands + (optional) bf16 softmax elementwise + approx reciprocal
    # -> slightly looser tolerance than pure f32.
    if not jnp.allclose(out, ref, rtol=3e-2, atol=3e-2):
        raise AssertionError(f"mismatch vs reference, max abs err = {max_err}")

    print("KERNEL_OK")
</pallas_src>

<mosaic_0001>
module attributes {stable_mosaic.version = 11 : i64} {
  func.func @attention_kernel(%arg0: i32, %arg1: memref<1x8x256xf32, #tpu.memory_space<vmem>>, %arg2: memref<384x8xbf16, #tpu.memory_space<vmem>>, %arg3: memref<4x8x32xbf16, #tpu.memory_space<vmem>>, %arg4: memref<8x1xf32, #tpu.memory_space<vmem>>, %arg5: memref<1x8x256xf32, #tpu.memory_space<vmem>>, %arg6: memref<384x256xbf16, #tpu.memory_space<vmem>>) attributes {dimension_semantics = [#tpu.dimension_semantics<parallel>], iteration_bounds = array<i64: 2>, scalar_prefetch = 0 : i64, scratch_operands = 1 : i64, tpu.core_type = #tpu.core_type<tc>, window_params = [{transform_indices = @transform_0, window_bounds = array<i64: 1, 8, 256>}, {pipeline_mode = #tpu.pipeline_mode<synchronous>, transform_indices = @transform_1, window_bounds = array<i64: 384, 8>}, {pipeline_mode = #tpu.pipeline_mode<synchronous>, transform_indices = @transform_2, window_bounds = array<i64: 4, 8, 32>}, {pipeline_mode = #tpu.pipeline_mode<synchronous>, transform_indices = @transform_3, window_bounds = array<i64: 8, 1>}, {transform_indices = @transform_4, window_bounds = array<i64: 1, 8, 256>}]} {
    %c0 = arith.constant 0 : index
    %c0_0 = arith.constant 0 : index
    %c0_1 = arith.constant 0 : index
    %0 = vector.load %arg1[%c0, %c0_0, %c0_1] : memref<1x8x256xf32, #tpu.memory_space<vmem>>, vector<1x8x256xf32>
    %1 = vector.shape_cast %0 : vector<1x8x256xf32> to vector<8x256xf32>
    %2 = arith.mulf %1, %1 : vector<8x256xf32>
    %cst = arith.constant dense<0.000000e+00> : vector<256xf32>
    %3 = vector.multi_reduction <add>, %2, %cst [0] : vector<8x256xf32> to vector<256xf32>
    %4 = vector.shape_cast %3 : vector<256xf32> to vector<1x256xf32>
    %cst_2 = arith.constant 1.000000e-24 : f32
    %5 = vector.broadcast %cst_2 : f32 to vector<1x256xf32>
    %6 = arith.maximumf %4, %5 : vector<1x256xf32>
    %7 = math.rsqrt %6 : vector<1x256xf32>
    %8 = vector.broadcast %7 : vector<1x256xf32> to vector<8x256xf32>
    %9 = arith.mulf %1, %8 : vector<8x256xf32>
    %10 = arith.truncf %9 : vector<8x256xf32> to vector<8x256xbf16>
    %c0_3 = arith.constant 0 : index
    %c0_4 = arith.constant 0 : index
    %11 = vector.load %arg2[%c0_3, %c0_4] : memref<384x8xbf16, #tpu.memory_space<vmem>>, vector<384x8xbf16>
    %cst_5 = arith.constant dense<0.000000e+00> : vector<384x256xf32>
    %12 = tpu.matmul %11, %10, %cst_5 {dimension_numbers = #tpu.dot_dimension_numbers<[1], [0], [0], [1], [0, 0, 1, 1], [], []>} : vector<384x8xbf16>, vector<8x256xbf16>, vector<384x256xf32> -> vector<384x256xf32>
    %13 = arith.truncf %12 : vector<384x256xf32> to vector<384x256xbf16>
    %c0_6 = arith.constant 0 : index
    %c0_7 = arith.constant 0 : index
    %14 = vector.load %arg6[%c0_6, %c0_7] : memref<384x256xbf16, #tpu.memory_space<vmem>>, vector<384x256xbf16>
    tpu.vector_store %arg6[%c0_6, %c0_7], %13 {strides = array<i32>} : memref<384x256xbf16, #tpu.memory_space<vmem>>, vector<384x256xbf16>,
    %cst_8 = arith.constant 0.000000e+00 : f32
    %15 = vector.broadcast %cst_8 : f32 to vector<8x256xf32>
    %c0_9 = arith.constant 0 : index
    %c0_10 = arith.constant 0 : index
    %16 = vector.load %arg6[%c0_9, %c0_10] : memref<384x256xbf16, #tpu.memory_space<vmem>>, vector<32x256xbf16>
    %c128 = arith.constant 128 : index
    %c0_11 = arith.constant 0 : index
    %17 = vector.load %arg6[%c128, %c0_11] : memref<384x256xbf16, #tpu.memory_space<vmem>>, vector<32x256xbf16>
    %c256 = arith.constant 256 : index
    %c0_12 = arith.constant 0 : index
    %18 = vector.load %arg6[%c256, %c0_12] : memref<384x256xbf16, #tpu.memory_space<vmem>>, vector<32x256xbf16>
    %cst_13 = arith.constant dense<0.000000e+00> : vector<256x256xf32>
    %19 = tpu.matmul %17, %16, %cst_13 {dimension_numbers = #tpu.dot_dimension_numbers<[0], [0], [1], [1], [0, 1, 1, 1], [], []>} : vector<32x256xbf16>, vector<32x256xbf16>, vector<256x256xf32> -> vector<256x256xf32>
    %20 = arith.truncf %19 : vector<256x256xf32> to vector<256x256xbf16>
    %cst_14 = arith.constant dense<0xFF80> : vector<256xbf16>
    %21 = vector.multi_reduction <maximumf>, %20, %cst_14 [0] : vector<256x256xbf16> to vector<256xbf16>
    %22 = vector.shape_cast %21 : vector<256xbf16> to vector<1x256xbf16>
    %23 = vector.broadcast %22 : vector<1x256xbf16> to vector<256x256xbf16>
    %24 = arith.subf %20, %23 : vector<256x256xbf16>
    %25 = math.exp %24 : vector<256x256xbf16>
    %26 = arith.extf %25 : vector<256x256xbf16> to vector<256x256xf32>
    %cst_15 = arith.constant dense<0.000000e+00> : vector<256xf32>
    %27 = vector.multi_reduction <add>, %26, %cst_15 [0] : vector<256x256xf32> to vector<256xf32>
    %28 = vector.shape_cast %27 : vector<256xf32> to vector<1x256xf32>
    %29 = tpu.reciprocal %28 {approx = true} : vector<1x256xf32> -> vector<1x256xf32>
    %cst_16 = arith.constant dense<0.000000e+00> : vector<32x256xf32>
    %30 = tpu.matmul %18, %25, %cst_16 {dimension_numbers = #tpu.dot_dimension_numbers<[1], [0], [0], [1], [0, 0, 1, 1], [], []>} : vector<32x256xbf16>, vector<256x256xbf16>, vector<32x256xf32> -> vector<32x256xf32>
    %31 = vector.broadcast %29 : vector<1x256xf32> to vector<32x256xf32>
    %32 = arith.mulf %30, %31 : vector<32x256xf32>
    %33 = arith.truncf %32 : vector<32x256xf32> to vector<32x256xbf16>
    %c0_17 = arith.constant 0 : index
    %c0_18 = arith.constant 0 : index
    %c0_19 = arith.constant 0 : index
    %34 = vector.load %arg3[%c0_17, %c0_18, %c0_19] : memref<4x8x32xbf16, #tpu.memory_space<vmem>>, vector<1x8x32xbf16>
    %35 = vector.shape_cast %34 : vector<1x8x32xbf16> to vector<8x32xbf16>
    %cst_20 = arith.constant dense<0.000000e+00> : vector<8x256xf32>
    %36 = tpu.matmul %35, %33, %cst_20 {dimension_numbers = #tpu.dot_dimension_numbers<[1], [0], [0], [1], [0, 0, 1, 1], [], []>} : vector<8x32xbf16>, vector<32x256xbf16>, vector<8x256xf32> -> vector<8x256xf32>
    %37 = arith.addf %15, %36 : vector<8x256xf32>
    %c32 = arith.constant 32 : index
    %c0_21 = arith.constant 0 : index
    %38 = vector.load %arg6[%c32, %c0_21] : memref<384x256xbf16, #tpu.memory_space<vmem>>, vector<32x256xbf16>
    %c160 = arith.constant 160 : index
    %c0_22 = arith.constant 0 : index
    %39 = vector.load %arg6[%c160, %c0_22] : memref<384x256xbf16, #tpu.memory_space<vmem>>, vector<32x256xbf16>
    %c288 = arith.constant 288 : index
    %c0_23 = arith.constant 0 : index
    %40 = vector.load %arg6[%c288, %c0_23] : memref<384x256xbf16, #tpu.memory_space<vmem>>, vector<32x256xbf16>
    %cst_24 = arith.constant dense<0.000000e+00> : vector<256x256xf32>
    %41 = tpu.matmul %39, %38, %cst_24 {dimension_numbers = #tpu.dot_dimension_numbers<[0], [0], [1], [1], [0, 1, 1, 1], [], []>} : vector<32x256xbf16>, vector<32x256xbf16>, vector<256x256xf32> -> vector<256x256xf32>
    %42 = arith.truncf %41 : vector<256x256xf32> to vector<256x256xbf16>
    %cst_25 = arith.constant dense<0xFF80> : vector<256xbf16>
    %43 = vector.multi_reduction <maximumf>, %42, %cst_25 [0] : vector<256x256xbf16> to vector<256xbf16>
    %44 = vector.shape_cast %43 : vector<256xbf16> to vector<1x256xbf16>
    %45 = vector.broadcast %44 : vector<1x256xbf16> to vector<256x256xbf16>
    %46 = arith.subf %42, %45 : vector<256x256xbf16>
    %47 = math.exp %46 : vector<256x256xbf16>
    %48 = arith.extf %47 : vector<256x256xbf16> to vector<256x256xf32>
    %cst_26 = arith.constant dense<0.000000e+00> : vector<256xf32>
    %49 = vector.multi_reduction <add>, %48, %cst_26 [0] : vector<256x256xf32> to vector<256xf32>
    %50 = vector.shape_cast %49 : vector<256xf32> to vector<1x256xf32>
    %51 = tpu.reciprocal %50 {approx = true} : vector<1x256xf32> -> vector<1x256xf32>
    %cst_27 = arith.constant dense<0.000000e+00> : vector<32x256xf32>
    %52 = tpu.matmul %40, %47, %cst_27 {dimension_numbers = #tpu.dot_dimension_numbers<[1], [0], [0], [1], [0, 0, 1, 1], [], []>} : vector<32x256xbf16>, vector<256x256xbf16>, vector<32x256xf32> -> vector<32x256xf32>
    %53 = vector.broadcast %51 : vector<1x256xf32> to vector<32x256xf32>
    %54 = arith.mulf %52, %53 : vector<32x256xf32>
    %55 = arith.truncf %54 : vector<32x256xf32> to vector<32x256xbf16>
    %c1 = arith.constant 1 : index
    %c0_28 = arith.constant 0 : index
    %c0_29 = arith.constant 0 : index
    %56 = vector.load %arg3[%c1, %c0_28, %c0_29] : memref<4x8x32xbf16, #tpu.memory_space<vmem>>, vector<1x8x32xbf16>
    %57 = vector.shape_cast %56 : vector<1x8x32xbf16> to vector<8x32xbf16>
    %cst_30 = arith.constant dense<0.000000e+00> : vector<8x256xf32>
    %58 = tpu.matmul %57, %55, %cst_30 {dimension_numbers = #tpu.dot_dimension_numbers<[1], [0], [0], [1], [0, 0, 1, 1], [], []>} : vector<8x32xbf16>, vector<32x256xbf16>, vector<8x256xf32> -> vector<8x256xf32>
    %59 = arith.addf %37, %58 : vector<8x256xf32>
    %c64 = arith.constant 64 : index
    %c0_31 = arith.constant 0 : index
    %60 = vector.load %arg6[%c64, %c0_31] : memref<384x256xbf16, #tpu.memory_space<vmem>>, vector<32x256xbf16>
    %c192 = arith.constant 192 : index
    %c0_32 = arith.constant 0 : index
    %61 = vector.load %arg6[%c192, %c0_32] : memref<384x256xbf16, #tpu.memory_space<vmem>>, vector<32x256xbf16>
    %c320 = arith.constant 320 : index
    %c0_33 = arith.constant 0 : index
    %62 = vector.load %arg6[%c320, %c0_33] : memref<384x256xbf16, #tpu.memory_space<vmem>>, vector<32x256xbf16>
    %cst_34 = arith.constant dense<0.000000e+00> : vector<256x256xf32>
    %63 = tpu.matmul %61, %60, %cst_34 {dimension_numbers = #tpu.dot_dimension_numbers<[0], [0], [1], [1], [0, 1, 1, 1], [], []>} : vector<32x256xbf16>, vector<32x256xbf16>, vector<256x256xf32> -> vector<256x256xf32>
    %64 = arith.truncf %63 : vector<256x256xf32> to vector<256x256xbf16>
    %cst_35 = arith.constant dense<0xFF80> : vector<256xbf16>
    %65 = vector.multi_reduction <maximumf>, %64, %cst_35 [0] : vector<256x256xbf16> to vector<256xbf16>
    %66 = vector.shape_cast %65 : vector<256xbf16> to vector<1x256xbf16>
    %67 = vector.broadcast %66 : vector<1x256xbf16> to vector<256x256xbf16>
    %68 = arith.subf %64, %67 : vector<256x256xbf16>
    %69 = math.exp %68 : vector<256x256xbf16>
    %70 = arith.extf %69 : vector<256x256xbf16> to vector<256x256xf32>
    %cst_36 = arith.constant dense<0.000000e+00> : vector<256xf32>
    %71 = vector.multi_reduction <add>, %70, %cst_36 [0] : vector<256x256xf32> to vector<256xf32>
    %72 = vector.shape_cast %71 : vector<256xf32> to vector<1x256xf32>
    %73 = tpu.reciprocal %72 {approx = true} : vector<1x256xf32> -> vector<1x256xf32>
    %cst_37 = arith.constant dense<0.000000e+00> : vector<32x256xf32>
    %74 = tpu.matmul %62, %69, %cst_37 {dimension_numbers = #tpu.dot_dimension_numbers<[1], [0], [0], [1], [0, 0, 1, 1], [], []>} : vector<32x256xbf16>, vector<256x256xbf16>, vector<32x256xf32> -> vector<32x256xf32>
    %75 = vector.broadcast %73 : vector<1x256xf32> to vector<32x256xf32>
    %76 = arith.mulf %74, %75 : vector<32x256xf32>
    %77 = arith.truncf %76 : vector<32x256xf32> to vector<32x256xbf16>
    %c2 = arith.constant 2 : index
    %c0_38 = arith.constant 0 : index
    %c0_39 = arith.constant 0 : index
    %78 = vector.load %arg3[%c2, %c0_38, %c0_39] : memref<4x8x32xbf16, #tpu.memory_space<vmem>>, vector<1x8x32xbf16>
    %79 = vector.shape_cast %78 : vector<1x8x32xbf16> to vector<8x32xbf16>
    %cst_40 = arith.constant dense<0.000000e+00> : vector<8x256xf32>
    %80 = tpu.matmul %79, %77, %cst_40 {dimension_numbers = #tpu.dot_dimension_numbers<[1], [0], [0], [1], [0, 0, 1, 1], [], []>} : vector<8x32xbf16>, vector<32x256xbf16>, vector<8x256xf32> -> vector<8x256xf32>
    %81 = arith.addf %59, %80 : vector<8x256xf32>
    %c96 = arith.constant 96 : index
    %c0_41 = arith.constant 0 : index
    %82 = vector.load %arg6[%c96, %c0_41] : memref<384x256xbf16, #tpu.memory_space<vmem>>, vector<32x256xbf16>
    %c224 = arith.constant 224 : index
    %c0_42 = arith.constant 0 : index
    %83 = vector.load %arg6[%c224, %c0_42] : memref<384x256xbf16, #tpu.memory_space<vmem>>, vector<32x256xbf16>
    %c352 = arith.constant 352 : index
    %c0_43 = arith.constant 0 : index
    %84 = vector.load %arg6[%c352, %c0_43] : memref<384x256xbf16, #tpu.memory_space<vmem>>, vector<32x256xbf16>
    %cst_44 = arith.constant dense<0.000000e+00> : vector<256x256xf32>
    %85 = tpu.matmul %83, %82, %cst_44 {dimension_numbers = #tpu.dot_dimension_numbers<[0], [0], [1], [1], [0, 1, 1, 1], [], []>} : vector<32x256xbf16>, vector<32x256xbf16>, vector<256x256xf32> -> vector<256x256xf32>
    %86 = arith.truncf %85 : vector<256x256xf32> to vector<256x256xbf16>
    %cst_45 = arith.constant dense<0xFF80> : vector<256xbf16>
    %87 = vector.multi_reduction <maximumf>, %86, %cst_45 [0] : vector<256x256xbf16> to vector<256xbf16>
    %88 = vector.shape_cast %87 : vector<256xbf16> to vector<1x256xbf16>
    %89 = vector.broadcast %88 : vector<1x256xbf16> to vector<256x256xbf16>
    %90 = arith.subf %86, %89 : vector<256x256xbf16>
    %91 = math.exp %90 : vector<256x256xbf16>
    %92 = arith.extf %91 : vector<256x256xbf16> to vector<256x256xf32>
    %cst_46 = arith.constant dense<0.000000e+00> : vector<256xf32>
    %93 = vector.multi_reduction <add>, %92, %cst_46 [0] : vector<256x256xf32> to vector<256xf32>
    %94 = vector.shape_cast %93 : vector<256xf32> to vector<1x256xf32>
    %95 = tpu.reciprocal %94 {approx = true} : vector<1x256xf32> -> vector<1x256xf32>
    %cst_47 = arith.constant dense<0.000000e+00> : vector<32x256xf32>
    %96 = tpu.matmul %84, %91, %cst_47 {dimension_numbers = #tpu.dot_dimension_numbers<[1], [0], [0], [1], [0, 0, 1, 1], [], []>} : vector<32x256xbf16>, vector<256x256xbf16>, vector<32x256xf32> -> vector<32x256xf32>
    %97 = vector.broadcast %95 : vector<1x256xf32> to vector<32x256xf32>
    %98 = arith.mulf %96, %97 : vector<32x256xf32>
    %99 = arith.truncf %98 : vector<32x256xf32> to vector<32x256xbf16>
    %c3 = arith.constant 3 : index
    %c0_48 = arith.constant 0 : index
    %c0_49 = arith.constant 0 : index
    %100 = vector.load %arg3[%c3, %c0_48, %c0_49] : memref<4x8x32xbf16, #tpu.memory_space<vmem>>, vector<1x8x32xbf16>
    %101 = vector.shape_cast %100 : vector<1x8x32xbf16> to vector<8x32xbf16>
    %cst_50 = arith.constant dense<0.000000e+00> : vector<8x256xf32>
    %102 = tpu.matmul %101, %99, %cst_50 {dimension_numbers = #tpu.dot_dimension_numbers<[1], [0], [0], [1], [0, 0, 1, 1], [], []>} : vector<8x32xbf16>, vector<32x256xbf16>, vector<8x256xf32> -> vector<8x256xf32>
    %103 = arith.addf %81, %102 : vector<8x256xf32>
    %c0_51 = arith.constant 0 : index
    %c0_52 = arith.constant 0 : index
    %104 = vector.load %arg4[%c0_51, %c0_52] : memref<8x1xf32, #tpu.memory_space<vmem>>, vector<8x1xf32>
    %105 = vector.broadcast %104 : vector<8x1xf32> to vector<8x256xf32>
    %106 = arith.addf %103, %105 : vector<8x256xf32>
    %c0_53 = arith.constant 0 : index
    %c0_54 = arith.constant 0 : index
    %c0_55 = arith.constant 0 : index
    %107 = vector.load %arg5[%c0_53, %c0_54, %c0_55] : memref<1x8x256xf32, #tpu.memory_space<vmem>>, vector<1x8x256xf32>
    %108 = vector.shape_cast %107 : vector<1x8x256xf32> to vector<8x256xf32>
    %109 = vector.shape_cast %106 : vector<8x256xf32> to vector<1x8x256xf32>
    tpu.vector_store %arg5[%c0_53, %c0_54, %c0_55], %109 {strides = array<i32>} : memref<1x8x256xf32, #tpu.memory_space<vmem>>, vector<1x8x256xf32>,
    return
  }
  func.func @transform_0(%arg0: i32) -> (i32, i32, i32) {
    %c0_i32 = arith.constant 0 : i32
    %c0_i32_0 = arith.constant 0 : i32
    %c0_i32_1 = arith.constant 0 : i32
    return %arg0, %c0_i32, %c0_i32_0 : i32, i32, i32
  }
  func.func @transform_1(%arg0: i32) -> (i32, i32) {
    %c0_i32 = arith.constant 0 : i32
    %c0_i32_0 = arith.constant 0 : i32
    %c0_i32_1 = arith.constant 0 : i32
    return %c0_i32, %c0_i32_0 : i32, i32
  }
  func.func @transform_2(%arg0: i32) -> (i32, i32, i32) {
    %c0_i32 = arith.constant 0 : i32
    %c0_i32_0 = arith.constant 0 : i32
    %c0_i32_1 = arith.constant 0 : i32
    %c0_i32_2 = arith.constant 0 : i32
    return %c0_i32, %c0_i32_0, %c0_i32_1 : i32, i32, i32
  }
  func.func @transform_3(%arg0: i32) -> (i32, i32) {
    %c0_i32 = arith.constant 0 : i32
    %c0_i32_0 = arith.constant 0 : i32
    %c0_i32_1 = arith.constant 0 : i32
    return %c0_i32, %c0_i32_0 : i32, i32
  }
  func.func @transform_4(%arg0: i32) -> (i32, i32, i32) {
    %c0_i32 = arith.constant 0 : i32
    %c0_i32_0 = arith.constant 0 : i32
    %c0_i32_1 = arith.constant 0 : i32
    return %arg0, %c0_i32, %c0_i32_0 : i32, i32, i32
  }
}

</mosaic_0001>

<llo_original>
// kernel: attention_forward.1
$region0: #{attention_forward.1}
  #allocation0 [shape = 'u32[]', space=smem, size = 0x4, offset = 0x4, fixed_abs, tag = 'smem constant byte address 0x4 - core index']
  #allocation1 [shape = 'u32[72,128]{1,0:T(1,128)}', space=vmem, size = 0x9000, scoped, tag = 'internal scratch']
  #allocation2 [shape = 'bf16[384,256]{1,0:T(8,128)(2,1)}', space=vmem, size = 0x30000, scoped, tag = 'scratch operand']
  %s0 = inlined_call_operand.vmem [shape: f32[2,8,256], index: 0, kind: input, shape index: {}]
  %s1 = inlined_call_operand.vmem [shape: bf16[384,8], index: 1, kind: input, shape index: {}]
  %s2 = inlined_call_operand.vmem [shape: bf16[4,8,32], index: 2, kind: input, shape index: {}]
  %s3 = inlined_call_operand.vmem [shape: f32[8,1], index: 3, kind: input, shape index: {}]
  %s4 = inlined_call_operand.vmem [shape: f32[2,8,256], index: 4, kind: output, shape index: {}]
  %s5 = sld [smem:[#allocation0]]
  $region49: #{attention_forward.1} parent=0
    _
  %s7 = ssub.s32 1, %s5
  %s8 = scalar_select 0, %s7, %s5
  loop: start=0, step=1, limit=4
  $region2: #{attention_forward.1} parent=0 // loop_pre_header
    _
  $region3: #{attention_forward.1} parent=0 // loop_header
    %s10 = sphi 0, %s14
    %p11 = scmp.ge.s32.totalorder %s10, 4
    %s20 = sphi 0, %s22
    %s23 = sphi 0, %s20
    %s24 = sphi 0, %s23
    %s40 = sphi 0, %s24
    %s44 = sphi 0, %s44
    %s46 = sphi 0, %s44
    %s47 = sphi 0, %s46
    %s61 = sphi 0, %s47
    %s65 = sphi 0, %s65
    %s67 = sphi 0, %s65
    %s68 = sphi 0, %s67
    %s82 = sphi 0, %s68
    %s86 = sphi 0, %s86
    %s88 = sphi 0, %s86
    %s89 = sphi 0, %s88
    %s103 = sphi 0, %s89
    %s109 = sphi 0, %s111
    %s112 = sphi 0, %s109
    %s113 = sphi 0, %s112
    %s129 = sphi 0, %s113
  $region4: #{attention_forward.1} parent=0 // loop_header_branch
    %13 = sbr.rel (%p11) target = $region8
  $region5: #{attention_forward.1} parent=0 // loop_body
    %s15 = ssub.s32 %s10, 1
    %s16 = ssub.s32 %s10, 2
    %s17 = sadd.s32 %s10, 1
    %s18 = ssub.s32 %s10, %s17
    %p19 = scmp.eq.s32.totalorder %s18, 0
    %s21 = sadd.s32 %s20, 1
    %s22 = scalar_select %p19, %s20, %s21
    %p25 = pneg %p19
    %p26 = scmp.eq.s32.totalorder %s10, 1
    %p27 = por %p25, %p26
    %p28 = scmp.ne.s32.totalorder %s20, %s23
    %p29 = scmp.eq.s32.totalorder %s10, 0
    %p30 = por %p28, %p29
    %p31 = scmp.ne.s32.totalorder %s20, %s23
    %p32 = scmp.eq.s32.totalorder %s15, 1
    %p33 = por %p31, %p32
    %p34 = scmp.ne.s32.totalorder %s23, %s24
    %p35 = scmp.eq.s32.totalorder %s15, 0
    %p36 = por %p34, %p35
    %p37 = scmp.ne.s32.totalorder %s23, %s24
    %p38 = scmp.eq.s32.totalorder %s16, 1
    %p39 = por %p37, %p38
    %p41 = scmp.ne.s32.totalorder %s24, %s40
    %p42 = scmp.eq.s32.totalorder %s16, 0
    %p43 = por %p41, %p42
    %s45 = sadd.s32 %s44, 1
    %p48 = scmp.eq.s32.totalorder %s10, 1
    %p49 = scmp.ne.s32.totalorder %s44, %s46
    %p50 = scmp.eq.s32.totalorder %s10, 0
    %p51 = por %p49, %p50
    %p52 = scmp.ne.s32.totalorder %s44, %s46
    %p53 = scmp.eq.s32.totalorder %s15, 1
    %p54 = por %p52, %p53
    %p55 = scmp.ne.s32.totalorder %s46, %s47
    %p56 = scmp.eq.s32.totalorder %s15, 0
    %p57 = por %p55, %p56
    %p58 = scmp.ne.s32.totalorder %s46, %s47
    %p59 = scmp.eq.s32.totalorder %s16, 1
    %p60 = por %p58, %p59
    %p62 = scmp.ne.s32.totalorder %s47, %s61
    %p63 = scmp.eq.s32.totalorder %s16, 0
    %p64 = por %p62, %p63
    %s66 = sadd.s32 %s65, 1
    %p69 = scmp.eq.s32.totalorder %s10, 1
    %p70 = scmp.ne.s32.totalorder %s65, %s67
    %p71 = scmp.eq.s32.totalorder %s10, 0
    %p72 = por %p70, %p71
    %p73 = scmp.ne.s32.totalorder %s65, %s67
    %p74 = scmp.eq.s32.totalorder %s15, 1
    %p75 = por %p73, %p74
    %p76 = scmp.ne.s32.totalorder %s67, %s68
    %p77 = scmp.eq.s32.totalorder %s15, 0
    %p78 = por %p76, %p77
    %p79 = scmp.ne.s32.totalorder %s67, %s68
    %p80 = scmp.eq.s32.totalorder %s16, 1
    %p81 = por %p79, %p80
    %p83 = scmp.ne.s32.totalorder %s68, %s82
    %p84 = scmp.eq.s32.totalorder %s16, 0
    %p85 = por %p83, %p84
    %s87 = sadd.s32 %s86, 1
    %p90 = scmp.eq.s32.totalorder %s10, 1
    %p91 = scmp.ne.s32.totalorder %s86, %s88
    %p92 = scmp.eq.s32.totalorder %s10, 0
    %p93 = por %p91, %p92
    %p94 = scmp.ne.s32.totalorder %s86, %s88
    %p95 = scmp.eq.s32.totalorder %s15, 1
    %p96 = por %p94, %p95
    %p97 = scmp.ne.s32.totalorder %s88, %s89
    %p98 = scmp.eq.s32.totalorder %s15, 0
    %p99 = por %p97, %p98
    %p100 = scmp.ne.s32.totalorder %s88, %s89
    %p101 = scmp.eq.s32.totalorder %s16, 1
    %p102 = por %p100, %p101
    %p104 = scmp.ne.s32.totalorder %s89, %s103
    %p105 = scmp.eq.s32.totalorder %s16, 0
    %p106 = por %p104, %p105
    %s107 = ssub.s32 %s10, %s17
    %p108 = scmp.eq.s32.totalorder %s107, 0
    %s110 = sadd.s32 %s109, 1
    %s111 = scalar_select %p108, %s109, %s110
    %p114 = pneg %p108
    %p115 = scmp.eq.s32.totalorder %s10, 1
    %p116 = por %p114, %p115
    %p117 = scmp.ne.s32.totalorder %s109, %s112
    %p118 = scmp.eq.s32.totalorder %s10, 0
    %p119 = por %p117, %p118
    %p120 = scmp.ne.s32.totalorder %s109, %s112
    %p121 = scmp.eq.s32.totalorder %s15, 1
    %p122 = por %p120, %p121
    %p123 = scmp.ne.s32.totalorder %s112, %s113
    %p124 = scmp.eq.s32.totalorder %s15, 0
    %p125 = por %p123, %p124
    %p126 = scmp.ne.s32.totalorder %s112, %s113
    %p127 = scmp.eq.s32.totalorder %s16, 1
    %p128 = por %p126, %p127
    %p130 = scmp.ne.s32.totalorder %s113, %s129
    %p131 = scmp.eq.s32.totalorder %s16, 0
    %p132 = por %p130, %p131
    %p133 = scmp.le.s32.totalorder 1, %s10
    %p134 = scmp.lt.s32.totalorder %s10, 3
    %p135 = pnand %p133, %p134
    %p136 = pneg %p135
    // Predicated region
    $region9: #{attention_forward.1} parent=5 // pred_check
      _
    $region10: #{attention_forward.1} parent=5 // pred_check_branch
      %138 = sbr.rel (%p135) target = $region12
    $region11: #{attention_forward.1} parent=5 // pred_region
      %s139 = ssub.s32 %s10, 1
      // Predicated region
      $region13: #{attention_forward.1} parent=11 // pred_check
        %p140 = pneg %p57
      $region14: #{attention_forward.1} parent=11 // pred_check_branch
        %142 = sbr.rel (%p140) target = $region16
      $region15: #{attention_forward.1} parent=11 // pred_region
        _
      $region16: #{attention_forward.1} parent=11 // pred_fallthru
        _
      // Predicated region
      $region17: #{attention_forward.1} parent=11 // pred_check
        %p143 = pneg %p78
      $region18: #{attention_forward.1} parent=11 // pred_check_branch
        %145 = sbr.rel (%p143) target = $region20
      $region19: #{attention_forward.1} parent=11 // pred_region
        _
      $region20: #{attention_forward.1} parent=11 // pred_fallthru
        _
      // Predicated region
      $region21: #{attention_forward.1} parent=11 // pred_check
        %p146 = pneg %p99
      $region22: #{attention_forward.1} parent=11 // pred_check_branch
        %148 = sbr.rel (%p146) target = $region24
      $region23: #{attention_forward.1} parent=11 // pred_region
        _
      $region24: #{attention_forward.1} parent=11 // pred_fallthru
        _
    $region12: #{attention_forward.1} parent=5 // pred_fallthru
      _
    %p149 = scmp.lt.s32.totalorder %s10, 2
    // Predicated region
    $region25: #{attention_forward.1} parent=5 // pred_check
      %p150 = pneg %p149
    $region26: #{attention_forward.1} parent=5 // pred_check_branch
      %152 = sbr.rel (%p150) target = $region28
    $region27: #{attention_forward.1} parent=5 // pred_region
      // Predicated region
      $region29: #{attention_forward.1} parent=27 // pred_check
        %p153 = pneg %p30
      $region30: #{attention_forward.1} parent=27 // pred_check_branch
        %155 = sbr.rel (%p153) target = $region32
      $region31: #{attention_forward.1} parent=27 // pred_region
        %p156 = scmp.lt.s32.totalorder %s10, 1
        %s157 = scalar_select %p156, %s10, 1
        %s158 = smul.addr %s157, 2
        %s159 = smul.addr %s158, 8
        %s160 = scalar_lea.vmem %s0, %s159
      $region32: #{attention_forward.1} parent=27 // pred_fallthru
        _
    $region28: #{attention_forward.1} parent=5 // pred_fallthru
      _
    %p161 = scmp.le.s32.totalorder 1, %s10
    %p162 = scmp.lt.s32.totalorder %s10, 3
    %p163 = pnand %p161, %p162
    %p164 = pneg %p163
    // Predicated region
    $region33: #{attention_forward.1} parent=5 // pred_check
      _
    $region34: #{attention_forward.1} parent=5 // pred_check_branch
      %166 = sbr.rel (%p163) target = $region36
    $region35: #{attention_forward.1} parent=5 // pred_region
      %s167 = ssub.s32 %s10, 1
      %p168 = scmp.lt.s32.totalorder %s15, 1
      %s169 = scalar_select %p168, %s15, 1
      %s170 = smul.addr %s169, 2
      %s171 = smul.addr %s170, 8
      %s172 = scalar_lea.vmem %s0, %s171
      %p173 = pneg %p36
      %p174 = pneg %p33
      %p175 = pneg %p57
      %p176 = pneg %p54
      %p177 = pneg %p78
      %p178 = pneg %p75
      %p179 = pneg %p99
      %p180 = pneg %p96
      %p181 = pneg %p125
      %p182 = pneg %p122
      %p183 = scmp.lt.s32.totalorder %s15, 1
      %s184 = scalar_select %p183, %s15, 1
      %s185 = smul.addr %s184, 2
      %s186 = smul.addr %s185, 8
      %s187 = scalar_lea.vmem %s4, %s186
      %p188 = scmp.lt.s32.totalorder %s15, 1
      %s189 = scalar_select %p188, %s15, 1
      %s190 = smul.addr %s189, 2
      %s191 = smul.addr %s190, 8
      %s192 = scalar_lea.vmem %s0, %s191
      %p193 = scmp.lt.s32.totalorder %s15, 1
      %s194 = scalar_select %p193, %s15, 1
      %s195 = smul.addr %s194, 2
      %s196 = smul.addr %s195, 8
      %s197 = scalar_lea.vmem %s4, %s196
      %v199 = vld [vmem:[%s192] sm:$0xff]
      %v200 = vld [vmem:[%s192 + $0x8] sm:$0xff]
      %v201 = vmul.f32 %v199, %v199
      %v202 = vmul.f32 %v200, %v200
      %v203 = vrot.slane %v201, 4
      %v204 = vadd.f32 %v201, %v203
      %v205 = vrot.slane %v204, 2
      %v206 = vadd.f32 %v204, %v205
      %v207 = vrot.slane %v206, 1
      %v208 = vadd.f32 %v206, %v207
      %v209 = vrot.slane %v202, 4
      %v210 = vadd.f32 %v202, %v209
      %v211 = vrot.slane %v210, 2
      %v212 = vadd.f32 %v210, %v211
      %v213 = vrot.slane %v212, 1
      %v214 = vadd.f32 %v212, %v213
      %v215 = vmax.f32 %v208, 1e-24
      %v216 = vmax.f32 %v214, 1e-24
      %v217 = vrsqrt.pop %v215
      %v218 = vmul.f32 %v217, %v215
      %v219 = vmul.f32 %v218, %v217
      %v220 = vmul.f32 0.5, %v219
      %v221 = vsub.f32 1.5, %v220
      %v222 = vmul.f32 %v217, %v221
      %vm223 = vweird.f32 %v215
      %vm224 = vweird.f32 %v217
      %vm225 = vmor %vm223, %vm224
      %v226 = vsel %vm225, %v217, %v222
      %v227 = vrsqrt.pop %v216
      %v228 = vmul.f32 %v227, %v216
      %v229 = vmul.f32 %v228, %v227
      %v230 = vmul.f32 0.5, %v229
      %v231 = vsub.f32 1.5, %v230
      %v232 = vmul.f32 %v227, %v231
      %vm233 = vweird.f32 %v216
      %vm234 = vweird.f32 %v227
      %vm235 = vmor %vm233, %vm234
      %v236 = vsel %vm235, %v227, %v232
      %v237 = vmul.f32 %v199, %v226
      %v238 = vmul.f32 %v200, %v236
      %v239 = vpack.c.bf16 %v237, %v237
      %v240 = vpack.c.bf16 %v238, %v238
      %v241 = vld [vmem:[%s1] sm:$0xf]
      %v242 = vld [vmem:[%s1 + $0x4] sm:$0xf]
      %v243 = vld [vmem:[%s1 + $0x8] sm:$0xf]
      %v244 = vld [vmem:[%s1 + $0xc] sm:$0xf]
      %v245 = vld [vmem:[%s1 + $0x10] sm:$0xf]
      %v246 = vld [vmem:[%s1 + $0x14] sm:$0xf]
      %v247 = vld [vmem:[%s1 + $0x18] sm:$0xf]
      %v248 = vld [vmem:[%s1 + $0x1c] sm:$0xf]
      %v249 = vld [vmem:[%s1 + $0x20] sm:$0xf]
      %v250 = vld [vmem:[%s1 + $0x24] sm:$0xf]
      %v251 = vld [vmem:[%s1 + $0x28] sm:$0xf]
      %v252 = vld [vmem:[%s1 + $0x2c] sm:$0xf]
      %v253 = vld [vmem:[%s1 + $0x30] sm:$0xf]
      %v254 = vld [vmem:[%s1 + $0x34] sm:$0xf]
      %v255 = vld [vmem:[%s1 + $0x38] sm:$0xf]
      %v256 = vld [vmem:[%s1 + $0x3c] sm:$0xf]
      %v257 = vld [vmem:[%s1 + $0x40] sm:$0xf]
      %v258 = vld [vmem:[%s1 + $0x44] sm:$0xf]
      %v259 = vld [vmem:[%s1 + $0x48] sm:$0xf]
      %v260 = vld [vmem:[%s1 + $0x4c] sm:$0xf]
      %v261 = vld [vmem:[%s1 + $0x50] sm:$0xf]
      %v262 = vld [vmem:[%s1 + $0x54] sm:$0xf]
      %v263 = vld [vmem:[%s1 + $0x58] sm:$0xf]
      %v264 = vld [vmem:[%s1 + $0x5c] sm:$0xf]
      %v265 = vld [vmem:[%s1 + $0x60] sm:$0xf]
      %v266 = vld [vmem:[%s1 + $0x64] sm:$0xf]
      %v267 = vld [vmem:[%s1 + $0x68] sm:$0xf]
      %v268 = vld [vmem:[%s1 + $0x6c] sm:$0xf]
      %v269 = vld [vmem:[%s1 + $0x70] sm:$0xf]
      %v270 = vld [vmem:[%s1 + $0x74] sm:$0xf]
      %v271 = vld [vmem:[%s1 + $0x78] sm:$0xf]
      %v272 = vld [vmem:[%s1 + $0x7c] sm:$0xf]
      %v273 = vld [vmem:[%s1 + $0x80] sm:$0xf]
      %v274 = vld [vmem:[%s1 + $0x84] sm:$0xf]
      %v275 = vld [vmem:[%s1 + $0x88] sm:$0xf]
      %v276 = vld [vmem:[%s1 + $0x8c] sm:$0xf]
      %v277 = vld [vmem:[%s1 + $0x90] sm:$0xf]
      %v278 = vld [vmem:[%s1 + $0x94] sm:$0xf]
      %v279 = vld [vmem:[%s1 + $0x98] sm:$0xf]
      %v280 = vld [vmem:[%s1 + $0x9c] sm:$0xf]
      %v281 = vld [vmem:[%s1 + $0xa0] sm:$0xf]
      %v282 = vld [vmem:[%s1 + $0xa4] sm:$0xf]
      %v283 = vld [vmem:[%s1 + $0xa8] sm:$0xf]
      %v284 = vld [vmem:[%s1 + $0xac] sm:$0xf]
      %v285 = vld [vmem:[%s1 + $0xb0] sm:$0xf]
      %v286 = vld [vmem:[%s1 + $0xb4] sm:$0xf]
      %v287 = vld [vmem:[%s1 + $0xb8] sm:$0xf]
      %v288 = vld [vmem:[%s1 + $0xbc] sm:$0xf]
      %v337 = vunpack.c.l.b16 %v241
      %v338 = vunpack.c.l.b16 %v242
      %v339 = vunpack.c.l.b16 %v243
      %v340 = vunpack.c.l.b16 %v244
      %v341 = vunpack.c.l.b16 %v245
      %v342 = vunpack.c.l.b16 %v246
      %v343 = vunpack.c.l.b16 %v247
      %v344 = vunpack.c.l.b16 %v248
      %v345 = vunpack.c.l.b16 %v249
      %v346 = vunpack.c.l.b16 %v250
      %v347 = vunpack.c.l.b16 %v251
      %v348 = vunpack.c.l.b16 %v252
      %v349 = vunpack.c.l.b16 %v253
      %v350 = vunpack.c.l.b16 %v254
      %v351 = vunpack.c.l.b16 %v255
      %v352 = vunpack.c.l.b16 %v256
      %v353 = vunpack.c.l.b16 %v257
      %v354 = vunpack.c.l.b16 %v258
      %v355 = vunpack.c.l.b16 %v259
      %v356 = vunpack.c.l.b16 %v260
      %v357 = vunpack.c.l.b16 %v261
      %v358 = vunpack.c.l.b16 %v262
      %v359 = vunpack.c.l.b16 %v263
      %v360 = vunpack.c.l.b16 %v264
      %v361 = vunpack.c.l.b16 %v265
      %v362 = vunpack.c.l.b16 %v266
      %v363 = vunpack.c.l.b16 %v267
      %v364 = vunpack.c.l.b16 %v268
      %v365 = vunpack.c.l.b16 %v269
      %v366 = vunpack.c.l.b16 %v270
      %v367 = vunpack.c.l.b16 %v271
      %v368 = vunpack.c.l.b16 %v272
      %v369 = vunpack.c.l.b16 %v273
      %v370 = vunpack.c.l.b16 %v274
      %v371 = vunpack.c.l.b16 %v275
      %v372 = vunpack.c.l.b16 %v276
      %v373 = vunpack.c.l.b16 %v277
      %v374 = vunpack.c.l.b16 %v278
      %v375 = vunpack.c.l.b16 %v279
      %v376 = vunpack.c.l.b16 %v280
      %v377 = vunpack.c.l.b16 %v281
      %v378 = vunpack.c.l.b16 %v282
      %v379 = vunpack.c.l.b16 %v283
      %v380 = vunpack.c.l.b16 %v284
      %v381 = vunpack.c.l.b16 %v285
      %v382 = vunpack.c.l.b16 %v286
      %v383 = vunpack.c.l.b16 %v287
      %v384 = vunpack.c.l.b16 %v288
      %v385 = vpack.c.b16 %v338, %v337
      %v386 = vpack.c.b16 %v340, %v339
      %v387 = vpack.c.b16 %v342, %v341
      %v388 = vpack.c.b16 %v344, %v343
      %v389 = vpack.c.b16 %v346, %v345
      %v390 = vpack.c.b16 %v348, %v347
      %v391 = vpack.c.b16 %v350, %v349
      %v392 = vpack.c.b16 %v352, %v351
      %v393 = vpack.c.b16 %v354, %v353
      %v394 = vpack.c.b16 %v356, %v355
      %v395 = vpack.c.b16 %v358, %v357
      %v396 = vpack.c.b16 %v360, %v359
      %v397 = vpack.c.b16 %v362, %v361
      %v398 = vpack.c.b16 %v364, %v363
      %v399 = vpack.c.b16 %v366, %v365
      %v400 = vpack.c.b16 %v368, %v367
      %v401 = vpack.c.b16 %v370, %v369
      %v402 = vpack.c.b16 %v372, %v371
      %v403 = vpack.c.b16 %v374, %v373
      %v404 = vpack.c.b16 %v376, %v375
      %v405 = vpack.c.b16 %v378, %v377
      %v406 = vpack.c.b16 %v380, %v379
      %v407 = vpack.c.b16 %v382, %v381
      %v408 = vpack.c.b16 %v384, %v383
      %vm409 = vcmask 64512
      %v411 = vsel %vm409, %v385, 0
      %v414 = vsel %vm409, %v386, 0
      %v417 = vsel %vm409, %v387, 0
      %v420 = vsel %vm409, %v388, 0
      %v423 = vsel %vm409, %v389, 0
      %v426 = vsel %vm409, %v390, 0
      %v429 = vsel %vm409, %v391, 0
      %v432 = vsel %vm409, %v392, 0
      %v435 = vsel %vm409, %v393, 0
      %v438 = vsel %vm409, %v394, 0
      %v441 = vsel %vm409, %v395, 0
      %v444 = vsel %vm409, %v396, 0
      %v447 = vsel %vm409, %v397, 0
      %v450 = vsel %vm409, %v398, 0
      %v453 = vsel %vm409, %v399, 0
      %v456 = vsel %vm409, %v400, 0
      %v459 = vsel %vm409, %v401, 0
      %v462 = vsel %vm409, %v402, 0
      %v465 = vsel %vm409, %v403, 0
      %v468 = vsel %vm409, %v404, 0
      %v471 = vsel %vm409, %v405, 0
      %v474 = vsel %vm409, %v406, 0
      %v477 = vsel %vm409, %v407, 0
      %v480 = vsel %vm409, %v408, 0
      %vm482 = vcmask 1043456
      %v484 = vsel %vm482, %v239, 0
      %v487 = vsel %vm482, %v240, 0
      %489 = vmatpush.bf16.msra.mxu0 0
      %490 = vmatpush.bf16.msra.mxu0 0
      %491 = vmatpush.bf16.msra.mxu0 0
      %492 = vmatpush.bf16.msra.mxu0 0
      %493 = vmatpush.bf16.msra.mxu0 0
      %494 = vmatpush.bf16.msra.mxu0 0
      %495 = vmatpush.bf16.msra.mxu0 0
      %496 = vmatpush.bf16.msra.mxu0 %v484
      %497 = vmatmul.bf16.gmra.mxu0 %v411
      %v498 = vpop.f32.mrf.mxu0
      %v499 = vadd.f32 0.0, %v498
      %v500 = vpop.f32.mrf.mxu0
      %v501 = vadd.f32 0.0, %v500
      %502 = vmatmul.bf16.gmra.mxu0 %v414
      %v503 = vpop.f32.mrf.mxu0
      %v504 = vadd.f32 0.0, %v503
      %v505 = vpop.f32.mrf.mxu0
      %v506 = vadd.f32 0.0, %v505
      %507 = vmatmul.bf16.gmra.mxu0 %v417
      %v508 = vpop.f32.mrf.mxu0
      %v509 = vadd.f32 0.0, %v508
      %v510 = vpop.f32.mrf.mxu0
      %v511 = vadd.f32 0.0, %v510
      %512 = vmatmul.bf16.gmra.mxu0 %v420
      %v513 = vpop.f32.mrf.mxu0
      %v514 = vadd.f32 0.0, %v513
      %v515 = vpop.f32.mrf.mxu0
      %v516 = vadd.f32 0.0, %v515
      %517 = vmatmul.bf16.gmra.mxu0 %v423
      %v518 = vpop.f32.mrf.mxu0
      %v519 = vadd.f32 0.0, %v518
      %v520 = vpop.f32.mrf.mxu0
      %v521 = vadd.f32 0.0, %v520
      %522 = vmatmul.bf16.gmra.mxu0 %v426
      %v523 = vpop.f32.mrf.mxu0
      %v524 = vadd.f32 0.0, %v523
      %v525 = vpop.f32.mrf.mxu0
      %v526 = vadd.f32 0.0, %v525
      %527 = vmatmul.bf16.gmra.mxu0 %v429
      %v528 = vpop.f32.mrf.mxu0
      %v529 = vadd.f32 0.0, %v528
      %v530 = vpop.f32.mrf.mxu0
      %v531 = vadd.f32 0.0, %v530
      %532 = vmatmul.bf16.gmra.mxu0 %v432
      %v533 = vpop.f32.mrf.mxu0
      %v534 = vadd.f32 0.0, %v533
      %v535 = vpop.f32.mrf.mxu0
      %v536 = vadd.f32 0.0, %v535
      %537 = vmatmul.bf16.gmra.mxu0 %v435
      %v538 = vpop.f32.mrf.mxu0
      %v539 = vadd.f32 0.0, %v538
      %v540 = vpop.f32.mrf.mxu0
      %v541 = vadd.f32 0.0, %v540
      %542 = vmatmul.bf16.gmra.mxu0 %v438
      %v543 = vpop.f32.mrf.mxu0
      %v544 = vadd.f32 0.0, %v543
      %v545 = vpop.f32.mrf.mxu0
      %v546 = vadd.f32 0.0, %v545
      %547 = vmatmul.bf16.gmra.mxu0 %v441
      %v548 = vpop.f32.mrf.mxu0
      %v549 = vadd.f32 0.0, %v548
      %v550 = vpop.f32.mrf.mxu0
      %v551 = vadd.f32 0.0, %v550
      %552 = vmatmul.bf16.gmra.mxu0 %v444
      %v553 = vpop.f32.mrf.mxu0
      %v554 = vadd.f32 0.0, %v553
      %v555 = vpop.f32.mrf.mxu0
      %v556 = vadd.f32 0.0, %v555
      %557 = vmatmul.bf16.gmra.mxu0 %v447
      %v558 = vpop.f32.mrf.mxu0
      %v559 = vadd.f32 0.0, %v558
      %v560 = vpop.f32.mrf.mxu0
      %v561 = vadd.f32 0.0, %v560
      %562 = vmatmul.bf16.gmra.mxu0 %v450
      %v563 = vpop.f32.mrf.mxu0
      %v564 = vadd.f32 0.0, %v563
      %v565 = vpop.f32.mrf.mxu0
      %v566 = vadd.f32 0.0, %v565
      %567 = vmatmul.bf16.gmra.mxu0 %v453
      %v568 = vpop.f32.mrf.mxu0
      %v569 = vadd.f32 0.0, %v568
      %v570 = vpop.f32.mrf.mxu0
      %v571 = vadd.f32 0.0, %v570
      %572 = vmatmul.bf16.gmra.mxu0 %v456
      %v573 = vpop.f32.mrf.mxu0
      %v574 = vadd.f32 0.0, %v573
      %v575 = vpop.f32.mrf.mxu0
      %v576 = vadd.f32 0.0, %v575
      %577 = vmatmul.bf16.gmra.mxu0 %v459
      %v578 = vpop.f32.mrf.mxu0
      %v579 = vadd.f32 0.0, %v578
      %v580 = vpop.f32.mrf.mxu0
      %v581 = vadd.f32 0.0, %v580
      %582 = vmatmul.bf16.gmra.mxu0 %v462
      %v583 = vpop.f32.mrf.mxu0
      %v584 = vadd.f32 0.0, %v583
      %v585 = vpop.f32.mrf.mxu0
      %v586 = vadd.f32 0.0, %v585
      %587 = vmatmul.bf16.gmra.mxu0 %v465
      %v588 = vpop.f32.mrf.mxu0
      %v589 = vadd.f32 0.0, %v588
      %v590 = vpop.f32.mrf.mxu0
      %v591 = vadd.f32 0.0, %v590
      %592 = vmatmul.bf16.gmra.mxu0 %v468
      %v593 = vpop.f32.mrf.mxu0
      %v594 = vadd.f32 0.0, %v593
      %v595 = vpop.f32.mrf.mxu0
      %v596 = vadd.f32 0.0, %v595
      %597 = vmatmul.bf16.gmra.mxu0 %v471
      %v598 = vpop.f32.mrf.mxu0
      %v599 = vadd.f32 0.0, %v598
      %v600 = vpop.f32.mrf.mxu0
      %v601 = vadd.f32 0.0, %v600
      %602 = vmatmul.bf16.gmra.mxu0 %v474
      %v603 = vpop.f32.mrf.mxu0
      %v604 = vadd.f32 0.0, %v603
      %v605 = vpop.f32.mrf.mxu0
      %v606 = vadd.f32 0.0, %v605
      %607 = vmatmul.bf16.gmra.mxu0 %v477
      %v608 = vpop.f32.mrf.mxu0
      %v609 = vadd.f32 0.0, %v608
      %v610 = vpop.f32.mrf.mxu0
      %v611 = vadd.f32 0.0, %v610
      %612 = vmatmul.bf16.gmra.mxu0 %v480
      %v613 = vpop.f32.mrf.mxu0
      %v614 = vadd.f32 0.0, %v613
      %v615 = vpop.f32.mrf.mxu0
      %v616 = vadd.f32 0.0, %v615
      %617 = vdwg.mxu0
      %618 = vmatpush.bf16.msra.mxu0 0
      %619 = vmatpush.bf16.msra.mxu0 0
      %620 = vmatpush.bf16.msra.mxu0 0
      %621 = vmatpush.bf16.msra.mxu0 0
      %622 = vmatpush.bf16.msra.mxu0 0
      %623 = vmatpush.bf16.msra.mxu0 0
      %624 = vmatpush.bf16.msra.mxu0 0
      %625 = vmatpush.bf16.msra.mxu0 %v487
      %626 = vmatmul.bf16.gmra.mxu0 %v411
      %v627 = vpop.f32.mrf.mxu0
      %v628 = vadd.f32 0.0, %v627
      %v629 = vpop.f32.mrf.mxu0
      %v630 = vadd.f32 0.0, %v629
      %631 = vmatmul.bf16.gmra.mxu0 %v414
      %v632 = vpop.f32.mrf.mxu0
      %v633 = vadd.f32 0.0, %v632
      %v634 = vpop.f32.mrf.mxu0
      %v635 = vadd.f32 0.0, %v634
      %636 = vmatmul.bf16.gmra.mxu0 %v417
      %v637 = vpop.f32.mrf.mxu0
      %v638 = vadd.f32 0.0, %v637
      %v639 = vpop.f32.mrf.mxu0
      %v640 = vadd.f32 0.0, %v639
      %641 = vmatmul.bf16.gmra.mxu0 %v420
      %v642 = vpop.f32.mrf.mxu0
      %v643 = vadd.f32 0.0, %v642
      %v644 = vpop.f32.mrf.mxu0
      %v645 = vadd.f32 0.0, %v644
      %646 = vmatmul.bf16.gmra.mxu0 %v423
      %v647 = vpop.f32.mrf.mxu0
      %v648 = vadd.f32 0.0, %v647
      %v649 = vpop.f32.mrf.mxu0
      %v650 = vadd.f32 0.0, %v649
      %651 = vmatmul.bf16.gmra.mxu0 %v426
      %v652 = vpop.f32.mrf.mxu0
      %v653 = vadd.f32 0.0, %v652
      %v654 = vpop.f32.mrf.mxu0
      %v655 = vadd.f32 0.0, %v654
      %656 = vmatmul.bf16.gmra.mxu0 %v429
      %v657 = vpop.f32.mrf.mxu0
      %v658 = vadd.f32 0.0, %v657
      %v659 = vpop.f32.mrf.mxu0
      %v660 = vadd.f32 0.0, %v659
      %661 = vmatmul.bf16.gmra.mxu0 %v432
      %v662 = vpop.f32.mrf.mxu0
      %v663 = vadd.f32 0.0, %v662
      %v664 = vpop.f32.mrf.mxu0
      %v665 = vadd.f32 0.0, %v664
      %666 = vmatmul.bf16.gmra.mxu0 %v435
      %v667 = vpop.f32.mrf.mxu0
      %v668 = vadd.f32 0.0, %v667
      %v669 = vpop.f32.mrf.mxu0
      %v670 = vadd.f32 0.0, %v669
      %671 = vmatmul.bf16.gmra.mxu0 %v438
      %v672 = vpop.f32.mrf.mxu0
      %v673 = vadd.f32 0.0, %v672
      %v674 = vpop.f32.mrf.mxu0
      %v675 = vadd.f32 0.0, %v674
      %676 = vmatmul.bf16.gmra.mxu0 %v441
      %v677 = vpop.f32.mrf.mxu0
      %v678 = vadd.f32 0.0, %v677
      %v679 = vpop.f32.mrf.mxu0
      %v680 = vadd.f32 0.0, %v679
      %681 = vmatmul.bf16.gmra.mxu0 %v444
      %v682 = vpop.f32.mrf.mxu0
      %v683 = vadd.f32 0.0, %v682
      %v684 = vpop.f32.mrf.mxu0
      %v685 = vadd.f32 0.0, %v684
      %686 = vmatmul.bf16.gmra.mxu0 %v447
      %v687 = vpop.f32.mrf.mxu0
      %v688 = vadd.f32 0.0, %v687
      %v689 = vpop.f32.mrf.mxu0
      %v690 = vadd.f32 0.0, %v689
      %691 = vmatmul.bf16.gmra.mxu0 %v450
      %v692 = vpop.f32.mrf.mxu0
      %v693 = vadd.f32 0.0, %v692
      %v694 = vpop.f32.mrf.mxu0
      %v695 = vadd.f32 0.0, %v694
      %696 = vmatmul.bf16.gmra.mxu0 %v453
      %v697 = vpop.f32.mrf.mxu0
      %v698 = vadd.f32 0.0, %v697
      %v699 = vpop.f32.mrf.mxu0
      %v700 = vadd.f32 0.0, %v699
      %701 = vmatmul.bf16.gmra.mxu0 %v456
      %v702 = vpop.f32.mrf.mxu0
      %v703 = vadd.f32 0.0, %v702
      %v704 = vpop.f32.mrf.mxu0
      %v705 = vadd.f32 0.0, %v704
      %706 = vmatmul.bf16.gmra.mxu0 %v459
      %v707 = vpop.f32.mrf.mxu0
      %v708 = vadd.f32 0.0, %v707
      %v709 = vpop.f32.mrf.mxu0
      %v710 = vadd.f32 0.0, %v709
      %711 = vmatmul.bf16.gmra.mxu0 %v462
      %v712 = vpop.f32.mrf.mxu0
      %v713 = vadd.f32 0.0, %v712
      %v714 = vpop.f32.mrf.mxu0
      %v715 = vadd.f32 0.0, %v714
      %716 = vmatmul.bf16.gmra.mxu0 %v465
      %v717 = vpop.f32.mrf.mxu0
      %v718 = vadd.f32 0.0, %v717
      %v719 = vpop.f32.mrf.mxu0
      %v720 = vadd.f32 0.0, %v719
      %721 = vmatmul.bf16.gmra.mxu0 %v468
      %v722 = vpop.f32.mrf.mxu0
      %v723 = vadd.f32 0.0, %v722
      %v724 = vpop.f32.mrf.mxu0
      %v725 = vadd.f32 0.0, %v724
      %726 = vmatmul.bf16.gmra.mxu0 %v471
      %v727 = vpop.f32.mrf.mxu0
      %v728 = vadd.f32 0.0, %v727
      %v729 = vpop.f32.mrf.mxu0
      %v730 = vadd.f32 0.0, %v729
      %731 = vmatmul.bf16.gmra.mxu0 %v474
      %v732 = vpop.f32.mrf.mxu0
      %v733 = vadd.f32 0.0, %v732
      %v734 = vpop.f32.mrf.mxu0
      %v735 = vadd.f32 0.0, %v734
      %736 = vmatmul.bf16.gmra.mxu0 %v477
      %v737 = vpop.f32.mrf.mxu0
      %v738 = vadd.f32 0.0, %v737
      %v739 = vpop.f32.mrf.mxu0
      %v740 = vadd.f32 0.0, %v739
      %741 = vmatmul.bf16.gmra.mxu0 %v480
      %v742 = vpop.f32.mrf.mxu0
      %v743 = vadd.f32 0.0, %v742
      %v744 = vpop.f32.mrf.mxu0
      %v745 = vadd.f32 0.0, %v744
      %746 = vdwg.mxu0
      %v747 = vpack.c.bf16 %v628, %v499
      %v748 = vpack.c.bf16 %v630, %v501
      %v749 = vpack.c.bf16 %v633, %v504
      %v750 = vpack.c.bf16 %v635, %v506
      %v751 = vpack.c.bf16 %v638, %v509
      %v752 = vpack.c.bf16 %v640, %v511
      %v753 = vpack.c.bf16 %v643, %v514
      %v754 = vpack.c.bf16 %v645, %v516
      %v755 = vpack.c.bf16 %v648, %v519
      %v756 = vpack.c.bf16 %v650, %v521
      %v757 = vpack.c.bf16 %v653, %v524
      %v758 = vpack.c.bf16 %v655, %v526
      %v759 = vpack.c.bf16 %v658, %v529
      %v760 = vpack.c.bf16 %v660, %v531
      %v761 = vpack.c.bf16 %v663, %v534
      %v762 = vpack.c.bf16 %v665, %v536
      %v763 = vpack.c.bf16 %v668, %v539
      %v764 = vpack.c.bf16 %v670, %v541
      %v765 = vpack.c.bf16 %v673, %v544
      %v766 = vpack.c.bf16 %v675, %v546
      %v767 = vpack.c.bf16 %v678, %v549
      %v768 = vpack.c.bf16 %v680, %v551
      %v769 = vpack.c.bf16 %v683, %v554
      %v770 = vpack.c.bf16 %v685, %v556
      %v771 = vpack.c.bf16 %v688, %v559
      %v772 = vpack.c.bf16 %v690, %v561
      %v773 = vpack.c.bf16 %v693, %v564
      %v774 = vpack.c.bf16 %v695, %v566
      %v775 = vpack.c.bf16 %v698, %v569
      %v776 = vpack.c.bf16 %v700, %v571
      %v777 = vpack.c.bf16 %v703, %v574
      %v778 = vpack.c.bf16 %v705, %v576
      %v779 = vpack.c.bf16 %v708, %v579
      %v780 = vpack.c.bf16 %v710, %v581
      %v781 = vpack.c.bf16 %v713, %v584
      %v782 = vpack.c.bf16 %v715, %v586
      %v783 = vpack.c.bf16 %v718, %v589
      %v784 = vpack.c.bf16 %v720, %v591
      %v785 = vpack.c.bf16 %v723, %v594
      %v786 = vpack.c.bf16 %v725, %v596
      %v787 = vpack.c.bf16 %v728, %v599
      %v788 = vpack.c.bf16 %v730, %v601
      %v789 = vpack.c.bf16 %v733, %v604
      %v790 = vpack.c.bf16 %v735, %v606
      %v791 = vpack.c.bf16 %v738, %v609
      %v792 = vpack.c.bf16 %v740, %v611
      %v793 = vpack.c.bf16 %v743, %v614
      %v794 = vpack.c.bf16 %v745, %v616
      %795 = vst [vmem:[#allocation2] sm:$0xff] %v747
      %796 = vst [vmem:[#allocation2 + $0x8] sm:$0xff] %v748
      %797 = vst [vmem:[#allocation2 + $0x10] sm:$0xff] %v749
      %798 = vst [vmem:[#allocation2 + $0x18] sm:$0xff] %v750
      %799 = vst [vmem:[#allocation2 + $0x20] sm:$0xff] %v751
      %800 = vst [vmem:[#allocation2 + $0x28] sm:$0xff] %v752
      %801 = vst [vmem:[#allocation2 + $0x30] sm:$0xff] %v753
      %802 = vst [vmem:[#allocation2 + $0x38] sm:$0xff] %v754
      %803 = vst [vmem:[#allocation2 + $0x40] sm:$0xff] %v755
      %804 = vst [vmem:[#allocation2 + $0x48] sm:$0xff] %v756
      %805 = vst [vmem:[#allocation2 + $0x50] sm:$0xff] %v757
      %806 = vst [vmem:[#allocation2 + $0x58] sm:$0xff] %v758
      %807 = vst [vmem:[#allocation2 + $0x60] sm:$0xff] %v759
      %808 = vst [vmem:[#allocation2 + $0x68] sm:$0xff] %v760
      %809 = vst [vmem:[#allocation2 + $0x70] sm:$0xff] %v761
      %810 = vst [vmem:[#allocation2 + $0x78] sm:$0xff] %v762
      %811 = vst [vmem:[#allocation2 + $0x80] sm:$0xff] %v763
      %812 = vst [vmem:[#allocation2 + $0x88] sm:$0xff] %v764
      %813 = vst [vmem:[#allocation2 + $0x90] sm:$0xff] %v765
      %814 = vst [vmem:[#allocation2 + $0x98] sm:$0xff] %v766
      %815 = vst [vmem:[#allocation2 + $0xa0] sm:$0xff] %v767
      %816 = vst [vmem:[#allocation2 + $0xa8] sm:$0xff] %v768
      %817 = vst [vmem:[#allocation2 + $0xb0] sm:$0xff] %v769
      %818 = vst [vmem:[#allocation2 + $0xb8] sm:$0xff] %v770
      %819 = vst [vmem:[#allocation2 + $0xc0] sm:$0xff] %v771
      %820 = vst [vmem:[#allocation2 + $0xc8] sm:$0xff] %v772
      %821 = vst [vmem:[#allocation2 + $0xd0] sm:$0xff] %v773
      %822 = vst [vmem:[#allocation2 + $0xd8] sm:$0xff] %v774
      %823 = vst [vmem:[#allocation2 + $0xe0] sm:$0xff] %v775
      %824 = vst [vmem:[#allocation2 + $0xe8] sm:$0xff] %v776
      %825 = vst [vmem:[#allocation2 + $0xf0] sm:$0xff] %v777
      %826 = vst [vmem:[#allocation2 + $0xf8] sm:$0xff] %v778
      %827 = vst [vmem:[#allocation2 + $0x100] sm:$0xff] %v779
      %828 = vst [vmem:[#allocation2 + $0x108] sm:$0xff] %v780
      %829 = vst [vmem:[#allocation2 + $0x110] sm:$0xff] %v781
      %830 = vst [vmem:[#allocation2 + $0x118] sm:$0xff] %v782
      %831 = vst [vmem:[#allocation2 + $0x120] sm:$0xff] %v783
      %832 = vst [vmem:[#allocation2 + $0x128] sm:$0xff] %v784
      %833 = vst [vmem:[#allocation2 + $0x130] sm:$0xff] %v785
      %834 = vst [vmem:[#allocation2 + $0x138] sm:$0xff] %v786
      %835 = vst [vmem:[#allocation2 + $0x140] sm:$0xff] %v787
      %836 = vst [vmem:[#allocation2 + $0x148] sm:$0xff] %v788
      %837 = vst [vmem:[#allocation2 + $0x150] sm:$0xff] %v789
      %838 = vst [vmem:[#allocation2 + $0x158] sm:$0xff] %v790
      %839 = vst [vmem:[#allocation2 + $0x160] sm:$0xff] %v791
      %840 = vst [vmem:[#allocation2 + $0x168] sm:$0xff] %v792
      %841 = vst [vmem:[#allocation2 + $0x170] sm:$0xff] %v793
      %842 = vst [vmem:[#allocation2 + $0x178] sm:$0xff] %v794
      %v843 = vld [vmem:[#allocation2] sm:$0xff]
      %v844 = vld [vmem:[#allocation2 + $0x8] sm:$0xff]
      %v845 = vld [vmem:[#allocation2 + $0x10] sm:$0xff]
      %v846 = vld [vmem:[#allocation2 + $0x18] sm:$0xff]
      %v847 = vld [vmem:[#allocation2 + $0x80] sm:$0xff]
      %v848 = vld [vmem:[#allocation2 + $0x88] sm:$0xff]
      %v849 = vld [vmem:[#allocation2 + $0x90] sm:$0xff]
      %v850 = vld [vmem:[#allocation2 + $0x98] sm:$0xff]
      %v851 = vld [vmem:[#allocation2 + $0x100] sm:$0xff]
      %v852 = vld [vmem:[#allocation2 + $0x108] sm:$0xff]
      %v853 = vld [vmem:[#allocation2 + $0x110] sm:$0xff]
      %v854 = vld [vmem:[#allocation2 + $0x118] sm:$0xff]
      %v859 = vunpack.c.l.b16 %v847
      %v860 = vunpack.c.h.b16 %v847
      %v861 = vunpack.c.l.b16 %v848
      %v862 = vunpack.c.h.b16 %v848
      %v863 = vunpack.c.l.b16 %v849
      %v864 = vunpack.c.h.b16 %v849
      %v865 = vunpack.c.l.b16 %v850
      %v866 = vunpack.c.h.b16 %v850
      %v867 = vpack.c.b16 %v861, %v859
      %v868 = vpack.c.b16 %v862, %v860
      %v869 = vpack.c.b16 %v865, %v863
      %v870 = vpack.c.b16 %v866, %v864
      %875 = vxpose.binary.xlu0.c.b16.start [1/16] %v868, %v867, 128
      %876 = vxpose.binary.xlu0.c.b16.cont [2/16] %v870, %v869, 128
      %877 = vxpose.binary.xlu0.c.b16.cont [3/16] 0, 0, 128
      %878 = vxpose.binary.xlu0.c.b16.cont [4/16] 0, 0, 128
      %879 = vxpose.binary.xlu0.c.b16.cont [5/16] 0, 0, 128
      %880 = vxpose.binary.xlu0.c.b16.cont [6/16] 0, 0, 128
      %881 = vxpose.binary.xlu0.c.b16.cont [7/16] 0, 0, 128
      %882 = vxpose.binary.xlu0.c.b16.end [8/16] 0, 0, 128
      %v883 = vpop.trf.xlu0
      %v884 = vpop.trf.xlu0
      %v885 = vpop.trf.xlu0
      %v886 = vpop.trf.xlu0
      %v887 = vpop.trf.xlu0
      %v888 = vpop.trf.xlu0
      %v889 = vpop.trf.xlu0
      %v890 = vpop.trf.xlu0
      %v891 = vpop.trf.xlu0
      %v892 = vpop.trf.xlu0
      %v893 = vpop.trf.xlu0
      %v894 = vpop.trf.xlu0
      %v895 = vpop.trf.xlu0
      %v896 = vpop.trf.xlu0
      %v897 = vpop.trf.xlu0
      %v898 = vpop.trf.xlu0
      %v903 = vunpack.c.l.b16 %v843
      %v904 = vunpack.c.h.b16 %v843
      %v905 = vunpack.c.l.b16 %v844
      %v906 = vunpack.c.h.b16 %v844
      %v907 = vunpack.c.l.b16 %v845
      %v908 = vunpack.c.h.b16 %v845
      %v909 = vunpack.c.l.b16 %v846
      %v910 = vunpack.c.h.b16 %v846
      %v911 = vpack.c.b16 %v905, %v903
      %v912 = vpack.c.b16 %v906, %v904
      %v913 = vpack.c.b16 %v909, %v907
      %v914 = vpack.c.b16 %v910, %v908
      %vm919 = vcmask 261120
      %v921 = vsel %vm919, %v883, 0
      %v924 = vsel %vm919, %v885, 0
      %v927 = vsel %vm919, %v887, 0
      %v930 = vsel %vm919, %v889, 0
      %v933 = vsel %vm919, %v891, 0
      %v936 = vsel %vm919, %v893, 0
      %v939 = vsel %vm919, %v895, 0
      %v942 = vsel %vm919, %v897, 0
      %v945 = vsel %vm919, %v884, 0
      %v948 = vsel %vm919, %v886, 0
      %v951 = vsel %vm919, %v888, 0
      %v954 = vsel %vm919, %v890, 0
      %v957 = vsel %vm919, %v892, 0
      %v960 = vsel %vm919, %v894, 0
      %v963 = vsel %vm919, %v896, 0
      %v966 = vsel %vm919, %v898, 0
      %968 = vmatpush.bf16.msra.mxu0 0
      %969 = vmatpush.bf16.msra.mxu0 0
      %970 = vmatpush.bf16.msra.mxu0 0
      %971 = vmatpush.bf16.msra.mxu0 0
      %972 = vmatpush.bf16.msra.mxu0 0
      %973 = vmatpush.bf16.msra.mxu0 0
      %974 = vmatpush.bf16.msra.mxu0 %v913
      %975 = vmatpush.bf16.msra.mxu0 %v911
      %976 = vmatmul.bf16.gmra.mxu0 %v921
      %v977 = vpop.f32.mrf.mxu0
      %v978 = vadd.f32 0.0, %v977
      %v979 = vpop.f32.mrf.mxu0
      %v980 = vadd.f32 0.0, %v979
      %981 = vmatmul.bf16.gmra.mxu0 %v924
      %v982 = vpop.f32.mrf.mxu0
      %v983 = vadd.f32 0.0, %v982
      %v984 = vpop.f32.mrf.mxu0
      %v985 = vadd.f32 0.0, %v984
      %986 = vmatmul.bf16.gmra.mxu0 %v927
      %v987 = vpop.f32.mrf.mxu0
      %v988 = vadd.f32 0.0, %v987
      %v989 = vpop.f32.mrf.mxu0
      %v990 = vadd.f32 0.0, %v989
      %991 = vmatmul.bf16.gmra.mxu0 %v930
      %v992 = vpop.f32.mrf.mxu0
      %v993 = vadd.f32 0.0, %v992
      %v994 = vpop.f32.mrf.mxu0
      %v995 = vadd.f32 0.0, %v994
      %996 = vmatmul.bf16.gmra.mxu0 %v933
      %v997 = vpop.f32.mrf.mxu0
      %v998 = vadd.f32 0.0, %v997
      %v999 = vpop.f32.mrf.mxu0
      %v1000 = vadd.f32 0.0, %v999
      %1001 = vmatmul.bf16.gmra.mxu0 %v936
      %v1002 = vpop.f32.mrf.mxu0
      %v1003 = vadd.f32 0.0, %v1002
      %v1004 = vpop.f32.mrf.mxu0
      %v1005 = vadd.f32 0.0, %v1004
      %1006 = vmatmul.bf16.gmra.mxu0 %v939
      %v1007 = vpop.f32.mrf.mxu0
      %v1008 = vadd.f32 0.0, %v1007
      %v1009 = vpop.f32.mrf.mxu0
      %v1010 = vadd.f32 0.0, %v1009
      %1011 = vmatmul.bf16.gmra.mxu0 %v942
      %v1012 = vpop.f32.mrf.mxu0
      %v1013 = vadd.f32 0.0, %v1012
      %v1014 = vpop.f32.mrf.mxu0
      %v1015 = vadd.f32 0.0, %v1014
      %1016 = vmatmul.bf16.gmra.mxu0 %v945
      %v1017 = vpop.f32.mrf.mxu0
      %v1018 = vadd.f32 0.0, %v1017
      %v1019 = vpop.f32.mrf.mxu0
      %v1020 = vadd.f32 0.0, %v1019
      %1021 = vmatmul.bf16.gmra.mxu0 %v948
      %v1022 = vpop.f32.mrf.mxu0
      %v1023 = vadd.f32 0.0, %v1022
      %v1024 = vpop.f32.mrf.mxu0
      %v1025 = vadd.f32 0.0, %v1024
      %1026 = vmatmul.bf16.gmra.mxu0 %v951
      %v1027 = vpop.f32.mrf.mxu0
      %v1028 = vadd.f32 0.0, %v1027
      %v1029 = vpop.f32.mrf.mxu0
      %v1030 = vadd.f32 0.0, %v1029
      %1031 = vmatmul.bf16.gmra.mxu0 %v954
      %v1032 = vpop.f32.mrf.mxu0
      %v1033 = vadd.f32 0.0, %v1032
      %v1034 = vpop.f32.mrf.mxu0
      %v1035 = vadd.f32 0.0, %v1034
      %1036 = vmatmul.bf16.gmra.mxu0 %v957
      %v1037 = vpop.f32.mrf.mxu0
      %v1038 = vadd.f32 0.0, %v1037
      %v1039 = vpop.f32.mrf.mxu0
      %v1040 = vadd.f32 0.0, %v1039
      %1041 = vmatmul.bf16.gmra.mxu0 %v960
      %v1042 = vpop.f32.mrf.mxu0
      %v1043 = vadd.f32 0.0, %v1042
      %v1044 = vpop.f32.mrf.mxu0
      %v1045 = vadd.f32 0.0, %v1044
      %1046 = vmatmul.bf16.gmra.mxu0 %v963
      %v1047 = vpop.f32.mrf.mxu0
      %v1048 = vadd.f32 0.0, %v1047
      %v1049 = vpop.f32.mrf.mxu0
      %v1050 = vadd.f32 0.0, %v1049
      %1051 = vmatmul.bf16.gmra.mxu0 %v966
      %v1052 = vpop.f32.mrf.mxu0
      %v1053 = vadd.f32 0.0, %v1052
      %v1054 = vpop.f32.mrf.mxu0
      %v1055 = vadd.f32 0.0, %v1054
      %1056 = vdwg.mxu0
      %1057 = vmatpush.bf16.msra.mxu0 0
      %1058 = vmatpush.bf16.msra.mxu0 0
      %1059 = vmatpush.bf16.msra.mxu0 0
      %1060 = vmatpush.bf16.msra.mxu0 0
      %1061 = vmatpush.bf16.msra.mxu0 0
      %1062 = vmatpush.bf16.msra.mxu0 0
      %1063 = vmatpush.bf16.msra.mxu0 %v914
      %1064 = vmatpush.bf16.msra.mxu0 %v912
      %1065 = vmatmul.bf16.gmra.mxu0 %v921
      %v1066 = vpop.f32.mrf.mxu0
      %v1067 = vadd.f32 0.0, %v1066
      %v1068 = vpop.f32.mrf.mxu0
      %v1069 = vadd.f32 0.0, %v1068
      %1070 = vmatmul.bf16.gmra.mxu0 %v924
      %v1071 = vpop.f32.mrf.mxu0
      %v1072 = vadd.f32 0.0, %v1071
      %v1073 = vpop.f32.mrf.mxu0
      %v1074 = vadd.f32 0.0, %v1073
      %1075 = vmatmul.bf16.gmra.mxu0 %v927
      %v1076 = vpop.f32.mrf.mxu0
      %v1077 = vadd.f32 0.0, %v1076
      %v1078 = vpop.f32.mrf.mxu0
      %v1079 = vadd.f32 0.0, %v1078
      %1080 = vmatmul.bf16.gmra.mxu0 %v930
      %v1081 = vpop.f32.mrf.mxu0
      %v1082 = vadd.f32 0.0, %v1081
      %v1083 = vpop.f32.mrf.mxu0
      %v1084 = vadd.f32 0.0, %v1083
      %1085 = vmatmul.bf16.gmra.mxu0 %v933
      %v1086 = vpop.f32.mrf.mxu0
      %v1087 = vadd.f32 0.0, %v1086
      %v1088 = vpop.f32.mrf.mxu0
      %v1089 = vadd.f32 0.0, %v1088
      %1090 = vmatmul.bf16.gmra.mxu0 %v936
      %v1091 = vpop.f32.mrf.mxu0
      %v1092 = vadd.f32 0.0, %v1091
      %v1093 = vpop.f32.mrf.mxu0
      %v1094 = vadd.f32 0.0, %v1093
      %1095 = vmatmul.bf16.gmra.mxu0 %v939
      %v1096 = vpop.f32.mrf.mxu0
      %v1097 = vadd.f32 0.0, %v1096
      %v1098 = vpop.f32.mrf.mxu0
      %v1099 = vadd.f32 0.0, %v1098
      %1100 = vmatmul.bf16.gmra.mxu0 %v942
      %v1101 = vpop.f32.mrf.mxu0
      %v1102 = vadd.f32 0.0, %v1101
      %v1103 = vpop.f32.mrf.mxu0
      %v1104 = vadd.f32 0.0, %v1103
      %1105 = vmatmul.bf16.gmra.mxu0 %v945
      %v1106 = vpop.f32.mrf.mxu0
      %v1107 = vadd.f32 0.0, %v1106
      %v1108 = vpop.f32.mrf.mxu0
      %v1109 = vadd.f32 0.0, %v1108
      %1110 = vmatmul.bf16.gmra.mxu0 %v948
      %v1111 = vpop.f32.mrf.mxu0
      %v1112 = vadd.f32 0.0, %v1111
      %v1113 = vpop.f32.mrf.mxu0
      %v1114 = vadd.f32 0.0, %v1113
      %1115 = vmatmul.bf16.gmra.mxu0 %v951
      %v1116 = vpop.f32.mrf.mxu0
      %v1117 = vadd.f32 0.0, %v1116
      %v1118 = vpop.f32.mrf.mxu0
      %v1119 = vadd.f32 0.0, %v1118
      %1120 = vmatmul.bf16.gmra.mxu0 %v954
      %v1121 = vpop.f32.mrf.mxu0
      %v1122 = vadd.f32 0.0, %v1121
      %v1123 = vpop.f32.mrf.mxu0
      %v1124 = vadd.f32 0.0, %v1123
      %1125 = vmatmul.bf16.gmra.mxu0 %v957
      %v1126 = vpop.f32.mrf.mxu0
      %v1127 = vadd.f32 0.0, %v1126
      %v1128 = vpop.f32.mrf.mxu0
      %v1129 = vadd.f32 0.0, %v1128
      %1130 = vmatmul.bf16.gmra.mxu0 %v960
      %v1131 = vpop.f32.mrf.mxu0
      %v1132 = vadd.f32 0.0, %v1131
      %v1133 = vpop.f32.mrf.mxu0
      %v1134 = vadd.f32 0.0, %v1133
      %1135 = vmatmul.bf16.gmra.mxu0 %v963
      %v1136 = vpop.f32.mrf.mxu0
      %v1137 = vadd.f32 0.0, %v1136
      %v1138 = vpop.f32.mrf.mxu0
      %v1139 = vadd.f32 0.0, %v1138
      %1140 = vmatmul.bf16.gmra.mxu0 %v966
      %v1141 = vpop.f32.mrf.mxu0
      %v1142 = vadd.f32 0.0, %v1141
      %v1143 = vpop.f32.mrf.mxu0
      %v1144 = vadd.f32 0.0, %v1143
      %1145 = vdwg.mxu0
      %v1146 = vpack.c.bf16 %v1067, %v978
      %v1147 = vpack.c.bf16 %v1069, %v980
      %v1148 = vpack.c.bf16 %v1072, %v983
      %v1149 = vpack.c.bf16 %v1074, %v985
      %v1150 = vpack.c.bf16 %v1077, %v988
      %v1151 = vpack.c.bf16 %v1079, %v990
      %v1152 = vpack.c.bf16 %v1082, %v993
      %v1153 = vpack.c.bf16 %v1084, %v995
      %v1154 = vpack.c.bf16 %v1087, %v998
      %v1155 = vpack.c.bf16 %v1089, %v1000
      %v1156 = vpack.c.bf16 %v1092, %v1003
      %v1157 = vpack.c.bf16 %v1094, %v1005
      %v1158 = vpack.c.bf16 %v1097, %v1008
      %v1159 = vpack.c.bf16 %v1099, %v1010
      %v1160 = vpack.c.bf16 %v1102, %v1013
      %v1161 = vpack.c.bf16 %v1104, %v1015
      %v1162 = vpack.c.bf16 %v1107, %v1018
      %v1163 = vpack.c.bf16 %v1109, %v1020
      %v1164 = vpack.c.bf16 %v1112, %v1023
      %v1165 = vpack.c.bf16 %v1114, %v1025
      %v1166 = vpack.c.bf16 %v1117, %v1028
      %v1167 = vpack.c.bf16 %v1119, %v1030
      %v1168 = vpack.c.bf16 %v1122, %v1033
      %v1169 = vpack.c.bf16 %v1124, %v1035
      %v1170 = vpack.c.bf16 %v1127, %v1038
      %v1171 = vpack.c.bf16 %v1129, %v1040
      %v1172 = vpack.c.bf16 %v1132, %v1043
      %v1173 = vpack.c.bf16 %v1134, %v1045
      %v1174 = vpack.c.bf16 %v1137, %v1048
      %v1175 = vpack.c.bf16 %v1139, %v1050
      %v1176 = vpack.c.bf16 %v1142, %v1053
      %v1177 = vpack.c.bf16 %v1144, %v1055
      %v1178 = vunpack.c.l.bf16 %v1146
      %v1179 = vunpack.c.h.bf16 %v1146
      %v1180 = vunpack.c.l.bf16 %v1147
      %v1181 = vunpack.c.h.bf16 %v1147
      %v1182 = vunpack.c.l.bf16 %v1148
      %v1183 = vunpack.c.h.bf16 %v1148
      %v1184 = vunpack.c.l.bf16 %v1149
      %v1185 = vunpack.c.h.bf16 %v1149
      %v1186 = vunpack.c.l.bf16 %v1150
      %v1187 = vunpack.c.h.bf16 %v1150
      %v1188 = vunpack.c.l.bf16 %v1151
      %v1189 = vunpack.c.h.bf16 %v1151
      %v1190 = vunpack.c.l.bf16 %v1152
      %v1191 = vunpack.c.h.bf16 %v1152
      %v1192 = vunpack.c.l.bf16 %v1153
      %v1193 = vunpack.c.h.bf16 %v1153
      %v1194 = vunpack.c.l.bf16 %v1154
      %v1195 = vunpack.c.h.bf16 %v1154
      %v1196 = vunpack.c.l.bf16 %v1155
      %v1197 = vunpack.c.h.bf16 %v1155
      %v1198 = vunpack.c.l.bf16 %v1156
      %v1199 = vunpack.c.h.bf16 %v1156
      %v1200 = vunpack.c.l.bf16 %v1157
      %v1201 = vunpack.c.h.bf16 %v1157
      %v1202 = vunpack.c.l.bf16 %v1158
      %v1203 = vunpack.c.h.bf16 %v1158
      %v1204 = vunpack.c.l.bf16 %v1159
      %v1205 = vunpack.c.h.bf16 %v1159
      %v1206 = vunpack.c.l.bf16 %v1160
      %v1207 = vunpack.c.h.bf16 %v1160
      %v1208 = vunpack.c.l.bf16 %v1161
      %v1209 = vunpack.c.h.bf16 %v1161
      %v1210 = vunpack.c.l.bf16 %v1162
      %v1211 = vunpack.c.h.bf16 %v1162
      %v1212 = vunpack.c.l.bf16 %v1163
      %v1213 = vunpack.c.h.bf16 %v1163
      %v1214 = vunpack.c.l.bf16 %v1164
      %v1215 = vunpack.c.h.bf16 %v1164
      %v1216 = vunpack.c.l.bf16 %v1165
      %v1217 = vunpack.c.h.bf16 %v1165
      %v1218 = vunpack.c.l.bf16 %v1166
      %v1219 = vunpack.c.h.bf16 %v1166
      %v1220 = vunpack.c.l.bf16 %v1167
      %v1221 = vunpack.c.h.bf16 %v1167
      %v1222 = vunpack.c.l.bf16 %v1168
      %v1223 = vunpack.c.h.bf16 %v1168
      %v1224 = vunpack.c.l.bf16 %v1169
      %v1225 = vunpack.c.h.bf16 %v1169
      %v1226 = vunpack.c.l.bf16 %v1170
      %v1227 = vunpack.c.h.bf16 %v1170
      %v1228 = vunpack.c.l.bf16 %v1171
      %v1229 = vunpack.c.h.bf16 %v1171
      %v1230 = vunpack.c.l.bf16 %v1172
      %v1231 = vunpack.c.h.bf16 %v1172
      %v1232 = vunpack.c.l.bf16 %v1173
      %v1233 = vunpack.c.h.bf16 %v1173
      %v1234 = vunpack.c.l.bf16 %v1174
      %v1235 = vunpack.c.h.bf16 %v1174
      %v1236 = vunpack.c.l.bf16 %v1175
      %v1237 = vunpack.c.h.bf16 %v1175
      %v1238 = vunpack.c.l.bf16 %v1176
      %v1239 = vunpack.c.h.bf16 %v1176
      %v1240 = vunpack.c.l.bf16 %v1177
      %v1241 = vunpack.c.h.bf16 %v1177
      %v1242 = vmax.f32 %v1178, %v1182
      %v1243 = vmax.f32 %v1180, %v1184
      %v1244 = vmax.f32 %v1242, %v1186
      %v1245 = vmax.f32 %v1243, %v1188
      %v1246 = vmax.f32 %v1244, %v1190
      %v1247 = vmax.f32 %v1245, %v1192
      %v1248 = vmax.f32 %v1246, %v1194
      %v1249 = vmax.f32 %v1247, %v1196
      %v1250 = vmax.f32 %v1248, %v1198
      %v1251 = vmax.f32 %v1249, %v1200
      %v1252 = vmax.f32 %v1250, %v1202
      %v1253 = vmax.f32 %v1251, %v1204
      %v1254 = vmax.f32 %v1252, %v1206
      %v1255 = vmax.f32 %v1253, %v1208
      %v1256 = vmax.f32 %v1254, %v1210
      %v1257 = vmax.f32 %v1255, %v1212
      %v1258 = vmax.f32 %v1256, %v1214
      %v1259 = vmax.f32 %v1257, %v1216
      %v1260 = vmax.f32 %v1258, %v1218
      %v1261 = vmax.f32 %v1259, %v1220
      %v1262 = vmax.f32 %v1260, %v1222
      %v1263 = vmax.f32 %v1261, %v1224
      %v1264 = vmax.f32 %v1262, %v1226
      %v1265 = vmax.f32 %v1263, %v1228
      %v1266 = vmax.f32 %v1264, %v1230
      %v1267 = vmax.f32 %v1265, %v1232
      %v1268 = vmax.f32 %v1266, %v1234
      %v1269 = vmax.f32 %v1267, %v1236
      %v1270 = vmax.f32 %v1268, %v1238
      %v1271 = vmax.f32 %v1269, %v1240
      %v1272 = vmax.f32 %v1270, %v1271
      %v1273 = vrot.slane %v1272, 4
      %v1274 = vmax.f32 %v1272, %v1273
      %v1275 = vrot.slane %v1274, 2
      %v1276 = vmax.f32 %v1274, %v1275
      %v1277 = vrot.slane %v1276, 1
      %v1278 = vmax.f32 %v1276, %v1277
      %v1279 = vmax.f32 %v1179, %v1183
      %v1280 = vmax.f32 %v1181, %v1185
      %v1281 = vmax.f32 %v1279, %v1187
      %v1282 = vmax.f32 %v1280, %v1189
      %v1283 = vmax.f32 %v1281, %v1191
      %v1284 = vmax.f32 %v1282, %v1193
      %v1285 = vmax.f32 %v1283, %v1195
      %v1286 = vmax.f32 %v1284, %v1197
      %v1287 = vmax.f32 %v1285, %v1199
      %v1288 = vmax.f32 %v1286, %v1201
      %v1289 = vmax.f32 %v1287, %v1203
      %v1290 = vmax.f32 %v1288, %v1205
      %v1291 = vmax.f32 %v1289, %v1207
      %v1292 = vmax.f32 %v1290, %v1209
      %v1293 = vmax.f32 %v1291, %v1211
      %v1294 = vmax.f32 %v1292, %v1213
      %v1295 = vmax.f32 %v1293, %v1215
      %v1296 = vmax.f32 %v1294, %v1217
      %v1297 = vmax.f32 %v1295, %v1219
      %v1298 = vmax.f32 %v1296, %v1221
      %v1299 = vmax.f32 %v1297, %v1223
      %v1300 = vmax.f32 %v1298, %v1225
      %v1301 = vmax.f32 %v1299, %v1227
      %v1302 = vmax.f32 %v1300, %v1229
      %v1303 = vmax.f32 %v1301, %v1231
      %v1304 = vmax.f32 %v1302, %v1233
      %v1305 = vmax.f32 %v1303, %v1235
      %v1306 = vmax.f32 %v1304, %v1237
      %v1307 = vmax.f32 %v1305, %v1239
      %v1308 = vmax.f32 %v1306, %v1241
      %v1309 = vmax.f32 %v1307, %v1308
      %v1310 = vrot.slane %v1309, 4
      %v1311 = vmax.f32 %v1309, %v1310
      %v1312 = vrot.slane %v1311, 2
      %v1313 = vmax.f32 %v1311, %v1312
      %v1314 = vrot.slane %v1313, 1
      %v1315 = vmax.f32 %v1313, %v1314
      %v1316 = vpack.c.bf16 %v1315, %v1278
      %v1317 = vunpack.c.l.bf16 %v1316
      %v1318 = vunpack.c.h.bf16 %v1316
      %v1319 = vsub.f32 %v1178, %v1317
      %v1320 = vsub.f32 %v1179, %v1318
      %v1321 = vsub.f32 %v1180, %v1317
      %v1322 = vsub.f32 %v1181, %v1318
      %v1323 = vsub.f32 %v1182, %v1317
      %v1324 = vsub.f32 %v1183, %v1318
      %v1325 = vsub.f32 %v1184, %v1317
      %v1326 = vsub.f32 %v1185, %v1318
      %v1327 = vsub.f32 %v1186, %v1317
      %v1328 = vsub.f32 %v1187, %v1318
      %v1329 = vsub.f32 %v1188, %v1317
      %v1330 = vsub.f32 %v1189, %v1318
      %v1331 = vsub.f32 %v1190, %v1317
      %v1332 = vsub.f32 %v1191, %v1318
      %v1333 = vsub.f32 %v1192, %v1317
      %v1334 = vsub.f32 %v1193, %v1318
      %v1335 = vsub.f32 %v1194, %v1317
      %v1336 = vsub.f32 %v1195, %v1318
      %v1337 = vsub.f32 %v1196, %v1317
      %v1338 = vsub.f32 %v1197, %v1318
      %v1339 = vsub.f32 %v1198, %v1317
      %v1340 = vsub.f32 %v1199, %v1318
      %v1341 = vsub.f32 %v1200, %v1317
      %v1342 = vsub.f32 %v1201, %v1318
      %v1343 = vsub.f32 %v1202, %v1317
      %v1344 = vsub.f32 %v1203, %v1318
      %v1345 = vsub.f32 %v1204, %v1317
      %v1346 = vsub.f32 %v1205, %v1318
      %v1347 = vsub.f32 %v1206, %v1317
      %v1348 = vsub.f32 %v1207, %v1318
      %v1349 = vsub.f32 %v1208, %v1317
      %v1350 = vsub.f32 %v1209, %v1318
      %v1351 = vsub.f32 %v1210, %v1317
      %v1352 = vsub.f32 %v1211, %v1318
      %v1353 = vsub.f32 %v1212, %v1317
      %v1354 = vsub.f32 %v1213, %v1318
      %v1355 = vsub.f32 %v1214, %v1317
      %v1356 = vsub.f32 %v1215, %v1318
      %v1357 = vsub.f32 %v1216, %v1317
      %v1358 = vsub.f32 %v1217, %v1318
      %v1359 = vsub.f32 %v1218, %v1317
      %v1360 = vsub.f32 %v1219, %v1318
      %v1361 = vsub.f32 %v1220, %v1317
      %v1362 = vsub.f32 %v1221, %v1318
      %v1363 = vsub.f32 %v1222, %v1317
      %v1364 = vsub.f32 %v1223, %v1318
      %v1365 = vsub.f32 %v1224, %v1317
      %v1366 = vsub.f32 %v1225, %v1318
      %v1367 = vsub.f32 %v1226, %v1317
      %v1368 = vsub.f32 %v1227, %v1318
      %v1369 = vsub.f32 %v1228, %v1317
      %v1370 = vsub.f32 %v1229, %v1318
      %v1371 = vsub.f32 %v1230, %v1317
      %v1372 = vsub.f32 %v1231, %v1318
      %v1373 = vsub.f32 %v1232, %v1317
      %v1374 = vsub.f32 %v1233, %v1318
      %v1375 = vsub.f32 %v1234, %v1317
      %v1376 = vsub.f32 %v1235, %v1318
      %v1377 = vsub.f32 %v1236, %v1317
      %v1378 = vsub.f32 %v1237, %v1318
      %v1379 = vsub.f32 %v1238, %v1317
      %v1380 = vsub.f32 %v1239, %v1318
      %v1381 = vsub.f32 %v1240, %v1317
      %v1382 = vsub.f32 %v1241, %v1318
      %v1383 = vpack.c.bf16 %v1321, %v1319
      %v1384 = vpack.c.bf16 %v1322, %v1320
      %v1385 = vpack.c.bf16 %v1325, %v1323
      %v1386 = vpack.c.bf16 %v1326, %v1324
      %v1387 = vpack.c.bf16 %v1329, %v1327
      %v1388 = vpack.c.bf16 %v1330, %v1328
      %v1389 = vpack.c.bf16 %v1333, %v1331
      %v1390 = vpack.c.bf16 %v1334, %v1332
      %v1391 = vpack.c.bf16 %v1337, %v1335
      %v1392 = vpack.c.bf16 %v1338, %v1336
      %v1393 = vpack.c.bf16 %v1341, %v1339
      %v1394 = vpack.c.bf16 %v1342, %v1340
      %v1395 = vpack.c.bf16 %v1345, %v1343
      %v1396 = vpack.c.bf16 %v1346, %v1344
      %v1397 = vpack.c.bf16 %v1349, %v1347
      %v1398 = vpack.c.bf16 %v1350, %v1348
      %v1399 = vpack.c.bf16 %v1353, %v1351
      %v1400 = vpack.c.bf16 %v1354, %v1352
      %v1401 = vpack.c.bf16 %v1357, %v1355
      %v1402 = vpack.c.bf16 %v1358, %v1356
      %v1403 = vpack.c.bf16 %v1361, %v1359
      %v1404 = vpack.c.bf16 %v1362, %v1360
      %v1405 = vpack.c.bf16 %v1365, %v1363
      %v1406 = vpack.c.bf16 %v1366, %v1364
      %v1407 = vpack.c.bf16 %v1369, %v1367
      %v1408 = vpack.c.bf16 %v1370, %v1368
      %v1409 = vpack.c.bf16 %v1373, %v1371
      %v1410 = vpack.c.bf16 %v1374, %v1372
      %v1411 = vpack.c.bf16 %v1377, %v1375
      %v1412 = vpack.c.bf16 %v1378, %v1376
      %v1413 = vpack.c.bf16 %v1381, %v1379
      %v1414 = vpack.c.bf16 %v1382, %v1380
      %v1415 = vunpack.c.l.bf16 %v1383
      %v1416 = vunpack.c.l.bf16 %v1384
      %v1417 = vunpack.c.h.bf16 %v1383
      %v1418 = vunpack.c.h.bf16 %v1384
      %v1419 = vunpack.c.l.bf16 %v1385
      %v1420 = vunpack.c.l.bf16 %v1386
      %v1421 = vunpack.c.h.bf16 %v1385
      %v1422 = vunpack.c.h.bf16 %v1386
      %v1423 = vunpack.c.l.bf16 %v1387
      %v1424 = vunpack.c.l.bf16 %v1388
      %v1425 = vunpack.c.h.bf16 %v1387
      %v1426 = vunpack.c.h.bf16 %v1388
      %v1427 = vunpack.c.l.bf16 %v1389
      %v1428 = vunpack.c.l.bf16 %v1390
      %v1429 = vunpack.c.h.bf16 %v1389
      %v1430 = vunpack.c.h.bf16 %v1390
      %v1431 = vunpack.c.l.bf16 %v1391
      %v1432 = vunpack.c.l.bf16 %v1392
      %v1433 = vunpack.c.h.bf16 %v1391
      %v1434 = vunpack.c.h.bf16 %v1392
      %v1435 = vunpack.c.l.bf16 %v1393
      %v1436 = vunpack.c.l.bf16 %v1394
      %v1437 = vunpack.c.h.bf16 %v1393
      %v1438 = vunpack.c.h.bf16 %v1394
      %v1439 = vunpack.c.l.bf16 %v1395
      %v1440 = vunpack.c.l.bf16 %v1396
      %v1441 = vunpack.c.h.bf16 %v1395
      %v1442 = vunpack.c.h.bf16 %v1396
      %v1443 = vunpack.c.l.bf16 %v1397
      %v1444 = vunpack.c.l.bf16 %v1398
      %v1445 = vunpack.c.h.bf16 %v1397
      %v1446 = vunpack.c.h.bf16 %v1398
      %v1447 = vunpack.c.l.bf16 %v1399
      %v1448 = vunpack.c.l.bf16 %v1400
      %v1449 = vunpack.c.h.bf16 %v1399
      %v1450 = vunpack.c.h.bf16 %v1400
      %v1451 = vunpack.c.l.bf16 %v1401
      %v1452 = vunpack.c.l.bf16 %v1402
      %v1453 = vunpack.c.h.bf16 %v1401
      %v1454 = vunpack.c.h.bf16 %v1402
      %v1455 = vunpack.c.l.bf16 %v1403
      %v1456 = vunpack.c.l.bf16 %v1404
      %v1457 = vunpack.c.h.bf16 %v1403
      %v1458 = vunpack.c.h.bf16 %v1404
      %v1459 = vunpack.c.l.bf16 %v1405
      %v1460 = vunpack.c.l.bf16 %v1406
      %v1461 = vunpack.c.h.bf16 %v1405
      %v1462 = vunpack.c.h.bf16 %v1406
      %v1463 = vunpack.c.l.bf16 %v1407
      %v1464 = vunpack.c.l.bf16 %v1408
      %v1465 = vunpack.c.h.bf16 %v1407
      %v1466 = vunpack.c.h.bf16 %v1408
      %v1467 = vunpack.c.l.bf16 %v1409
      %v1468 = vunpack.c.l.bf16 %v1410
      %v1469 = vunpack.c.h.bf16 %v1409
      %v1470 = vunpack.c.h.bf16 %v1410
      %v1471 = vunpack.c.l.bf16 %v1411
      %v1472 = vunpack.c.l.bf16 %v1412
      %v1473 = vunpack.c.h.bf16 %v1411
      %v1474 = vunpack.c.h.bf16 %v1412
      %v1475 = vunpack.c.l.bf16 %v1413
      %v1476 = vunpack.c.l.bf16 %v1414
      %v1477 = vunpack.c.h.bf16 %v1413
      %v1478 = vunpack.c.h.bf16 %v1414
      %v1479 = vmul.f32 %v1415, 1.442695
      %v1480 = vpow.pop %v1479
      %v1481 = vmul.f32 %v1416, 1.442695
      %v1482 = vpow.pop %v1481
      %v1483 = vmul.f32 %v1417, 1.442695
      %v1484 = vpow.pop %v1483
      %v1485 = vmul.f32 %v1418, 1.442695
      %v1486 = vpow.pop %v1485
      %v1487 = vmul.f32 %v1419, 1.442695
      %v1488 = vpow.pop %v1487
      %v1489 = vmul.f32 %v1420, 1.442695
      %v1490 = vpow.pop %v1489
      %v1491 = vmul.f32 %v1421, 1.442695
      %v1492 = vpow.pop %v1491
      %v1493 = vmul.f32 %v1422, 1.442695
      %v1494 = vpow.pop %v1493
      %v1495 = vmul.f32 %v1423, 1.442695
      %v1496 = vpow.pop %v1495
      %v1497 = vmul.f32 %v1424, 1.442695
      %v1498 = vpow.pop %v1497
      %v1499 = vmul.f32 %v1425, 1.442695
      %v1500 = vpow.pop %v1499
      %v1501 = vmul.f32 %v1426, 1.442695
      %v1502 = vpow.pop %v1501
      %v1503 = vmul.f32 %v1427, 1.442695
      %v1504 = vpow.pop %v1503
      %v1505 = vmul.f32 %v1428, 1.442695
      %v1506 = vpow.pop %v1505
      %v1507 = vmul.f32 %v1429, 1.442695
      %v1508 = vpow.pop %v1507
      %v1509 = vmul.f32 %v1430, 1.442695
      %v1510 = vpow.pop %v1509
      %v1511 = vmul.f32 %v1431, 1.442695
      %v1512 = vpow.pop %v1511
      %v1513 = vmul.f32 %v1432, 1.442695
      %v1514 = vpow.pop %v1513
      %v1515 = vmul.f32 %v1433, 1.442695
      %v1516 = vpow.pop %v1515
      %v1517 = vmul.f32 %v1434, 1.442695
      %v1518 = vpow.pop %v1517
      %v1519 = vmul.f32 %v1435, 1.442695
      %v1520 = vpow.pop %v1519
      %v1521 = vmul.f32 %v1436, 1.442695
      %v1522 = vpow.pop %v1521
      %v1523 = vmul.f32 %v1437, 1.442695
      %v1524 = vpow.pop %v1523
      %v1525 = vmul.f32 %v1438, 1.442695
      %v1526 = vpow.pop %v1525
      %v1527 = vmul.f32 %v1439, 1.442695
      %v1528 = vpow.pop %v1527
      %v1529 = vmul.f32 %v1440, 1.442695
      %v1530 = vpow.pop %v1529
      %v1531 = vmul.f32 %v1441, 1.442695
      %v1532 = vpow.pop %v1531
      %v1533 = vmul.f32 %v1442, 1.442695
      %v1534 = vpow.pop %v1533
      %v1535 = vmul.f32 %v1443, 1.442695
      %v1536 = vpow.pop %v1535
      %v1537 = vmul.f32 %v1444, 1.442695
      %v1538 = vpow.pop %v1537
      %v1539 = vmul.f32 %v1445, 1.442695
      %v1540 = vpow.pop %v1539
      %v1541 = vmul.f32 %v1446, 1.442695
      %v1542 = vpow.pop %v1541
      %v1543 = vmul.f32 %v1447, 1.442695
      %v1544 = vpow.pop %v1543
      %v1545 = vmul.f32 %v1448, 1.442695
      %v1546 = vpow.pop %v1545
      %v1547 = vmul.f32 %v1449, 1.442695
      %v1548 = vpow.pop %v1547
      %v1549 = vmul.f32 %v1450, 1.442695
      %v1550 = vpow.pop %v1549
      %v1551 = vmul.f32 %v1451, 1.442695
      %v1552 = vpow.pop %v1551
      %v1553 = vmul.f32 %v1452, 1.442695
      %v1554 = vpow.pop %v1553
      %v1555 = vmul.f32 %v1453, 1.442695
      %v1556 = vpow.pop %v1555
      %v1557 = vmul.f32 %v1454, 1.442695
      %v1558 = vpow.pop %v1557
      %v1559 = vmul.f32 %v1455, 1.442695
      %v1560 = vpow.pop %v1559
      %v1561 = vmul.f32 %v1456, 1.442695
      %v1562 = vpow.pop %v1561
      %v1563 = vmul.f32 %v1457, 1.442695
      %v1564 = vpow.pop %v1563
      %v1565 = vmul.f32 %v1458, 1.442695
      %v1566 = vpow.pop %v1565
      %v1567 = vmul.f32 %v1459, 1.442695
      %v1568 = vpow.pop %v1567
      %v1569 = vmul.f32 %v1460, 1.442695
      %v1570 = vpow.pop %v1569
      %v1571 = vmul.f32 %v1461, 1.442695
      %v1572 = vpow.pop %v1571
      %v1573 = vmul.f32 %v1462, 1.442695
      %v1574 = vpow.pop %v1573
      %v1575 = vmul.f32 %v1463, 1.442695
      %v1576 = vpow.pop %v1575
      %v1577 = vmul.f32 %v1464, 1.442695
      %v1578 = vpow.pop %v1577
      %v1579 = vmul.f32 %v1465, 1.442695
      %v1580 = vpow.pop %v1579
      %v1581 = vmul.f32 %v1466, 1.442695
      %v1582 = vpow.pop %v1581
      %v1583 = vmul.f32 %v1467, 1.442695
      %v1584 = vpow.pop %v1583
      %v1585 = vmul.f32 %v1468, 1.442695
      %v1586 = vpow.pop %v1585
      %v1587 = vmul.f32 %v1469, 1.442695
      %v1588 = vpow.pop %v1587
      %v1589 = vmul.f32 %v1470, 1.442695
      %v1590 = vpow.pop %v1589
      %v1591 = vmul.f32 %v1471, 1.442695
      %v1592 = vpow.pop %v1591
      %v1593 = vmul.f32 %v1472, 1.442695
      %v1594 = vpow.pop %v1593
      %v1595 = vmul.f32 %v1473, 1.442695
      %v1596 = vpow.pop %v1595
      %v1597 = vmul.f32 %v1474, 1.442695
      %v1598 = vpow.pop %v1597
      %v1599 = vmul.f32 %v1475, 1.442695
      %v1600 = vpow.pop %v1599
      %v1601 = vmul.f32 %v1476, 1.442695
      %v1602 = vpow.pop %v1601
      %v1603 = vmul.f32 %v1477, 1.442695
      %v1604 = vpow.pop %v1603
      %v1605 = vmul.f32 %v1478, 1.442695
      %v1606 = vpow.pop %v1605
      %v1607 = vpack.c.bf16 %v1484, %v1480
      %v1608 = vpack.c.bf16 %v1486, %v1482
      %v1609 = vpack.c.bf16 %v1492, %v1488
      %v1610 = vpack.c.bf16 %v1494, %v1490
      %v1611 = vpack.c.bf16 %v1500, %v1496
      %v1612 = vpack.c.bf16 %v1502, %v1498
      %v1613 = vpack.c.bf16 %v1508, %v1504
      %v1614 = vpack.c.bf16 %v1510, %v1506
      %v1615 = vpack.c.bf16 %v1516, %v1512
      %v1616 = vpack.c.bf16 %v1518, %v1514
      %v1617 = vpack.c.bf16 %v1524, %v1520
      %v1618 = vpack.c.bf16 %v1526, %v1522
      %v1619 = vpack.c.bf16 %v1532, %v1528
      %v1620 = vpack.c.bf16 %v1534, %v1530
      %v1621 = vpack.c.bf16 %v1540, %v1536
      %v1622 = vpack.c.bf16 %v1542, %v1538
      %v1623 = vpack.c.bf16 %v1548, %v1544
      %v1624 = vpack.c.bf16 %v1550, %v1546
      %v1625 = vpack.c.bf16 %v1556, %v1552
      %v1626 = vpack.c.bf16 %v1558, %v1554
      %v1627 = vpack.c.bf16 %v1564, %v1560
      %v1628 = vpack.c.bf16 %v1566, %v1562
      %v1629 = vpack.c.bf16 %v1572, %v1568
      %v1630 = vpack.c.bf16 %v1574, %v1570
      %v1631 = vpack.c.bf16 %v1580, %v1576
      %v1632 = vpack.c.bf16 %v1582, %v1578
      %v1633 = vpack.c.bf16 %v1588, %v1584
      %v1634 = vpack.c.bf16 %v1590, %v1586
      %v1635 = vpack.c.bf16 %v1596, %v1592
      %v1636 = vpack.c.bf16 %v1598, %v1594
      %v1637 = vpack.c.bf16 %v1604, %v1600
      %v1638 = vpack.c.bf16 %v1606, %v1602
      %v1639 = vunpack.c.l.bf16 %v1607
      %v1640 = vunpack.c.l.bf16 %v1608
      %v1641 = vunpack.c.h.bf16 %v1607
      %v1642 = vunpack.c.h.bf16 %v1608
      %v1643 = vunpack.c.l.bf16 %v1609
      %v1644 = vunpack.c.l.bf16 %v1610
      %v1645 = vunpack.c.h.bf16 %v1609
      %v1646 = vunpack.c.h.bf16 %v1610
      %v1647 = vunpack.c.l.bf16 %v1611
      %v1648 = vunpack.c.l.bf16 %v1612
      %v1649 = vunpack.c.h.bf16 %v1611
      %v1650 = vunpack.c.h.bf16 %v1612
      %v1651 = vunpack.c.l.bf16 %v1613
      %v1652 = vunpack.c.l.bf16 %v1614
      %v1653 = vunpack.c.h.bf16 %v1613
      %v1654 = vunpack.c.h.bf16 %v1614
      %v1655 = vunpack.c.l.bf16 %v1615
      %v1656 = vunpack.c.l.bf16 %v1616
      %v1657 = vunpack.c.h.bf16 %v1615
      %v1658 = vunpack.c.h.bf16 %v1616
      %v1659 = vunpack.c.l.bf16 %v1617
      %v1660 = vunpack.c.l.bf16 %v1618
      %v1661 = vunpack.c.h.bf16 %v1617
      %v1662 = vunpack.c.h.bf16 %v1618
      %v1663 = vunpack.c.l.bf16 %v1619
      %v1664 = vunpack.c.l.bf16 %v1620
      %v1665 = vunpack.c.h.bf16 %v1619
      %v1666 = vunpack.c.h.bf16 %v1620
      %v1667 = vunpack.c.l.bf16 %v1621
      %v1668 = vunpack.c.l.bf16 %v1622
      %v1669 = vunpack.c.h.bf16 %v1621
      %v1670 = vunpack.c.h.bf16 %v1622
      %v1671 = vunpack.c.l.bf16 %v1623
      %v1672 = vunpack.c.l.bf16 %v1624
      %v1673 = vunpack.c.h.bf16 %v1623
      %v1674 = vunpack.c.h.bf16 %v1624
      %v1675 = vunpack.c.l.bf16 %v1625
      %v1676 = vunpack.c.l.bf16 %v1626
      %v1677 = vunpack.c.h.bf16 %v1625
      %v1678 = vunpack.c.h.bf16 %v1626
      %v1679 = vunpack.c.l.bf16 %v1627
      %v1680 = vunpack.c.l.bf16 %v1628
      %v1681 = vunpack.c.h.bf16 %v1627
      %v1682 = vunpack.c.h.bf16 %v1628
      %v1683 = vunpack.c.l.bf16 %v1629
      %v1684 = vunpack.c.l.bf16 %v1630
      %v1685 = vunpack.c.h.bf16 %v1629
      %v1686 = vunpack.c.h.bf16 %v1630
      %v1687 = vunpack.c.l.bf16 %v1631
      %v1688 = vunpack.c.l.bf16 %v1632
      %v1689 = vunpack.c.h.bf16 %v1631
      %v1690 = vunpack.c.h.bf16 %v1632
      %v1691 = vunpack.c.l.bf16 %v1633
      %v1692 = vunpack.c.l.bf16 %v1634
      %v1693 = vunpack.c.h.bf16 %v1633
      %v1694 = vunpack.c.h.bf16 %v1634
      %v1695 = vunpack.c.l.bf16 %v1635
      %v1696 = vunpack.c.l.bf16 %v1636
      %v1697 = vunpack.c.h.bf16 %v1635
      %v1698 = vunpack.c.h.bf16 %v1636
      %v1699 = vunpack.c.l.bf16 %v1637
      %v1700 = vunpack.c.l.bf16 %v1638
      %v1701 = vunpack.c.h.bf16 %v1637
      %v1702 = vunpack.c.h.bf16 %v1638
      %v1703 = vadd.f32 %v1639, %v1641
      %v1704 = vadd.f32 %v1703, %v1643
      %v1705 = vadd.f32 %v1704, %v1645
      %v1706 = vadd.f32 %v1705, %v1647
      %v1707 = vadd.f32 %v1706, %v1649
      %v1708 = vadd.f32 %v1707, %v1651
      %v1709 = vadd.f32 %v1708, %v1653
      %v1710 = vadd.f32 %v1709, %v1655
      %v1711 = vadd.f32 %v1710, %v1657
      %v1712 = vadd.f32 %v1711, %v1659
      %v1713 = vadd.f32 %v1712, %v1661
      %v1714 = vadd.f32 %v1713, %v1663
      %v1715 = vadd.f32 %v1714, %v1665
      %v1716 = vadd.f32 %v1715, %v1667
      %v1717 = vadd.f32 %v1716, %v1669
      %v1718 = vadd.f32 %v1717, %v1671
      %v1719 = vadd.f32 %v1718, %v1673
      %v1720 = vadd.f32 %v1719, %v1675
      %v1721 = vadd.f32 %v1720, %v1677
      %v1722 = vadd.f32 %v1721, %v1679
      %v1723 = vadd.f32 %v1722, %v1681
      %v1724 = vadd.f32 %v1723, %v1683
      %v1725 = vadd.f32 %v1724, %v1685
      %v1726 = vadd.f32 %v1725, %v1687
      %v1727 = vadd.f32 %v1726, %v1689
      %v1728 = vadd.f32 %v1727, %v1691
      %v1729 = vadd.f32 %v1728, %v1693
      %v1730 = vadd.f32 %v1729, %v1695
      %v1731 = vadd.f32 %v1730, %v1697
      %v1732 = vadd.f32 %v1731, %v1699
      %v1733 = vadd.f32 %v1732, %v1701
      %v1734 = vrot.slane %v1733, 4
      %v1735 = vadd.f32 %v1733, %v1734
      %v1736 = vrot.slane %v1735, 2
      %v1737 = vadd.f32 %v1735, %v1736
      %v1738 = vrot.slane %v1737, 1
      %v1739 = vadd.f32 %v1737, %v1738
      %v1740 = vadd.f32 %v1640, %v1642
      %v1741 = vadd.f32 %v1740, %v1644
      %v1742 = vadd.f32 %v1741, %v1646
      %v1743 = vadd.f32 %v1742, %v1648
      %v1744 = vadd.f32 %v1743, %v1650
      %v1745 = vadd.f32 %v1744, %v1652
      %v1746 = vadd.f32 %v1745, %v1654
      %v1747 = vadd.f32 %v1746, %v1656
      %v1748 = vadd.f32 %v1747, %v1658
      %v1749 = vadd.f32 %v1748, %v1660
      %v1750 = vadd.f32 %v1749, %v1662
      %v1751 = vadd.f32 %v1750, %v1664
      %v1752 = vadd.f32 %v1751, %v1666
      %v1753 = vadd.f32 %v1752, %v1668
      %v1754 = vadd.f32 %v1753, %v1670
      %v1755 = vadd.f32 %v1754, %v1672
      %v1756 = vadd.f32 %v1755, %v1674
      %v1757 = vadd.f32 %v1756, %v1676
      %v1758 = vadd.f32 %v1757, %v1678
      %v1759 = vadd.f32 %v1758, %v1680
      %v1760 = vadd.f32 %v1759, %v1682
      %v1761 = vadd.f32 %v1760, %v1684
      %v1762 = vadd.f32 %v1761, %v1686
      %v1763 = vadd.f32 %v1762, %v1688
      %v1764 = vadd.f32 %v1763, %v1690
      %v1765 = vadd.f32 %v1764, %v1692
      %v1766 = vadd.f32 %v1765, %v1694
      %v1767 = vadd.f32 %v1766, %v1696
      %v1768 = vadd.f32 %v1767, %v1698
      %v1769 = vadd.f32 %v1768, %v1700
      %v1770 = vadd.f32 %v1769, %v1702
      %v1771 = vrot.slane %v1770, 4
      %v1772 = vadd.f32 %v1770, %v1771
      %v1773 = vrot.slane %v1772, 2
      %v1774 = vadd.f32 %v1772, %v1773
      %v1775 = vrot.slane %v1774, 1
      %v1776 = vadd.f32 %v1774, %v1775
      %v1777 = vrcp.pop %v1739
      %v1778 = vrcp.pop %v1776
      %v1783 = vunpack.c.l.b16 %v851
      %v1784 = vunpack.c.h.b16 %v851
      %v1785 = vunpack.c.l.b16 %v852
      %v1786 = vunpack.c.h.b16 %v852
      %v1787 = vunpack.c.l.b16 %v853
      %v1788 = vunpack.c.h.b16 %v853
      %v1789 = vunpack.c.l.b16 %v854
      %v1790 = vunpack.c.h.b16 %v854
      %v1791 = vpack.c.b16 %v1785, %v1783
      %v1792 = vpack.c.b16 %v1786, %v1784
      %v1793 = vpack.c.b16 %v1789, %v1787
      %v1794 = vpack.c.b16 %v1790, %v1788
      %1799 = vmatpush.bf16.msra.mxu0 %v1621
      %1800 = vmatpush.bf16.msra.mxu0 %v1619
      %1801 = vmatpush.bf16.msra.mxu0 %v1617
      %1802 = vmatpush.bf16.msra.mxu0 %v1615
      %1803 = vmatpush.bf16.msra.mxu0 %v1613
      %1804 = vmatpush.bf16.msra.mxu0 %v1611
      %1805 = vmatpush.bf16.msra.mxu0 %v1609
      %1806 = vmatpush.bf16.msra.mxu0 %v1607
      %1807 = vmatmul.bf16.gmra.mxu0 %v1791
      %v1808 = vpop.f32.mrf.mxu0
      %v1809 = vadd.f32 0.0, %v1808
      %v1810 = vpop.f32.mrf.mxu0
      %v1811 = vadd.f32 0.0, %v1810
      %1812 = vmatmul.bf16.gmra.mxu0 %v1793
      %v1813 = vpop.f32.mrf.mxu0
      %v1814 = vadd.f32 0.0, %v1813
      %v1815 = vpop.f32.mrf.mxu0
      %v1816 = vadd.f32 0.0, %v1815
      %1817 = vdwg.mxu0
      %1818 = vmatpush.bf16.msra.mxu0 %v1637
      %1819 = vmatpush.bf16.msra.mxu0 %v1635
      %1820 = vmatpush.bf16.msra.mxu0 %v1633
      %1821 = vmatpush.bf16.msra.mxu0 %v1631
      %1822 = vmatpush.bf16.msra.mxu0 %v1629
      %1823 = vmatpush.bf16.msra.mxu0 %v1627
      %1824 = vmatpush.bf16.msra.mxu0 %v1625
      %1825 = vmatpush.bf16.msra.mxu0 %v1623
      %1826 = vmatmul.bf16.gmra.mxu0 %v1792
      %v1827 = vpop.f32.mrf.mxu0
      %v1828 = vadd.f32 %v1809, %v1827
      %v1829 = vpop.f32.mrf.mxu0
      %v1830 = vadd.f32 %v1811, %v1829
      %1831 = vmatmul.bf16.gmra.mxu0 %v1794
      %v1832 = vpop.f32.mrf.mxu0
      %v1833 = vadd.f32 %v1814, %v1832
      %v1834 = vpop.f32.mrf.mxu0
      %v1835 = vadd.f32 %v1816, %v1834
      %1836 = vdwg.mxu0
      %1837 = vmatpush.bf16.msra.mxu0 %v1622
      %1838 = vmatpush.bf16.msra.mxu0 %v1620
      %1839 = vmatpush.bf16.msra.mxu0 %v1618
      %1840 = vmatpush.bf16.msra.mxu0 %v1616
      %1841 = vmatpush.bf16.msra.mxu0 %v1614
      %1842 = vmatpush.bf16.msra.mxu0 %v1612
      %1843 = vmatpush.bf16.msra.mxu0 %v1610
      %1844 = vmatpush.bf16.msra.mxu0 %v1608
      %1845 = vmatmul.bf16.gmra.mxu0 %v1791
      %v1846 = vpop.f32.mrf.mxu0
      %v1847 = vadd.f32 0.0, %v1846
      %v1848 = vpop.f32.mrf.mxu0
      %v1849 = vadd.f32 0.0, %v1848
      %1850 = vmatmul.bf16.gmra.mxu0 %v1793
      %v1851 = vpop.f32.mrf.mxu0
      %v1852 = vadd.f32 0.0, %v1851
      %v1853 = vpop.f32.mrf.mxu0
      %v1854 = vadd.f32 0.0, %v1853
      %1855 = vdwg.mxu0
      %1856 = vmatpush.bf16.msra.mxu0 %v1638
      %1857 = vmatpush.bf16.msra.mxu0 %v1636
      %1858 = vmatpush.bf16.msra.mxu0 %v1634
      %1859 = vmatpush.bf16.msra.mxu0 %v1632
      %1860 = vmatpush.bf16.msra.mxu0 %v1630
      %1861 = vmatpush.bf16.msra.mxu0 %v1628
      %1862 = vmatpush.bf16.msra.mxu0 %v1626
      %1863 = vmatpush.bf16.msra.mxu0 %v1624
      %1864 = vmatmul.bf16.gmra.mxu0 %v1792
      %v1865 = vpop.f32.mrf.mxu0
      %v1866 = vadd.f32 %v1847, %v1865
      %v1867 = vpop.f32.mrf.mxu0
      %v1868 = vadd.f32 %v1849, %v1867
      %1869 = vmatmul.bf16.gmra.mxu0 %v1794
      %v1870 = vpop.f32.mrf.mxu0
      %v1871 = vadd.f32 %v1852, %v1870
      %v1872 = vpop.f32.mrf.mxu0
      %v1873 = vadd.f32 %v1854, %v1872
      %1874 = vdwg.mxu0
      %v1875 = vmul.f32 %v1828, %v1777
      %v1876 = vmul.f32 %v1866, %v1778
      %v1877 = vmul.f32 %v1830, %v1777
      %v1878 = vmul.f32 %v1868, %v1778
      %v1879 = vmul.f32 %v1833, %v1777
      %v1880 = vmul.f32 %v1871, %v1778
      %v1881 = vmul.f32 %v1835, %v1777
      %v1882 = vmul.f32 %v1873, %v1778
      %v1883 = vpack.c.bf16 %v1877, %v1875
      %v1884 = vpack.c.bf16 %v1878, %v1876
      %v1885 = vpack.c.bf16 %v1881, %v1879
      %v1886 = vpack.c.bf16 %v1882, %v1880
      %v1887 = vld [vmem:[%s2] sm:$0xf]
      %v1888 = vld [vmem:[#allocation2 + $0x20] sm:$0xff]
      %v1889 = vld [vmem:[#allocation2 + $0x28] sm:$0xff]
      %v1890 = vld [vmem:[#allocation2 + $0x30] sm:$0xff]
      %v1891 = vld [vmem:[#allocation2 + $0x38] sm:$0xff]
      %v1892 = vld [vmem:[#allocation2 + $0xa0] sm:$0xff]
      %v1893 = vld [vmem:[#allocation2 + $0xa8] sm:$0xff]
      %v1894 = vld [vmem:[#allocation2 + $0xb0] sm:$0xff]
      %v1895 = vld [vmem:[#allocation2 + $0xb8] sm:$0xff]
      %v1896 = vld [vmem:[#allocation2 + $0x120] sm:$0xff]
      %v1897 = vld [vmem:[#allocation2 + $0x128] sm:$0xff]
      %v1898 = vld [vmem:[#allocation2 + $0x130] sm:$0xff]
      %v1899 = vld [vmem:[#allocation2 + $0x138] sm:$0xff]
      %v1904 = vunpack.c.l.b16 %v1892
      %v1905 = vunpack.c.h.b16 %v1892
      %v1906 = vunpack.c.l.b16 %v1893
      %v1907 = vunpack.c.h.b16 %v1893
      %v1908 = vunpack.c.l.b16 %v1894
      %v1909 = vunpack.c.h.b16 %v1894
      %v1910 = vunpack.c.l.b16 %v1895
      %v1911 = vunpack.c.h.b16 %v1895
      %v1912 = vpack.c.b16 %v1906, %v1904
      %v1913 = vpack.c.b16 %v1907, %v1905
      %v1914 = vpack.c.b16 %v1910, %v1908
      %v1915 = vpack.c.b16 %v1911, %v1909
      %1920 = vxpose.binary.xlu0.c.b16.start [1/16] %v1913, %v1912, 128
      %1921 = vxpose.binary.xlu0.c.b16.cont [2/16] %v1915, %v1914, 128
      %1922 = vxpose.binary.xlu0.c.b16.cont [3/16] 0, 0, 128
      %1923 = vxpose.binary.xlu0.c.b16.cont [4/16] 0, 0, 128
      %1924 = vxpose.binary.xlu0.c.b16.cont [5/16] 0, 0, 128
      %1925 = vxpose.binary.xlu0.c.b16.cont [6/16] 0, 0, 128
      %1926 = vxpose.binary.xlu0.c.b16.cont [7/16] 0, 0, 128
      %1927 = vxpose.binary.xlu0.c.b16.end [8/16] 0, 0, 128
      %v1928 = vpop.trf.xlu0
      %v1929 = vpop.trf.xlu0
      %v1930 = vpop.trf.xlu0
      %v1931 = vpop.trf.xlu0
      %v1932 = vpop.trf.xlu0
      %v1933 = vpop.trf.xlu0
      %v1934 = vpop.trf.xlu0
      %v1935 = vpop.trf.xlu0
      %v1936 = vpop.trf.xlu0
      %v1937 = vpop.trf.xlu0
      %v1938 = vpop.trf.xlu0
      %v1939 = vpop.trf.xlu0
      %v1940 = vpop.trf.xlu0
      %v1941 = vpop.trf.xlu0
      %v1942 = vpop.trf.xlu0
      %v1943 = vpop.trf.xlu0
      %v1948 = vunpack.c.l.b16 %v1888
      %v1949 = vunpack.c.h.b16 %v1888
      %v1950 = vunpack.c.l.b16 %v1889
      %v1951 = vunpack.c.h.b16 %v1889
      %v1952 = vunpack.c.l.b16 %v1890
      %v1953 = vunpack.c.h.b16 %v1890
      %v1954 = vunpack.c.l.b16 %v1891
      %v1955 = vunpack.c.h.b16 %v1891
      %v1956 = vpack.c.b16 %v1950, %v1948
      %v1957 = vpack.c.b16 %v1951, %v1949
      %v1958 = vpack.c.b16 %v1954, %v1952
      %v1959 = vpack.c.b16 %v1955, %v1953
      %v1965 = vsel %vm919, %v1928, 0
      %v1968 = vsel %vm919, %v1930, 0
      %v1971 = vsel %vm919, %v1932, 0
      %v1974 = vsel %vm919, %v1934, 0
      %v1977 = vsel %vm919, %v1936, 0
      %v1980 = vsel %vm919, %v1938, 0
      %v1983 = vsel %vm919, %v1940, 0
      %v1986 = vsel %vm919, %v1942, 0
      %v1989 = vsel %vm919, %v1929, 0
      %v1992 = vsel %vm919, %v1931, 0
      %v1995 = vsel %vm919, %v1933, 0
      %v1998 = vsel %vm919, %v1935, 0
      %v2001 = vsel %vm919, %v1937, 0
      %v2004 = vsel %vm919, %v1939, 0
      %v2007 = vsel %vm919, %v1941, 0
      %v2010 = vsel %vm919, %v1943, 0
      %2012 = vmatpush.bf16.msra.mxu0 0
      %2013 = vmatpush.bf16.msra.mxu0 0
      %2014 = vmatpush.bf16.msra.mxu0 0
      %2015 = vmatpush.bf16.msra.mxu0 0
      %2016 = vmatpush.bf16.msra.mxu0 0
      %2017 = vmatpush.bf16.msra.mxu0 0
      %2018 = vmatpush.bf16.msra.mxu0 %v1958
      %2019 = vmatpush.bf16.msra.mxu0 %v1956
      %2020 = vmatmul.bf16.gmra.mxu0 %v1965
      %v2021 = vpop.f32.mrf.mxu0
      %v2022 = vadd.f32 0.0, %v2021
      %v2023 = vpop.f32.mrf.mxu0
      %v2024 = vadd.f32 0.0, %v2023
      %2025 = vmatmul.bf16.gmra.mxu0 %v1968
      %v2026 = vpop.f32.mrf.mxu0
      %v2027 = vadd.f32 0.0, %v2026
      %v2028 = vpop.f32.mrf.mxu0
      %v2029 = vadd.f32 0.0, %v2028
      %2030 = vmatmul.bf16.gmra.mxu0 %v1971
      %v2031 = vpop.f32.mrf.mxu0
      %v2032 = vadd.f32 0.0, %v2031
      %v2033 = vpop.f32.mrf.mxu0
      %v2034 = vadd.f32 0.0, %v2033
      %2035 = vmatmul.bf16.gmra.mxu0 %v1974
      %v2036 = vpop.f32.mrf.mxu0
      %v2037 = vadd.f32 0.0, %v2036
      %v2038 = vpop.f32.mrf.mxu0
      %v2039 = vadd.f32 0.0, %v2038
      %2040 = vmatmul.bf16.gmra.mxu0 %v1977
      %v2041 = vpop.f32.mrf.mxu0
      %v2042 = vadd.f32 0.0, %v2041
      %v2043 = vpop.f32.mrf.mxu0
      %v2044 = vadd.f32 0.0, %v2043
      %2045 = vmatmul.bf16.gmra.mxu0 %v1980
      %v2046 = vpop.f32.mrf.mxu0
      %v2047 = vadd.f32 0.0, %v2046
      %v2048 = vpop.f32.mrf.mxu0
      %v2049 = vadd.f32 0.0, %v2048
      %2050 = vmatmul.bf16.gmra.mxu0 %v1983
      %v2051 = vpop.f32.mrf.mxu0
      %v2052 = vadd.f32 0.0, %v2051
      %v2053 = vpop.f32.mrf.mxu0
      %v2054 = vadd.f32 0.0, %v2053
      %2055 = vmatmul.bf16.gmra.mxu0 %v1986
      %v2056 = vpop.f32.mrf.mxu0
      %v2057 = vadd.f32 0.0, %v2056
      %v2058 = vpop.f32.mrf.mxu0
      %v2059 = vadd.f32 0.0, %v2058
      %2060 = vmatmul.bf16.gmra.mxu0 %v1989
      %v2061 = vpop.f32.mrf.mxu0
      %v2062 = vadd.f32 0.0, %v2061
      %v2063 = vpop.f32.mrf.mxu0
      %v2064 = vadd.f32 0.0, %v2063
      %2065 = vmatmul.bf16.gmra.mxu0 %v1992
      %v2066 = vpop.f32.mrf.mxu0
      %v2067 = vadd.f32 0.0, %v2066
      %v2068 = vpop.f32.mrf.mxu0
      %v2069 = vadd.f32 0.0, %v2068
      %2070 = vmatmul.bf16.gmra.mxu0 %v1995
      %v2071 = vpop.f32.mrf.mxu0
      %v2072 = vadd.f32 0.0, %v2071
      %v2073 = vpop.f32.mrf.mxu0
      %v2074 = vadd.f32 0.0, %v2073
      %2075 = vmatmul.bf16.gmra.mxu0 %v1998
      %v2076 = vpop.f32.mrf.mxu0
      %v2077 = vadd.f32 0.0, %v2076
      %v2078 = vpop.f32.mrf.mxu0
      %v2079 = vadd.f32 0.0, %v2078
      %2080 = vmatmul.bf16.gmra.mxu0 %v2001
      %v2081 = vpop.f32.mrf.mxu0
      %v2082 = vadd.f32 0.0, %v2081
      %v2083 = vpop.f32.mrf.mxu0
      %v2084 = vadd.f32 0.0, %v2083
      %2085 = vmatmul.bf16.gmra.mxu0 %v2004
      %v2086 = vpop.f32.mrf.mxu0
      %v2087 = vadd.f32 0.0, %v2086
      %v2088 = vpop.f32.mrf.mxu0
      %v2089 = vadd.f32 0.0, %v2088
      %2090 = vmatmul.bf16.gmra.mxu0 %v2007
      %v2091 = vpop.f32.mrf.mxu0
      %v2092 = vadd.f32 0.0, %v2091
      %v2093 = vpop.f32.mrf.mxu0
      %v2094 = vadd.f32 0.0, %v2093
      %2095 = vmatmul.bf16.gmra.mxu0 %v2010
      %v2096 = vpop.f32.mrf.mxu0
      %v2097 = vadd.f32 0.0, %v2096
      %v2098 = vpop.f32.mrf.mxu0
      %v2099 = vadd.f32 0.0, %v2098
      %2100 = vdwg.mxu0
      %2101 = vmatpush.bf16.msra.mxu0 0
      %2102 = vmatpush.bf16.msra.mxu0 0
      %2103 = vmatpush.bf16.msra.mxu0 0
      %2104 = vmatpush.bf16.msra.mxu0 0
      %2105 = vmatpush.bf16.msra.mxu0 0
      %2106 = vmatpush.bf16.msra.mxu0 0
      %2107 = vmatpush.bf16.msra.mxu0 %v1959
      %2108 = vmatpush.bf16.msra.mxu0 %v1957
      %2109 = vmatmul.bf16.gmra.mxu0 %v1965
      %v2110 = vpop.f32.mrf.mxu0
      %v2111 = vadd.f32 0.0, %v2110
      %v2112 = vpop.f32.mrf.mxu0
      %v2113 = vadd.f32 0.0, %v2112
      %2114 = vmatmul.bf16.gmra.mxu0 %v1968
      %v2115 = vpop.f32.mrf.mxu0
      %v2116 = vadd.f32 0.0, %v2115
      %v2117 = vpop.f32.mrf.mxu0
      %v2118 = vadd.f32 0.0, %v2117
      %2119 = vmatmul.bf16.gmra.mxu0 %v1971
      %v2120 = vpop.f32.mrf.mxu0
      %v2121 = vadd.f32 0.0, %v2120
      %v2122 = vpop.f32.mrf.mxu0
      %v2123 = vadd.f32 0.0, %v2122
      %2124 = vmatmul.bf16.gmra.mxu0 %v1974
      %v2125 = vpop.f32.mrf.mxu0
      %v2126 = vadd.f32 0.0, %v2125
      %v2127 = vpop.f32.mrf.mxu0
      %v2128 = vadd.f32 0.0, %v2127
      %2129 = vmatmul.bf16.gmra.mxu0 %v1977
      %v2130 = vpop.f32.mrf.mxu0
      %v2131 = vadd.f32 0.0, %v2130
      %v2132 = vpop.f32.mrf.mxu0
      %v2133 = vadd.f32 0.0, %v2132
      %2134 = vmatmul.bf16.gmra.mxu0 %v1980
      %v2135 = vpop.f32.mrf.mxu0
      %v2136 = vadd.f32 0.0, %v2135
      %v2137 = vpop.f32.mrf.mxu0
      %v2138 = vadd.f32 0.0, %v2137
      %2139 = vmatmul.bf16.gmra.mxu0 %v1983
      %v2140 = vpop.f32.mrf.mxu0
      %v2141 = vadd.f32 0.0, %v2140
      %v2142 = vpop.f32.mrf.mxu0
      %v2143 = vadd.f32 0.0, %v2142
      %2144 = vmatmul.bf16.gmra.mxu0 %v1986
      %v2145 = vpop.f32.mrf.mxu0
      %v2146 = vadd.f32 0.0, %v2145
      %v2147 = vpop.f32.mrf.mxu0
      %v2148 = vadd.f32 0.0, %v2147
      %2149 = vmatmul.bf16.gmra.mxu0 %v1989
      %v2150 = vpop.f32.mrf.mxu0
      %v2151 = vadd.f32 0.0, %v2150
      %v2152 = vpop.f32.mrf.mxu0
      %v2153 = vadd.f32 0.0, %v2152
      %2154 = vmatmul.bf16.gmra.mxu0 %v1992
      %v2155 = vpop.f32.mrf.mxu0
      %v2156 = vadd.f32 0.0, %v2155
      %v2157 = vpop.f32.mrf.mxu0
      %v2158 = vadd.f32 0.0, %v2157
      %2159 = vmatmul.bf16.gmra.mxu0 %v1995
      %v2160 = vpop.f32.mrf.mxu0
      %v2161 = vadd.f32 0.0, %v2160
      %v2162 = vpop.f32.mrf.mxu0
      %v2163 = vadd.f32 0.0, %v2162
      %2164 = vmatmul.bf16.gmra.mxu0 %v1998
      %v2165 = vpop.f32.mrf.mxu0
      %v2166 = vadd.f32 0.0, %v2165
      %v2167 = vpop.f32.mrf.mxu0
      %v2168 = vadd.f32 0.0, %v2167
      %2169 = vmatmul.bf16.gmra.mxu0 %v2001
      %v2170 = vpop.f32.mrf.mxu0
      %v2171 = vadd.f32 0.0, %v2170
      %v2172 = vpop.f32.mrf.mxu0
      %v2173 = vadd.f32 0.0, %v2172
      %2174 = vmatmul.bf16.gmra.mxu0 %v2004
      %v2175 = vpop.f32.mrf.mxu0
      %v2176 = vadd.f32 0.0, %v2175
      %v2177 = vpop.f32.mrf.mxu0
      %v2178 = vadd.f32 0.0, %v2177
      %2179 = vmatmul.bf16.gmra.mxu0 %v2007
      %v2180 = vpop.f32.mrf.mxu0
      %v2181 = vadd.f32 0.0, %v2180
      %v2182 = vpop.f32.mrf.mxu0
      %v2183 = vadd.f32 0.0, %v2182
      %2184 = vmatmul.bf16.gmra.mxu0 %v2010
      %v2185 = vpop.f32.mrf.mxu0
      %v2186 = vadd.f32 0.0, %v2185
      %v2187 = vpop.f32.mrf.mxu0
      %v2188 = vadd.f32 0.0, %v2187
      %2189 = vdwg.mxu0
      %v2190 = vpack.c.bf16 %v2111, %v2022
      %v2191 = vpack.c.bf16 %v2113, %v2024
      %v2192 = vpack.c.bf16 %v2116, %v2027
      %v2193 = vpack.c.bf16 %v2118, %v2029
      %v2194 = vpack.c.bf16 %v2121, %v2032
      %v2195 = vpack.c.bf16 %v2123, %v2034
      %v2196 = vpack.c.bf16 %v2126, %v2037
      %v2197 = vpack.c.bf16 %v2128, %v2039
      %v2198 = vpack.c.bf16 %v2131, %v2042
      %v2199 = vpack.c.bf16 %v2133, %v2044
      %v2200 = vpack.c.bf16 %v2136, %v2047
      %v2201 = vpack.c.bf16 %v2138, %v2049
      %v2202 = vpack.c.bf16 %v2141, %v2052
      %v2203 = vpack.c.bf16 %v2143, %v2054
      %v2204 = vpack.c.bf16 %v2146, %v2057
      %v2205 = vpack.c.bf16 %v2148, %v2059
      %v2206 = vpack.c.bf16 %v2151, %v2062
      %v2207 = vpack.c.bf16 %v2153, %v2064
      %v2208 = vpack.c.bf16 %v2156, %v2067
      %v2209 = vpack.c.bf16 %v2158, %v2069
      %v2210 = vpack.c.bf16 %v2161, %v2072
      %v2211 = vpack.c.bf16 %v2163, %v2074
      %v2212 = vpack.c.bf16 %v2166, %v2077
      %v2213 = vpack.c.bf16 %v2168, %v2079
      %v2214 = vpack.c.bf16 %v2171, %v2082
      %v2215 = vpack.c.bf16 %v2173, %v2084
      %v2216 = vpack.c.bf16 %v2176, %v2087
      %v2217 = vpack.c.bf16 %v2178, %v2089
      %v2218 = vpack.c.bf16 %v2181, %v2092
      %v2219 = vpack.c.bf16 %v2183, %v2094
      %v2220 = vpack.c.bf16 %v2186, %v2097
      %v2221 = vpack.c.bf16 %v2188, %v2099
      %v2222 = vunpack.c.l.bf16 %v2190
      %v2223 = vunpack.c.h.bf16 %v2190
      %v2224 = vunpack.c.l.bf16 %v2191
      %v2225 = vunpack.c.h.bf16 %v2191
      %v2226 = vunpack.c.l.bf16 %v2192
      %v2227 = vunpack.c.h.bf16 %v2192
      %v2228 = vunpack.c.l.bf16 %v2193
      %v2229 = vunpack.c.h.bf16 %v2193
      %v2230 = vunpack.c.l.bf16 %v2194
      %v2231 = vunpack.c.h.bf16 %v2194
      %v2232 = vunpack.c.l.bf16 %v2195
      %v2233 = vunpack.c.h.bf16 %v2195
      %v2234 = vunpack.c.l.bf16 %v2196
      %v2235 = vunpack.c.h.bf16 %v2196
      %v2236 = vunpack.c.l.bf16 %v2197
      %v2237 = vunpack.c.h.bf16 %v2197
      %v2238 = vunpack.c.l.bf16 %v2198
      %v2239 = vunpack.c.h.bf16 %v2198
      %v2240 = vunpack.c.l.bf16 %v2199
      %v2241 = vunpack.c.h.bf16 %v2199
      %v2242 = vunpack.c.l.bf16 %v2200
      %v2243 = vunpack.c.h.bf16 %v2200
      %v2244 = vunpack.c.l.bf16 %v2201
      %v2245 = vunpack.c.h.bf16 %v2201
      %v2246 = vunpack.c.l.bf16 %v2202
      %v2247 = vunpack.c.h.bf16 %v2202
      %v2248 = vunpack.c.l.bf16 %v2203
      %v2249 = vunpack.c.h.bf16 %v2203
      %v2250 = vunpack.c.l.bf16 %v2204
      %v2251 = vunpack.c.h.bf16 %v2204
      %v2252 = vunpack.c.l.bf16 %v2205
      %v2253 = vunpack.c.h.bf16 %v2205
      %v2254 = vunpack.c.l.bf16 %v2206
      %v2255 = vunpack.c.h.bf16 %v2206
      %v2256 = vunpack.c.l.bf16 %v2207
      %v2257 = vunpack.c.h.bf16 %v2207
      %v2258 = vunpack.c.l.bf16 %v2208
      %v2259 = vunpack.c.h.bf16 %v2208
      %v2260 = vunpack.c.l.bf16 %v2209
      %v2261 = vunpack.c.h.bf16 %v2209
      %v2262 = vunpack.c.l.bf16 %v2210
      %v2263 = vunpack.c.h.bf16 %v2210
      %v2264 = vunpack.c.l.bf16 %v2211
      %v2265 = vunpack.c.h.bf16 %v2211
      %v2266 = vunpack.c.l.bf16 %v2212
      %v2267 = vunpack.c.h.bf16 %v2212
      %v2268 = vunpack.c.l.bf16 %v2213
      %v2269 = vunpack.c.h.bf16 %v2213
      %v2270 = vunpack.c.l.bf16 %v2214
      %v2271 = vunpack.c.h.bf16 %v2214
      %v2272 = vunpack.c.l.bf16 %v2215
      %v2273 = vunpack.c.h.bf16 %v2215
      %v2274 = vunpack.c.l.bf16 %v2216
      %v2275 = vunpack.c.h.bf16 %v2216
      %v2276 = vunpack.c.l.bf16 %v2217
      %v2277 = vunpack.c.h.bf16 %v2217
      %v2278 = vunpack.c.l.bf16 %v2218
      %v2279 = vunpack.c.h.bf16 %v2218
      %v2280 = vunpack.c.l.bf16 %v2219
      %v2281 = vunpack.c.h.bf16 %v2219
      %v2282 = vunpack.c.l.bf16 %v2220
      %v2283 = vunpack.c.h.bf16 %v2220
      %v2284 = vunpack.c.l.bf16 %v2221
      %v2285 = vunpack.c.h.bf16 %v2221
      %v2286 = vmax.f32 %v2222, %v2226
      %v2287 = vmax.f32 %v2224, %v2228
      %v2288 = vmax.f32 %v2286, %v2230
      %v2289 = vmax.f32 %v2287, %v2232
      %v2290 = vmax.f32 %v2288, %v2234
      %v2291 = vmax.f32 %v2289, %v2236
      %v2292 = vmax.f32 %v2290, %v2238
      %v2293 = vmax.f32 %v2291, %v2240
      %v2294 = vmax.f32 %v2292, %v2242
      %v2295 = vmax.f32 %v2293, %v2244
      %v2296 = vmax.f32 %v2294, %v2246
      %v2297 = vmax.f32 %v2295, %v2248
      %v2298 = vmax.f32 %v2296, %v2250
      %v2299 = vmax.f32 %v2297, %v2252
      %v2300 = vmax.f32 %v2298, %v2254
      %v2301 = vmax.f32 %v2299, %v2256
      %v2302 = vmax.f32 %v2300, %v2258
      %v2303 = vmax.f32 %v2301, %v2260
      %v2304 = vmax.f32 %v2302, %v2262
      %v2305 = vmax.f32 %v2303, %v2264
      %v2306 = vmax.f32 %v2304, %v2266
      %v2307 = vmax.f32 %v2305, %v2268
      %v2308 = vmax.f32 %v2306, %v2270
      %v2309 = vmax.f32 %v2307, %v2272
      %v2310 = vmax.f32 %v2308, %v2274
      %v2311 = vmax.f32 %v2309, %v2276
      %v2312 = vmax.f32 %v2310, %v2278
      %v2313 = vmax.f32 %v2311, %v2280
      %v2314 = vmax.f32 %v2312, %v2282
      %v2315 = vmax.f32 %v2313, %v2284
      %v2316 = vmax.f32 %v2314, %v2315
      %v2317 = vrot.slane %v2316, 4
      %v2318 = vmax.f32 %v2316, %v2317
      %v2319 = vrot.slane %v2318, 2
      %v2320 = vmax.f32 %v2318, %v2319
      %v2321 = vrot.slane %v2320, 1
      %v2322 = vmax.f32 %v2320, %v2321
      %v2323 = vmax.f32 %v2223, %v2227
      %v2324 = vmax.f32 %v2225, %v2229
      %v2325 = vmax.f32 %v2323, %v2231
      %v2326 = vmax.f32 %v2324, %v2233
      %v2327 = vmax.f32 %v2325, %v2235
      %v2328 = vmax.f32 %v2326, %v2237
      %v2329 = vmax.f32 %v2327, %v2239
      %v2330 = vmax.f32 %v2328, %v2241
      %v2331 = vmax.f32 %v2329, %v2243
      %v2332 = vmax.f32 %v2330, %v2245
      %v2333 = vmax.f32 %v2331, %v2247
      %v2334 = vmax.f32 %v2332, %v2249
      %v2335 = vmax.f32 %v2333, %v2251
      %v2336 = vmax.f32 %v2334, %v2253
      %v2337 = vmax.f32 %v2335, %v2255
      %v2338 = vmax.f32 %v2336, %v2257
      %v2339 = vmax.f32 %v2337, %v2259
      %v2340 = vmax.f32 %v2338, %v2261
      %v2341 = vmax.f32 %v2339, %v2263
      %v2342 = vmax.f32 %v2340, %v2265
      %v2343 = vmax.f32 %v2341, %v2267
      %v2344 = vmax.f32 %v2342, %v2269
      %v2345 = vmax.f32 %v2343, %v2271
      %v2346 = vmax.f32 %v2344, %v2273
      %v2347 = vmax.f32 %v2345, %v2275
      %v2348 = vmax.f32 %v2346, %v2277
      %v2349 = vmax.f32 %v2347, %v2279
      %v2350 = vmax.f32 %v2348, %v2281
      %v2351 = vmax.f32 %v2349, %v2283
      %v2352 = vmax.f32 %v2350, %v2285
      %v2353 = vmax.f32 %v2351, %v2352
      %v2354 = vrot.slane %v2353, 4
      %v2355 = vmax.f32 %v2353, %v2354
      %v2356 = vrot.slane %v2355, 2
      %v2357 = vmax.f32 %v2355, %v2356
      %v2358 = vrot.slane %v2357, 1
      %v2359 = vmax.f32 %v2357, %v2358
      %v2360 = vpack.c.bf16 %v2359, %v2322
      %v2361 = vunpack.c.l.bf16 %v2360
      %v2362 = vunpack.c.h.bf16 %v2360
      %v2363 = vsub.f32 %v2222, %v2361
      %v2364 = vsub.f32 %v2223, %v2362
      %v2365 = vsub.f32 %v2224, %v2361
      %v2366 = vsub.f32 %v2225, %v2362
      %v2367 = vsub.f32 %v2226, %v2361
      %v2368 = vsub.f32 %v2227, %v2362
      %v2369 = vsub.f32 %v2228, %v2361
      %v2370 = vsub.f32 %v2229, %v2362
      %v2371 = vsub.f32 %v2230, %v2361
      %v2372 = vsub.f32 %v2231, %v2362
      %v2373 = vsub.f32 %v2232, %v2361
      %v2374 = vsub.f32 %v2233, %v2362
      %v2375 = vsub.f32 %v2234, %v2361
      %v2376 = vsub.f32 %v2235, %v2362
      %v2377 = vsub.f32 %v2236, %v2361
      %v2378 = vsub.f32 %v2237, %v2362
      %v2379 = vsub.f32 %v2238, %v2361
      %v2380 = vsub.f32 %v2239, %v2362
      %v2381 = vsub.f32 %v2240, %v2361
      %v2382 = vsub.f32 %v2241, %v2362
      %v2383 = vsub.f32 %v2242, %v2361
      %v2384 = vsub.f32 %v2243, %v2362
      %v2385 = vsub.f32 %v2244, %v2361
      %v2386 = vsub.f32 %v2245, %v2362
      %v2387 = vsub.f32 %v2246, %v2361
      %v2388 = vsub.f32 %v2247, %v2362
      %v2389 = vsub.f32 %v2248, %v2361
      %v2390 = vsub.f32 %v2249, %v2362
      %v2391 = vsub.f32 %v2250, %v2361
      %v2392 = vsub.f32 %v2251, %v2362
      %v2393 = vsub.f32 %v2252, %v2361
      %v2394 = vsub.f32 %v2253, %v2362
      %v2395 = vsub.f32 %v2254, %v2361
      %v2396 = vsub.f32 %v2255, %v2362
      %v2397 = vsub.f32 %v2256, %v2361
      %v2398 = vsub.f32 %v2257, %v2362
      %v2399 = vsub.f32 %v2258, %v2361
      %v2400 = vsub.f32 %v2259, %v2362
      %v2401 = vsub.f32 %v2260, %v2361
      %v2402 = vsub.f32 %v2261, %v2362
      %v2403 = vsub.f32 %v2262, %v2361
      %v2404 = vsub.f32 %v2263, %v2362
      %v2405 = vsub.f32 %v2264, %v2361
      %v2406 = vsub.f32 %v2265, %v2362
      %v2407 = vsub.f32 %v2266, %v2361
      %v2408 = vsub.f32 %v2267, %v2362
      %v2409 = vsub.f32 %v2268, %v2361
      %v2410 = vsub.f32 %v2269, %v2362
      %v2411 = vsub.f32 %v2270, %v2361
      %v2412 = vsub.f32 %v2271, %v2362
      %v2413 = vsub.f32 %v2272, %v2361
      %v2414 = vsub.f32 %v2273, %v2362
      %v2415 = vsub.f32 %v2274, %v2361
      %v2416 = vsub.f32 %v2275, %v2362
      %v2417 = vsub.f32 %v2276, %v2361
      %v2418 = vsub.f32 %v2277, %v2362
      %v2419 = vsub.f32 %v2278, %v2361
      %v2420 = vsub.f32 %v2279, %v2362
      %v2421 = vsub.f32 %v2280, %v2361
      %v2422 = vsub.f32 %v2281, %v2362
      %v2423 = vsub.f32 %v2282, %v2361
      %v2424 = vsub.f32 %v2283, %v2362
      %v2425 = vsub.f32 %v2284, %v2361
      %v2426 = vsub.f32 %v2285, %v2362
      %v2427 = vpack.c.bf16 %v2365, %v2363
      %v2428 = vpack.c.bf16 %v2366, %v2364
      %v2429 = vpack.c.bf16 %v2369, %v2367
      %v2430 = vpack.c.bf16 %v2370, %v2368
      %v2431 = vpack.c.bf16 %v2373, %v2371
      %v2432 = vpack.c.bf16 %v2374, %v2372
      %v2433 = vpack.c.bf16 %v2377, %v2375
      %v2434 = vpack.c.bf16 %v2378, %v2376
      %v2435 = vpack.c.bf16 %v2381, %v2379
      %v2436 = vpack.c.bf16 %v2382, %v2380
      %v2437 = vpack.c.bf16 %v2385, %v2383
      %v2438 = vpack.c.bf16 %v2386, %v2384
      %v2439 = vpack.c.bf16 %v2389, %v2387
      %v2440 = vpack.c.bf16 %v2390, %v2388
      %v2441 = vpack.c.bf16 %v2393, %v2391
      %v2442 = vpack.c.bf16 %v2394, %v2392
      %v2443 = vpack.c.bf16 %v2397, %v2395
      %v2444 = vpack.c.bf16 %v2398, %v2396
      %v2445 = vpack.c.bf16 %v2401, %v2399
      %v2446 = vpack.c.bf16 %v2402, %v2400
      %v2447 = vpack.c.bf16 %v2405, %v2403
      %v2448 = vpack.c.bf16 %v2406, %v2404
      %v2449 = vpack.c.bf16 %v2409, %v2407
      %v2450 = vpack.c.bf16 %v2410, %v2408
      %v2451 = vpack.c.bf16 %v2413, %v2411
      %v2452 = vpack.c.bf16 %v2414, %v2412
      %v2453 = vpack.c.bf16 %v2417, %v2415
      %v2454 = vpack.c.bf16 %v2418, %v2416
      %v2455 = vpack.c.bf16 %v2421, %v2419
      %v2456 = vpack.c.bf16 %v2422, %v2420
      %v2457 = vpack.c.bf16 %v2425, %v2423
      %v2458 = vpack.c.bf16 %v2426, %v2424
      %v2459 = vunpack.c.l.bf16 %v2427
      %v2460 = vunpack.c.l.bf16 %v2428
      %v2461 = vunpack.c.h.bf16 %v2427
      %v2462 = vunpack.c.h.bf16 %v2428
      %v2463 = vunpack.c.l.bf16 %v2429
      %v2464 = vunpack.c.l.bf16 %v2430
      %v2465 = vunpack.c.h.bf16 %v2429
      %v2466 = vunpack.c.h.bf16 %v2430
      %v2467 = vunpack.c.l.bf16 %v2431
      %v2468 = vunpack.c.l.bf16 %v2432
      %v2469 = vunpack.c.h.bf16 %v2431
      %v2470 = vunpack.c.h.bf16 %v2432
      %v2471 = vunpack.c.l.bf16 %v2433
      %v2472 = vunpack.c.l.bf16 %v2434
      %v2473 = vunpack.c.h.bf16 %v2433
      %v2474 = vunpack.c.h.bf16 %v2434
      %v2475 = vunpack.c.l.bf16 %v2435
      %v2476 = vunpack.c.l.bf16 %v2436
      %v2477 = vunpack.c.h.bf16 %v2435
      %v2478 = vunpack.c.h.bf16 %v2436
      %v2479 = vunpack.c.l.bf16 %v2437
      %v2480 = vunpack.c.l.bf16 %v2438
      %v2481 = vunpack.c.h.bf16 %v2437
      %v2482 = vunpack.c.h.bf16 %v2438
      %v2483 = vunpack.c.l.bf16 %v2439
      %v2484 = vunpack.c.l.bf16 %v2440
      %v2485 = vunpack.c.h.bf16 %v2439
      %v2486 = vunpack.c.h.bf16 %v2440
      %v2487 = vunpack.c.l.bf16 %v2441
      %v2488 = vunpack.c.l.bf16 %v2442
      %v2489 = vunpack.c.h.bf16 %v2441
      %v2490 = vunpack.c.h.bf16 %v2442
      %v2491 = vunpack.c.l.bf16 %v2443
      %v2492 = vunpack.c.l.bf16 %v2444
      %v2493 = vunpack.c.h.bf16 %v2443
      %v2494 = vunpack.c.h.bf16 %v2444
      %v2495 = vunpack.c.l.bf16 %v2445
      %v2496 = vunpack.c.l.bf16 %v2446
      %v2497 = vunpack.c.h.bf16 %v2445
      %v2498 = vunpack.c.h.bf16 %v2446
      %v2499 = vunpack.c.l.bf16 %v2447
      %v2500 = vunpack.c.l.bf16 %v2448
      %v2501 = vunpack.c.h.bf16 %v2447
      %v2502 = vunpack.c.h.bf16 %v2448
      %v2503 = vunpack.c.l.bf16 %v2449
      %v2504 = vunpack.c.l.bf16 %v2450
      %v2505 = vunpack.c.h.bf16 %v2449
      %v2506 = vunpack.c.h.bf16 %v2450
      %v2507 = vunpack.c.l.bf16 %v2451
      %v2508 = vunpack.c.l.bf16 %v2452
      %v2509 = vunpack.c.h.bf16 %v2451
      %v2510 = vunpack.c.h.bf16 %v2452
      %v2511 = vunpack.c.l.bf16 %v2453
      %v2512 = vunpack.c.l.bf16 %v2454
      %v2513 = vunpack.c.h.bf16 %v2453
      %v2514 = vunpack.c.h.bf16 %v2454
      %v2515 = vunpack.c.l.bf16 %v2455
      %v2516 = vunpack.c.l.bf16 %v2456
      %v2517 = vunpack.c.h.bf16 %v2455
      %v2518 = vunpack.c.h.bf16 %v2456
      %v2519 = vunpack.c.l.bf16 %v2457
      %v2520 = vunpack.c.l.bf16 %v2458
      %v2521 = vunpack.c.h.bf16 %v2457
      %v2522 = vunpack.c.h.bf16 %v2458
      %v2523 = vmul.f32 %v2459, 1.442695
      %v2524 = vpow.pop %v2523
      %v2525 = vmul.f32 %v2460, 1.442695
      %v2526 = vpow.pop %v2525
      %v2527 = vmul.f32 %v2461, 1.442695
      %v2528 = vpow.pop %v2527
      %v2529 = vmul.f32 %v2462, 1.442695
      %v2530 = vpow.pop %v2529
      %v2531 = vmul.f32 %v2463, 1.442695
      %v2532 = vpow.pop %v2531
      %v2533 = vmul.f32 %v2464, 1.442695
      %v2534 = vpow.pop %v2533
      %v2535 = vmul.f32 %v2465, 1.442695
      %v2536 = vpow.pop %v2535
      %v2537 = vmul.f32 %v2466, 1.442695
      %v2538 = vpow.pop %v2537
      %v2539 = vmul.f32 %v2467, 1.442695
      %v2540 = vpow.pop %v2539
      %v2541 = vmul.f32 %v2468, 1.442695
      %v2542 = vpow.pop %v2541
      %v2543 = vmul.f32 %v2469, 1.442695
      %v2544 = vpow.pop %v2543
      %v2545 = vmul.f32 %v2470, 1.442695
      %v2546 = vpow.pop %v2545
      %v2547 = vmul.f32 %v2471, 1.442695
      %v2548 = vpow.pop %v2547
      %v2549 = vmul.f32 %v2472, 1.442695
      %v2550 = vpow.pop %v2549
      %v2551 = vmul.f32 %v2473, 1.442695
      %v2552 = vpow.pop %v2551
      %v2553 = vmul.f32 %v2474, 1.442695
      %v2554 = vpow.pop %v2553
      %v2555 = vmul.f32 %v2475, 1.442695
      %v2556 = vpow.pop %v2555
      %v2557 = vmul.f32 %v2476, 1.442695
      %v2558 = vpow.pop %v2557
      %v2559 = vmul.f32 %v2477, 1.442695
      %v2560 = vpow.pop %v2559
      %v2561 = vmul.f32 %v2478, 1.442695
      %v2562 = vpow.pop %v2561
      %v2563 = vmul.f32 %v2479, 1.442695
      %v2564 = vpow.pop %v2563
      %v2565 = vmul.f32 %v2480, 1.442695
      %v2566 = vpow.pop %v2565
      %v2567 = vmul.f32 %v2481, 1.442695
      %v2568 = vpow.pop %v2567
      %v2569 = vmul.f32 %v2482, 1.442695
      %v2570 = vpow.pop %v2569
      %v2571 = vmul.f32 %v2483, 1.442695
      %v2572 = vpow.pop %v2571
      %v2573 = vmul.f32 %v2484, 1.442695
      %v2574 = vpow.pop %v2573
      %v2575 = vmul.f32 %v2485, 1.442695
      %v2576 = vpow.pop %v2575
      %v2577 = vmul.f32 %v2486, 1.442695
      %v2578 = vpow.pop %v2577
      %v2579 = vmul.f32 %v2487, 1.442695
      %v2580 = vpow.pop %v2579
      %v2581 = vmul.f32 %v2488, 1.442695
      %v2582 = vpow.pop %v2581
      %v2583 = vmul.f32 %v2489, 1.442695
      %v2584 = vpow.pop %v2583
      %v2585 = vmul.f32 %v2490, 1.442695
      %v2586 = vpow.pop %v2585
      %v2587 = vmul.f32 %v2491, 1.442695
      %v2588 = vpow.pop %v2587
      %v2589 = vmul.f32 %v2492, 1.442695
      %v2590 = vpow.pop %v2589
      %v2591 = vmul.f32 %v2493, 1.442695
      %v2592 = vpow.pop %v2591
      %v2593 = vmul.f32 %v2494, 1.442695
      %v2594 = vpow.pop %v2593
      %v2595 = vmul.f32 %v2495, 1.442695
      %v2596 = vpow.pop %v2595
      %v2597 = vmul.f32 %v2496, 1.442695
      %v2598 = vpow.pop %v2597
      %v2599 = vmul.f32 %v2497, 1.442695
      %v2600 = vpow.pop %v2599
      %v2601 = vmul.f32 %v2498, 1.442695
      %v2602 = vpow.pop %v2601
      %v2603 = vmul.f32 %v2499, 1.442695
      %v2604 = vpow.pop %v2603
      %v2605 = vmul.f32 %v2500, 1.442695
      %v2606 = vpow.pop %v2605
      %v2607 = vmul.f32 %v2501, 1.442695
      %v2608 = vpow.pop %v2607
      %v2609 = vmul.f32 %v2502, 1.442695
      %v2610 = vpow.pop %v2609
      %v2611 = vmul.f32 %v2503, 1.442695
      %v2612 = vpow.pop %v2611
      %v2613 = vmul.f32 %v2504, 1.442695
      %v2614 = vpow.pop %v2613
      %v2615 = vmul.f32 %v2505, 1.442695
      %v2616 = vpow.pop %v2615
      %v2617 = vmul.f32 %v2506, 1.442695
      %v2618 = vpow.pop %v2617
      %v2619 = vmul.f32 %v2507, 1.442695
      %v2620 = vpow.pop %v2619
      %v2621 = vmul.f32 %v2508, 1.442695
      %v2622 = vpow.pop %v2621
      %v2623 = vmul.f32 %v2509, 1.442695
      %v2624 = vpow.pop %v2623
      %v2625 = vmul.f32 %v2510, 1.442695
      %v2626 = vpow.pop %v2625
      %v2627 = vmul.f32 %v2511, 1.442695
      %v2628 = vpow.pop %v2627
      %v2629 = vmul.f32 %v2512, 1.442695
      %v2630 = vpow.pop %v2629
      %v2631 = vmul.f32 %v2513, 1.442695
      %v2632 = vpow.pop %v2631
      %v2633 = vmul.f32 %v2514, 1.442695
      %v2634 = vpow.pop %v2633
      %v2635 = vmul.f32 %v2515, 1.442695
      %v2636 = vpow.pop %v2635
      %v2637 = vmul.f32 %v2516, 1.442695
      %v2638 = vpow.pop %v2637
      %v2639 = vmul.f32 %v2517, 1.442695
      %v2640 = vpow.pop %v2639
      %v2641 = vmul.f32 %v2518, 1.442695
      %v2642 = vpow.pop %v2641
      %v2643 = vmul.f32 %v2519, 1.442695
      %v2644 = vpow.pop %v2643
      %v2645 = vmul.f32 %v2520, 1.442695
      %v2646 = vpow.pop %v2645
      %v2647 = vmul.f32 %v2521, 1.442695
      %v2648 = vpow.pop %v2647
      %v2649 = vmul.f32 %v2522, 1.442695
      %v2650 = vpow.pop %v2649
      %v2651 = vpack.c.bf16 %v2528, %v2524
      %v2652 = vpack.c.bf16 %v2530, %v2526
      %v2653 = vpack.c.bf16 %v2536, %v2532
      %v2654 = vpack.c.bf16 %v2538, %v2534
      %v2655 = vpack.c.bf16 %v2544, %v2540
      %v2656 = vpack.c.bf16 %v2546, %v2542
      %v2657 = vpack.c.bf16 %v2552, %v2548
      %v2658 = vpack.c.bf16 %v2554, %v2550
      %v2659 = vpack.c.bf16 %v2560, %v2556
      %v2660 = vpack.c.bf16 %v2562, %v2558
      %v2661 = vpack.c.bf16 %v2568, %v2564
      %v2662 = vpack.c.bf16 %v2570, %v2566
      %v2663 = vpack.c.bf16 %v2576, %v2572
      %v2664 = vpack.c.bf16 %v2578, %v2574
      %v2665 = vpack.c.bf16 %v2584, %v2580
      %v2666 = vpack.c.bf16 %v2586, %v2582
      %v2667 = vpack.c.bf16 %v2592, %v2588
      %v2668 = vpack.c.bf16 %v2594, %v2590
      %v2669 = vpack.c.bf16 %v2600, %v2596
      %v2670 = vpack.c.bf16 %v2602, %v2598
      %v2671 = vpack.c.bf16 %v2608, %v2604
      %v2672 = vpack.c.bf16 %v2610, %v2606
      %v2673 = vpack.c.bf16 %v2616, %v2612
      %v2674 = vpack.c.bf16 %v2618, %v2614
      %v2675 = vpack.c.bf16 %v2624, %v2620
      %v2676 = vpack.c.bf16 %v2626, %v2622
      %v2677 = vpack.c.bf16 %v2632, %v2628
      %v2678 = vpack.c.bf16 %v2634, %v2630
      %v2679 = vpack.c.bf16 %v2640, %v2636
      %v2680 = vpack.c.bf16 %v2642, %v2638
      %v2681 = vpack.c.bf16 %v2648, %v2644
      %v2682 = vpack.c.bf16 %v2650, %v2646
      %v2683 = vunpack.c.l.bf16 %v2651
      %v2684 = vunpack.c.l.bf16 %v2652
      %v2685 = vunpack.c.h.bf16 %v2651
      %v2686 = vunpack.c.h.bf16 %v2652
      %v2687 = vunpack.c.l.bf16 %v2653
      %v2688 = vunpack.c.l.bf16 %v2654
      %v2689 = vunpack.c.h.bf16 %v2653
      %v2690 = vunpack.c.h.bf16 %v2654
      %v2691 = vunpack.c.l.bf16 %v2655
      %v2692 = vunpack.c.l.bf16 %v2656
      %v2693 = vunpack.c.h.bf16 %v2655
      %v2694 = vunpack.c.h.bf16 %v2656
      %v2695 = vunpack.c.l.bf16 %v2657
      %v2696 = vunpack.c.l.bf16 %v2658
      %v2697 = vunpack.c.h.bf16 %v2657
      %v2698 = vunpack.c.h.bf16 %v2658
      %v2699 = vunpack.c.l.bf16 %v2659
      %v2700 = vunpack.c.l.bf16 %v2660
      %v2701 = vunpack.c.h.bf16 %v2659
      %v2702 = vunpack.c.h.bf16 %v2660
      %v2703 = vunpack.c.l.bf16 %v2661
      %v2704 = vunpack.c.l.bf16 %v2662
      %v2705 = vunpack.c.h.bf16 %v2661
      %v2706 = vunpack.c.h.bf16 %v2662
      %v2707 = vunpack.c.l.bf16 %v2663
      %v2708 = vunpack.c.l.bf16 %v2664
      %v2709 = vunpack.c.h.bf16 %v2663
      %v2710 = vunpack.c.h.bf16 %v2664
      %v2711 = vunpack.c.l.bf16 %v2665
      %v2712 = vunpack.c.l.bf16 %v2666
      %v2713 = vunpack.c.h.bf16 %v2665
      %v2714 = vunpack.c.h.bf16 %v2666
      %v2715 = vunpack.c.l.bf16 %v2667
      %v2716 = vunpack.c.l.bf16 %v2668
      %v2717 = vunpack.c.h.bf16 %v2667
      %v2718 = vunpack.c.h.bf16 %v2668
      %v2719 = vunpack.c.l.bf16 %v2669
      %v2720 = vunpack.c.l.bf16 %v2670
      %v2721 = vunpack.c.h.bf16 %v2669
      %v2722 = vunpack.c.h.bf16 %v2670
      %v2723 = vunpack.c.l.bf16 %v2671
      %v2724 = vunpack.c.l.bf16 %v2672
      %v2725 = vunpack.c.h.bf16 %v2671
      %v2726 = vunpack.c.h.bf16 %v2672
      %v2727 = vunpack.c.l.bf16 %v2673
      %v2728 = vunpack.c.l.bf16 %v2674
      %v2729 = vunpack.c.h.bf16 %v2673
      %v2730 = vunpack.c.h.bf16 %v2674
      %v2731 = vunpack.c.l.bf16 %v2675
      %v2732 = vunpack.c.l.bf16 %v2676
      %v2733 = vunpack.c.h.bf16 %v2675
      %v2734 = vunpack.c.h.bf16 %v2676
      %v2735 = vunpack.c.l.bf16 %v2677
      %v2736 = vunpack.c.l.bf16 %v2678
      %v2737 = vunpack.c.h.bf16 %v2677
      %v2738 = vunpack.c.h.bf16 %v2678
      %v2739 = vunpack.c.l.bf16 %v2679
      %v2740 = vunpack.c.l.bf16 %v2680
      %v2741 = vunpack.c.h.bf16 %v2679
      %v2742 = vunpack.c.h.bf16 %v2680
      %v2743 = vunpack.c.l.bf16 %v2681
      %v2744 = vunpack.c.l.bf16 %v2682
      %v2745 = vunpack.c.h.bf16 %v2681
      %v2746 = vunpack.c.h.bf16 %v2682
      %v2747 = vadd.f32 %v2683, %v2685
      %v2748 = vadd.f32 %v2747, %v2687
      %v2749 = vadd.f32 %v2748, %v2689
      %v2750 = vadd.f32 %v2749, %v2691
      %v2751 = vadd.f32 %v2750, %v2693
      %v2752 = vadd.f32 %v2751, %v2695
      %v2753 = vadd.f32 %v2752, %v2697
      %v2754 = vadd.f32 %v2753, %v2699
      %v2755 = vadd.f32 %v2754, %v2701
      %v2756 = vadd.f32 %v2755, %v2703
      %v2757 = vadd.f32 %v2756, %v2705
      %v2758 = vadd.f32 %v2757, %v2707
      %v2759 = vadd.f32 %v2758, %v2709
      %v2760 = vadd.f32 %v2759, %v2711
      %v2761 = vadd.f32 %v2760, %v2713
      %v2762 = vadd.f32 %v2761, %v2715
      %v2763 = vadd.f32 %v2762, %v2717
      %v2764 = vadd.f32 %v2763, %v2719
      %v2765 = vadd.f32 %v2764, %v2721
      %v2766 = vadd.f32 %v2765, %v2723
      %v2767 = vadd.f32 %v2766, %v2725
      %v2768 = vadd.f32 %v2767, %v2727
      %v2769 = vadd.f32 %v2768, %v2729
      %v2770 = vadd.f32 %v2769, %v2731
      %v2771 = vadd.f32 %v2770, %v2733
      %v2772 = vadd.f32 %v2771, %v2735
      %v2773 = vadd.f32 %v2772, %v2737
      %v2774 = vadd.f32 %v2773, %v2739
      %v2775 = vadd.f32 %v2774, %v2741
      %v2776 = vadd.f32 %v2775, %v2743
      %v2777 = vadd.f32 %v2776, %v2745
      %v2778 = vrot.slane %v2777, 4
      %v2779 = vadd.f32 %v2777, %v2778
      %v2780 = vrot.slane %v2779, 2
      %v2781 = vadd.f32 %v2779, %v2780
      %v2782 = vrot.slane %v2781, 1
      %v2783 = vadd.f32 %v2781, %v2782
      %v2784 = vadd.f32 %v2684, %v2686
      %v2785 = vadd.f32 %v2784, %v2688
      %v2786 = vadd.f32 %v2785, %v2690
      %v2787 = vadd.f32 %v2786, %v2692
      %v2788 = vadd.f32 %v2787, %v2694
      %v2789 = vadd.f32 %v2788, %v2696
      %v2790 = vadd.f32 %v2789, %v2698
      %v2791 = vadd.f32 %v2790, %v2700
      %v2792 = vadd.f32 %v2791, %v2702
      %v2793 = vadd.f32 %v2792, %v2704
      %v2794 = vadd.f32 %v2793, %v2706
      %v2795 = vadd.f32 %v2794, %v2708
      %v2796 = vadd.f32 %v2795, %v2710
      %v2797 = vadd.f32 %v2796, %v2712
      %v2798 = vadd.f32 %v2797, %v2714
      %v2799 = vadd.f32 %v2798, %v2716
      %v2800 = vadd.f32 %v2799, %v2718
      %v2801 = vadd.f32 %v2800, %v2720
      %v2802 = vadd.f32 %v2801, %v2722
      %v2803 = vadd.f32 %v2802, %v2724
      %v2804 = vadd.f32 %v2803, %v2726
      %v2805 = vadd.f32 %v2804, %v2728
      %v2806 = vadd.f32 %v2805, %v2730
      %v2807 = vadd.f32 %v2806, %v2732
      %v2808 = vadd.f32 %v2807, %v2734
      %v2809 = vadd.f32 %v2808, %v2736
      %v2810 = vadd.f32 %v2809, %v2738
      %v2811 = vadd.f32 %v2810, %v2740
      %v2812 = vadd.f32 %v2811, %v2742
      %v2813 = vadd.f32 %v2812, %v2744
      %v2814 = vadd.f32 %v2813, %v2746
      %v2815 = vrot.slane %v2814, 4
      %v2816 = vadd.f32 %v2814, %v2815
      %v2817 = vrot.slane %v2816, 2
      %v2818 = vadd.f32 %v2816, %v2817
      %v2819 = vrot.slane %v2818, 1
      %v2820 = vadd.f32 %v2818, %v2819
      %v2821 = vrcp.pop %v2783
      %v2822 = vrcp.pop %v2820
      %v2827 = vunpack.c.l.b16 %v1896
      %v2828 = vunpack.c.h.b16 %v1896
      %v2829 = vunpack.c.l.b16 %v1897
      %v2830 = vunpack.c.h.b16 %v1897
      %v2831 = vunpack.c.l.b16 %v1898
      %v2832 = vunpack.c.h.b16 %v1898
      %v2833 = vunpack.c.l.b16 %v1899
      %v2834 = vunpack.c.h.b16 %v1899
      %v2835 = vpack.c.b16 %v2829, %v2827
      %v2836 = vpack.c.b16 %v2830, %v2828
      %v2837 = vpack.c.b16 %v2833, %v2831
      %v2838 = vpack.c.b16 %v2834, %v2832
      %2843 = vmatpush.bf16.msra.mxu0 %v2665
      %2844 = vmatpush.bf16.msra.mxu0 %v2663
      %2845 = vmatpush.bf16.msra.mxu0 %v2661
      %2846 = vmatpush.bf16.msra.mxu0 %v2659
      %2847 = vmatpush.bf16.msra.mxu0 %v2657
      %2848 = vmatpush.bf16.msra.mxu0 %v2655
      %2849 = vmatpush.bf16.msra.mxu0 %v2653
      %2850 = vmatpush.bf16.msra.mxu0 %v2651
      %2851 = vmatmul.bf16.gmra.mxu0 %v2835
      %v2852 = vpop.f32.mrf.mxu0
      %v2853 = vadd.f32 0.0, %v2852
      %v2854 = vpop.f32.mrf.mxu0
      %v2855 = vadd.f32 0.0, %v2854
      %2856 = vmatmul.bf16.gmra.mxu0 %v2837
      %v2857 = vpop.f32.mrf.mxu0
      %v2858 = vadd.f32 0.0, %v2857
      %v2859 = vpop.f32.mrf.mxu0
      %v2860 = vadd.f32 0.0, %v2859
      %2861 = vdwg.mxu0
      %2862 = vmatpush.bf16.msra.mxu0 %v2681
      %2863 = vmatpush.bf16.msra.mxu0 %v2679
      %2864 = vmatpush.bf16.msra.mxu0 %v2677
      %2865 = vmatpush.bf16.msra.mxu0 %v2675
      %2866 = vmatpush.bf16.msra.mxu0 %v2673
      %2867 = vmatpush.bf16.msra.mxu0 %v2671
      %2868 = vmatpush.bf16.msra.mxu0 %v2669
      %2869 = vmatpush.bf16.msra.mxu0 %v2667
      %2870 = vmatmul.bf16.gmra.mxu0 %v2836
      %v2871 = vpop.f32.mrf.mxu0
      %v2872 = vadd.f32 %v2853, %v2871
      %v2873 = vpop.f32.mrf.mxu0
      %v2874 = vadd.f32 %v2855, %v2873
      %2875 = vmatmul.bf16.gmra.mxu0 %v2838
      %v2876 = vpop.f32.mrf.mxu0
      %v2877 = vadd.f32 %v2858, %v2876
      %v2878 = vpop.f32.mrf.mxu0
      %v2879 = vadd.f32 %v2860, %v2878
      %2880 = vdwg.mxu0
      %2881 = vmatpush.bf16.msra.mxu0 %v2666
      %2882 = vmatpush.bf16.msra.mxu0 %v2664
      %2883 = vmatpush.bf16.msra.mxu0 %v2662
      %2884 = vmatpush.bf16.msra.mxu0 %v2660
      %2885 = vmatpush.bf16.msra.mxu0 %v2658
      %2886 = vmatpush.bf16.msra.mxu0 %v2656
      %2887 = vmatpush.bf16.msra.mxu0 %v2654
      %2888 = vmatpush.bf16.msra.mxu0 %v2652
      %2889 = vmatmul.bf16.gmra.mxu0 %v2835
      %v2890 = vpop.f32.mrf.mxu0
      %v2891 = vadd.f32 0.0, %v2890
      %v2892 = vpop.f32.mrf.mxu0
      %v2893 = vadd.f32 0.0, %v2892
      %2894 = vmatmul.bf16.gmra.mxu0 %v2837
      %v2895 = vpop.f32.mrf.mxu0
      %v2896 = vadd.f32 0.0, %v2895
      %v2897 = vpop.f32.mrf.mxu0
      %v2898 = vadd.f32 0.0, %v2897
      %2899 = vdwg.mxu0
      %2900 = vmatpush.bf16.msra.mxu0 %v2682
      %2901 = vmatpush.bf16.msra.mxu0 %v2680
      %2902 = vmatpush.bf16.msra.mxu0 %v2678
      %2903 = vmatpush.bf16.msra.mxu0 %v2676
      %2904 = vmatpush.bf16.msra.mxu0 %v2674
      %2905 = vmatpush.bf16.msra.mxu0 %v2672
      %2906 = vmatpush.bf16.msra.mxu0 %v2670
      %2907 = vmatpush.bf16.msra.mxu0 %v2668
      %2908 = vmatmul.bf16.gmra.mxu0 %v2836
      %v2909 = vpop.f32.mrf.mxu0
      %v2910 = vadd.f32 %v2891, %v2909
      %v2911 = vpop.f32.mrf.mxu0
      %v2912 = vadd.f32 %v2893, %v2911
      %2913 = vmatmul.bf16.gmra.mxu0 %v2838
      %v2914 = vpop.f32.mrf.mxu0
      %v2915 = vadd.f32 %v2896, %v2914
      %v2916 = vpop.f32.mrf.mxu0
      %v2917 = vadd.f32 %v2898, %v2916
      %2918 = vdwg.mxu0
      %v2919 = vmul.f32 %v2872, %v2821
      %v2920 = vmul.f32 %v2910, %v2822
      %v2921 = vmul.f32 %v2874, %v2821
      %v2922 = vmul.f32 %v2912, %v2822
      %v2923 = vmul.f32 %v2877, %v2821
      %v2924 = vmul.f32 %v2915, %v2822
      %v2925 = vmul.f32 %v2879, %v2821
      %v2926 = vmul.f32 %v2917, %v2822
      %v2927 = vpack.c.bf16 %v2921, %v2919
      %v2928 = vpack.c.bf16 %v2922, %v2920
      %v2929 = vpack.c.bf16 %v2925, %v2923
      %v2930 = vpack.c.bf16 %v2926, %v2924
      %s2931 = scalar_lea.vmem %s2, 4
      %v2932 = vld [vmem:[%s2931] sm:$0xf]
      %v2934 = vsel %vm919, %v2932, 0
      %2936 = vmatpush.bf16.msra.mxu0 0
      %2937 = vmatpush.bf16.msra.mxu0 0
      %2938 = vmatpush.bf16.msra.mxu0 0
      %2939 = vmatpush.bf16.msra.mxu0 0
      %2940 = vmatpush.bf16.msra.mxu0 0
      %2941 = vmatpush.bf16.msra.mxu0 0
      %2942 = vmatpush.bf16.msra.mxu0 %v2929
      %2943 = vmatpush.bf16.msra.mxu0 %v2927
      %2944 = vmatmul.bf16.gmra.mxu0 %v2934
      %v2945 = vpop.f32.mrf.mxu0
      %v2946 = vadd.f32 0.0, %v2945
      %v2947 = vpop.f32.mrf.mxu0
      %2948 = vdwg.mxu0
      %2949 = vmatpush.bf16.msra.mxu0 0
      %2950 = vmatpush.bf16.msra.mxu0 0
      %2951 = vmatpush.bf16.msra.mxu0 0
      %2952 = vmatpush.bf16.msra.mxu0 0
      %2953 = vmatpush.bf16.msra.mxu0 0
      %2954 = vmatpush.bf16.msra.mxu0 0
      %2955 = vmatpush.bf16.msra.mxu0 %v2930
      %2956 = vmatpush.bf16.msra.mxu0 %v2928
      %2957 = vmatmul.bf16.gmra.mxu0 %v2934
      %v2958 = vpop.f32.mrf.mxu0
      %v2959 = vadd.f32 0.0, %v2958
      %v2960 = vpop.f32.mrf.mxu0
      %2961 = vdwg.mxu0
      %v2963 = vsel %vm919, %v1887, 0
      %2965 = vmatpush.bf16.msra.mxu0 0
      %2966 = vmatpush.bf16.msra.mxu0 0
      %2967 = vmatpush.bf16.msra.mxu0 0
      %2968 = vmatpush.bf16.msra.mxu0 0
      %2969 = vmatpush.bf16.msra.mxu0 0
      %2970 = vmatpush.bf16.msra.mxu0 0
      %2971 = vmatpush.bf16.msra.mxu0 %v1885
      %2972 = vmatpush.bf16.msra.mxu0 %v1883
      %2973 = vmatmul.bf16.gmra.mxu0 %v2963
      %v2974 = vpop.f32.mrf.mxu0
      %v2975 = vadd.f32 %v2946, %v2974
      %v2976 = vpop.f32.mrf.mxu0
      %2977 = vdwg.mxu0
      %2978 = vmatpush.bf16.msra.mxu0 0
      %2979 = vmatpush.bf16.msra.mxu0 0
      %2980 = vmatpush.bf16.msra.mxu0 0
      %2981 = vmatpush.bf16.msra.mxu0 0
      %2982 = vmatpush.bf16.msra.mxu0 0
      %2983 = vmatpush.bf16.msra.mxu0 0
      %2984 = vmatpush.bf16.msra.mxu0 %v1886
      %2985 = vmatpush.bf16.msra.mxu0 %v1884
      %2986 = vmatmul.bf16.gmra.mxu0 %v2963
      %v2987 = vpop.f32.mrf.mxu0
      %v2988 = vadd.f32 %v2959, %v2987
      %v2989 = vpop.f32.mrf.mxu0
      %2990 = vdwg.mxu0
      %v2991 = vld [vmem:[#allocation2 + $0x40] sm:$0xff]
      %v2992 = vld [vmem:[#allocation2 + $0x48] sm:$0xff]
      %v2993 = vld [vmem:[#allocation2 + $0x50] sm:$0xff]
      %v2994 = vld [vmem:[#allocation2 + $0x58] sm:$0xff]
      %v2995 = vld [vmem:[#allocation2 + $0xc0] sm:$0xff]
      %v2996 = vld [vmem:[#allocation2 + $0xc8] sm:$0xff]
      %v2997 = vld [vmem:[#allocation2 + $0xd0] sm:$0xff]
      %v2998 = vld [vmem:[#allocation2 + $0xd8] sm:$0xff]
      %v2999 = vld [vmem:[#allocation2 + $0x140] sm:$0xff]
      %v3000 = vld [vmem:[#allocation2 + $0x148] sm:$0xff]
      %v3001 = vld [vmem:[#allocation2 + $0x150] sm:$0xff]
      %v3002 = vld [vmem:[#allocation2 + $0x158] sm:$0xff]
      %v3007 = vunpack.c.l.b16 %v2995
      %v3008 = vunpack.c.h.b16 %v2995
      %v3009 = vunpack.c.l.b16 %v2996
      %v3010 = vunpack.c.h.b16 %v2996
      %v3011 = vunpack.c.l.b16 %v2997
      %v3012 = vunpack.c.h.b16 %v2997
      %v3013 = vunpack.c.l.b16 %v2998
      %v3014 = vunpack.c.h.b16 %v2998
      %v3015 = vpack.c.b16 %v3009, %v3007
      %v3016 = vpack.c.b16 %v3010, %v3008
      %v3017 = vpack.c.b16 %v3013, %v3011
      %v3018 = vpack.c.b16 %v3014, %v3012
      %3023 = vxpose.binary.xlu0.c.b16.start [1/16] %v3016, %v3015, 128
      %3024 = vxpose.binary.xlu0.c.b16.cont [2/16] %v3018, %v3017, 128
      %3025 = vxpose.binary.xlu0.c.b16.cont [3/16] 0, 0, 128
      %3026 = vxpose.binary.xlu0.c.b16.cont [4/16] 0, 0, 128
      %3027 = vxpose.binary.xlu0.c.b16.cont [5/16] 0, 0, 128
      %3028 = vxpose.binary.xlu0.c.b16.cont [6/16] 0, 0, 128
      %3029 = vxpose.binary.xlu0.c.b16.cont [7/16] 0, 0, 128
      %3030 = vxpose.binary.xlu0.c.b16.end [8/16] 0, 0, 128
      %v3031 = vpop.trf.xlu0
      %v3032 = vpop.trf.xlu0
      %v3033 = vpop.trf.xlu0
      %v3034 = vpop.trf.xlu0
      %v3035 = vpop.trf.xlu0
      %v3036 = vpop.trf.xlu0
      %v3037 = vpop.trf.xlu0
      %v3038 = vpop.trf.xlu0
      %v3039 = vpop.trf.xlu0
      %v3040 = vpop.trf.xlu0
      %v3041 = vpop.trf.xlu0
      %v3042 = vpop.trf.xlu0
      %v3043 = vpop.trf.xlu0
      %v3044 = vpop.trf.xlu0
      %v3045 = vpop.trf.xlu0
      %v3046 = vpop.trf.xlu0
      %v3051 = vunpack.c.l.b16 %v2991
      %v3052 = vunpack.c.h.b16 %v2991
      %v3053 = vunpack.c.l.b16 %v2992
      %v3054 = vunpack.c.h.b16 %v2992
      %v3055 = vunpack.c.l.b16 %v2993
      %v3056 = vunpack.c.h.b16 %v2993
      %v3057 = vunpack.c.l.b16 %v2994
      %v3058 = vunpack.c.h.b16 %v2994
      %v3059 = vpack.c.b16 %v3053, %v3051
      %v3060 = vpack.c.b16 %v3054, %v3052
      %v3061 = vpack.c.b16 %v3057, %v3055
      %v3062 = vpack.c.b16 %v3058, %v3056
      %v3068 = vsel %vm919, %v3031, 0
      %v3071 = vsel %vm919, %v3033, 0
      %v3074 = vsel %vm919, %v3035, 0
      %v3077 = vsel %vm919, %v3037, 0
      %v3080 = vsel %vm919, %v3039, 0
      %v3083 = vsel %vm919, %v3041, 0
      %v3086 = vsel %vm919, %v3043, 0
      %v3089 = vsel %vm919, %v3045, 0
      %v3092 = vsel %vm919, %v3032, 0
      %v3095 = vsel %vm919, %v3034, 0
      %v3098 = vsel %vm919, %v3036, 0
      %v3101 = vsel %vm919, %v3038, 0
      %v3104 = vsel %vm919, %v3040, 0
      %v3107 = vsel %vm919, %v3042, 0
      %v3110 = vsel %vm919, %v3044, 0
      %v3113 = vsel %vm919, %v3046, 0
      %3115 = vmatpush.bf16.msra.mxu0 0
      %3116 = vmatpush.bf16.msra.mxu0 0
      %3117 = vmatpush.bf16.msra.mxu0 0
      %3118 = vmatpush.bf16.msra.mxu0 0
      %3119 = vmatpush.bf16.msra.mxu0 0
      %3120 = vmatpush.bf16.msra.mxu0 0
      %3121 = vmatpush.bf16.msra.mxu0 %v3061
      %3122 = vmatpush.bf16.msra.mxu0 %v3059
      %3123 = vmatmul.bf16.gmra.mxu0 %v3068
      %v3124 = vpop.f32.mrf.mxu0
      %v3125 = vadd.f32 0.0, %v3124
      %v3126 = vpop.f32.mrf.mxu0
      %v3127 = vadd.f32 0.0, %v3126
      %3128 = vmatmul.bf16.gmra.mxu0 %v3071
      %v3129 = vpop.f32.mrf.mxu0
      %v3130 = vadd.f32 0.0, %v3129
      %v3131 = vpop.f32.mrf.mxu0
      %v3132 = vadd.f32 0.0, %v3131
      %3133 = vmatmul.bf16.gmra.mxu0 %v3074
      %v3134 = vpop.f32.mrf.mxu0
      %v3135 = vadd.f32 0.0, %v3134
      %v3136 = vpop.f32.mrf.mxu0
      %v3137 = vadd.f32 0.0, %v3136
      %3138 = vmatmul.bf16.gmra.mxu0 %v3077
      %v3139 = vpop.f32.mrf.mxu0
      %v3140 = vadd.f32 0.0, %v3139
      %v3141 = vpop.f32.mrf.mxu0
      %v3142 = vadd.f32 0.0, %v3141
      %3143 = vmatmul.bf16.gmra.mxu0 %v3080
      %v3144 = vpop.f32.mrf.mxu0
      %v3145 = vadd.f32 0.0, %v3144
      %v3146 = vpop.f32.mrf.mxu0
      %v3147 = vadd.f32 0.0, %v3146
      %3148 = vmatmul.bf16.gmra.mxu0 %v3083
      %v3149 = vpop.f32.mrf.mxu0
      %v3150 = vadd.f32 0.0, %v3149
      %v3151 = vpop.f32.mrf.mxu0
      %v3152 = vadd.f32 0.0, %v3151
      %3153 = vmatmul.bf16.gmra.mxu0 %v3086
      %v3154 = vpop.f32.mrf.mxu0
      %v3155 = vadd.f32 0.0, %v3154
      %v3156 = vpop.f32.mrf.mxu0
      %v3157 = vadd.f32 0.0, %v3156
      %3158 = vmatmul.bf16.gmra.mxu0 %v3089
      %v3159 = vpop.f32.mrf.mxu0
      %v3160 = vadd.f32 0.0, %v3159
      %v3161 = vpop.f32.mrf.mxu0
      %v3162 = vadd.f32 0.0, %v3161
      %3163 = vmatmul.bf16.gmra.mxu0 %v3092
      %v3164 = vpop.f32.mrf.mxu0
      %v3165 = vadd.f32 0.0, %v3164
      %v3166 = vpop.f32.mrf.mxu0
      %v3167 = vadd.f32 0.0, %v3166
      %3168 = vmatmul.bf16.gmra.mxu0 %v3095
      %v3169 = vpop.f32.mrf.mxu0
      %v3170 = vadd.f32 0.0, %v3169
      %v3171 = vpop.f32.mrf.mxu0
      %v3172 = vadd.f32 0.0, %v3171
      %3173 = vmatmul.bf16.gmra.mxu0 %v3098
      %v3174 = vpop.f32.mrf.mxu0
      %v3175 = vadd.f32 0.0, %v3174
      %v3176 = vpop.f32.mrf.mxu0
      %v3177 = vadd.f32 0.0, %v3176
      %3178 = vmatmul.bf16.gmra.mxu0 %v3101
      %v3179 = vpop.f32.mrf.mxu0
      %v3180 = vadd.f32 0.0, %v3179
      %v3181 = vpop.f32.mrf.mxu0
      %v3182 = vadd.f32 0.0, %v3181
      %3183 = vmatmul.bf16.gmra.mxu0 %v3104
      %v3184 = vpop.f32.mrf.mxu0
      %v3185 = vadd.f32 0.0, %v3184
      %v3186 = vpop.f32.mrf.mxu0
      %v3187 = vadd.f32 0.0, %v3186
      %3188 = vmatmul.bf16.gmra.mxu0 %v3107
      %v3189 = vpop.f32.mrf.mxu0
      %v3190 = vadd.f32 0.0, %v3189
      %v3191 = vpop.f32.mrf.mxu0
      %v3192 = vadd.f32 0.0, %v3191
      %3193 = vmatmul.bf16.gmra.mxu0 %v3110
      %v3194 = vpop.f32.mrf.mxu0
      %v3195 = vadd.f32 0.0, %v3194
      %v3196 = vpop.f32.mrf.mxu0
      %v3197 = vadd.f32 0.0, %v3196
      %3198 = vmatmul.bf16.gmra.mxu0 %v3113
      %v3199 = vpop.f32.mrf.mxu0
      %v3200 = vadd.f32 0.0, %v3199
      %v3201 = vpop.f32.mrf.mxu0
      %v3202 = vadd.f32 0.0, %v3201
      %3203 = vdwg.mxu0
      %3204 = vmatpush.bf16.msra.mxu0 0
      %3205 = vmatpush.bf16.msra.mxu0 0
      %3206 = vmatpush.bf16.msra.mxu0 0
      %3207 = vmatpush.bf16.msra.mxu0 0
      %3208 = vmatpush.bf16.msra.mxu0 0
      %3209 = vmatpush.bf16.msra.mxu0 0
      %3210 = vmatpush.bf16.msra.mxu0 %v3062
      %3211 = vmatpush.bf16.msra.mxu0 %v3060
      %3212 = vmatmul.bf16.gmra.mxu0 %v3068
      %v3213 = vpop.f32.mrf.mxu0
      %v3214 = vadd.f32 0.0, %v3213
      %v3215 = vpop.f32.mrf.mxu0
      %v3216 = vadd.f32 0.0, %v3215
      %3217 = vmatmul.bf16.gmra.mxu0 %v3071
      %v3218 = vpop.f32.mrf.mxu0
      %v3219 = vadd.f32 0.0, %v3218
      %v3220 = vpop.f32.mrf.mxu0
      %v3221 = vadd.f32 0.0, %v3220
      %3222 = vmatmul.bf16.gmra.mxu0 %v3074
      %v3223 = vpop.f32.mrf.mxu0
      %v3224 = vadd.f32 0.0, %v3223
      %v3225 = vpop.f32.mrf.mxu0
      %v3226 = vadd.f32 0.0, %v3225
      %3227 = vmatmul.bf16.gmra.mxu0 %v3077
      %v3228 = vpop.f32.mrf.mxu0
      %v3229 = vadd.f32 0.0, %v3228
      %v3230 = vpop.f32.mrf.mxu0
      %v3231 = vadd.f32 0.0, %v3230
      %3232 = vmatmul.bf16.gmra.mxu0 %v3080
      %v3233 = vpop.f32.mrf.mxu0
      %v3234 = vadd.f32 0.0, %v3233
      %v3235 = vpop.f32.mrf.mxu0
      %v3236 = vadd.f32 0.0, %v3235
      %3237 = vmatmul.bf16.gmra.mxu0 %v3083
      %v3238 = vpop.f32.mrf.mxu0
      %v3239 = vadd.f32 0.0, %v3238
      %v3240 = vpop.f32.mrf.mxu0
      %v3241 = vadd.f32 0.0, %v3240
      %3242 = vmatmul.bf16.gmra.mxu0 %v3086
      %v3243 = vpop.f32.mrf.mxu0
      %v3244 = vadd.f32 0.0, %v3243
      %v3245 = vpop.f32.mrf.mxu0
      %v3246 = vadd.f32 0.0, %v3245
      %3247 = vmatmul.bf16.gmra.mxu0 %v3089
      %v3248 = vpop.f32.mrf.mxu0
      %v3249 = vadd.f32 0.0, %v3248
      %v3250 = vpop.f32.mrf.mxu0
      %v3251 = vadd.f32 0.0, %v3250
      %3252 = vmatmul.bf16.gmra.mxu0 %v3092
      %v3253 = vpop.f32.mrf.mxu0
      %v3254 = vadd.f32 0.0, %v3253
      %v3255 = vpop.f32.mrf.mxu0
      %v3256 = vadd.f32 0.0, %v3255
      %3257 = vmatmul.bf16.gmra.mxu0 %v3095
      %v3258 = vpop.f32.mrf.mxu0
      %v3259 = vadd.f32 0.0, %v3258
      %v3260 = vpop.f32.mrf.mxu0
      %v3261 = vadd.f32 0.0, %v3260
      %3262 = vmatmul.bf16.gmra.mxu0 %v3098
      %v3263 = vpop.f32.mrf.mxu0
      %v3264 = vadd.f32 0.0, %v3263
      %v3265 = vpop.f32.mrf.mxu0
      %v3266 = vadd.f32 0.0, %v3265
      %3267 = vmatmul.bf16.gmra.mxu0 %v3101
      %v3268 = vpop.f32.mrf.mxu0
      %v3269 = vadd.f32 0.0, %v3268
      %v3270 = vpop.f32.mrf.mxu0
      %v3271 = vadd.f32 0.0, %v3270
      %3272 = vmatmul.bf16.gmra.mxu0 %v3104
      %v3273 = vpop.f32.mrf.mxu0
      %v3274 = vadd.f32 0.0, %v3273
      %v3275 = vpop.f32.mrf.mxu0
      %v3276 = vadd.f32 0.0, %v3275
      %3277 = vmatmul.bf16.gmra.mxu0 %v3107
      %v3278 = vpop.f32.mrf.mxu0
      %v3279 = vadd.f32 0.0, %v3278
      %v3280 = vpop.f32.mrf.mxu0
      %v3281 = vadd.f32 0.0, %v3280
      %3282 = vmatmul.bf16.gmra.mxu0 %v3110
      %v3283 = vpop.f32.mrf.mxu0
      %v3284 = vadd.f32 0.0, %v3283
      %v3285 = vpop.f32.mrf.mxu0
      %v3286 = vadd.f32 0.0, %v3285
      %3287 = vmatmul.bf16.gmra.mxu0 %v3113
      %v3288 = vpop.f32.mrf.mxu0
      %v3289 = vadd.f32 0.0, %v3288
      %v3290 = vpop.f32.mrf.mxu0
      %v3291 = vadd.f32 0.0, %v3290
      %3292 = vdwg.mxu0
      %v3293 = vpack.c.bf16 %v3214, %v3125
      %v3294 = vpack.c.bf16 %v3216, %v3127
      %v3295 = vpack.c.bf16 %v3219, %v3130
      %v3296 = vpack.c.bf16 %v3221, %v3132
      %v3297 = vpack.c.bf16 %v3224, %v3135
      %v3298 = vpack.c.bf16 %v3226, %v3137
      %v3299 = vpack.c.bf16 %v3229, %v3140
      %v3300 = vpack.c.bf16 %v3231, %v3142
      %v3301 = vpack.c.bf16 %v3234, %v3145
      %v3302 = vpack.c.bf16 %v3236, %v3147
      %v3303 = vpack.c.bf16 %v3239, %v3150
      %v3304 = vpack.c.bf16 %v3241, %v3152
      %v3305 = vpack.c.bf16 %v3244, %v3155
      %v3306 = vpack.c.bf16 %v3246, %v3157
      %v3307 = vpack.c.bf16 %v3249, %v3160
      %v3308 = vpack.c.bf16 %v3251, %v3162
      %v3309 = vpack.c.bf16 %v3254, %v3165
      %v3310 = vpack.c.bf16 %v3256, %v3167
      %v3311 = vpack.c.bf16 %v3259, %v3170
      %v3312 = vpack.c.bf16 %v3261, %v3172
      %v3313 = vpack.c.bf16 %v3264, %v3175
      %v3314 = vpack.c.bf16 %v3266, %v3177
      %v3315 = vpack.c.bf16 %v3269, %v3180
      %v3316 = vpack.c.bf16 %v3271, %v3182
      %v3317 = vpack.c.bf16 %v3274, %v3185
      %v3318 = vpack.c.bf16 %v3276, %v3187
      %v3319 = vpack.c.bf16 %v3279, %v3190
      %v3320 = vpack.c.bf16 %v3281, %v3192
      %v3321 = vpack.c.bf16 %v3284, %v3195
      %v3322 = vpack.c.bf16 %v3286, %v3197
      %v3323 = vpack.c.bf16 %v3289, %v3200
      %v3324 = vpack.c.bf16 %v3291, %v3202
      %v3325 = vunpack.c.l.bf16 %v3293
      %v3326 = vunpack.c.h.bf16 %v3293
      %v3327 = vunpack.c.l.bf16 %v3294
      %v3328 = vunpack.c.h.bf16 %v3294
      %v3329 = vunpack.c.l.bf16 %v3295
      %v3330 = vunpack.c.h.bf16 %v3295
      %v3331 = vunpack.c.l.bf16 %v3296
      %v3332 = vunpack.c.h.bf16 %v3296
      %v3333 = vunpack.c.l.bf16 %v3297
      %v3334 = vunpack.c.h.bf16 %v3297
      %v3335 = vunpack.c.l.bf16 %v3298
      %v3336 = vunpack.c.h.bf16 %v3298
      %v3337 = vunpack.c.l.bf16 %v3299
      %v3338 = vunpack.c.h.bf16 %v3299
      %v3339 = vunpack.c.l.bf16 %v3300
      %v3340 = vunpack.c.h.bf16 %v3300
      %v3341 = vunpack.c.l.bf16 %v3301
      %v3342 = vunpack.c.h.bf16 %v3301
      %v3343 = vunpack.c.l.bf16 %v3302
      %v3344 = vunpack.c.h.bf16 %v3302
      %v3345 = vunpack.c.l.bf16 %v3303
      %v3346 = vunpack.c.h.bf16 %v3303
      %v3347 = vunpack.c.l.bf16 %v3304
      %v3348 = vunpack.c.h.bf16 %v3304
      %v3349 = vunpack.c.l.bf16 %v3305
      %v3350 = vunpack.c.h.bf16 %v3305
      %v3351 = vunpack.c.l.bf16 %v3306
      %v3352 = vunpack.c.h.bf16 %v3306
      %v3353 = vunpack.c.l.bf16 %v3307
      %v3354 = vunpack.c.h.bf16 %v3307
      %v3355 = vunpack.c.l.bf16 %v3308
      %v3356 = vunpack.c.h.bf16 %v3308
      %v3357 = vunpack.c.l.bf16 %v3309
      %v3358 = vunpack.c.h.bf16 %v3309
      %v3359 = vunpack.c.l.bf16 %v3310
      %v3360 = vunpack.c.h.bf16 %v3310
      %v3361 = vunpack.c.l.bf16 %v3311
      %v3362 = vunpack.c.h.bf16 %v3311
      %v3363 = vunpack.c.l.bf16 %v3312
      %v3364 = vunpack.c.h.bf16 %v3312
      %v3365 = vunpack.c.l.bf16 %v3313
      %v3366 = vunpack.c.h.bf16 %v3313
      %v3367 = vunpack.c.l.bf16 %v3314
      %v3368 = vunpack.c.h.bf16 %v3314
      %v3369 = vunpack.c.l.bf16 %v3315
      %v3370 = vunpack.c.h.bf16 %v3315
      %v3371 = vunpack.c.l.bf16 %v3316
      %v3372 = vunpack.c.h.bf16 %v3316
      %v3373 = vunpack.c.l.bf16 %v3317
      %v3374 = vunpack.c.h.bf16 %v3317
      %v3375 = vunpack.c.l.bf16 %v3318
      %v3376 = vunpack.c.h.bf16 %v3318
      %v3377 = vunpack.c.l.bf16 %v3319
      %v3378 = vunpack.c.h.bf16 %v3319
      %v3379 = vunpack.c.l.bf16 %v3320
      %v3380 = vunpack.c.h.bf16 %v3320
      %v3381 = vunpack.c.l.bf16 %v3321
      %v3382 = vunpack.c.h.bf16 %v3321
      %v3383 = vunpack.c.l.bf16 %v3322
      %v3384 = vunpack.c.h.bf16 %v3322
      %v3385 = vunpack.c.l.bf16 %v3323
      %v3386 = vunpack.c.h.bf16 %v3323
      %v3387 = vunpack.c.l.bf16 %v3324
      %v3388 = vunpack.c.h.bf16 %v3324
      %v3389 = vmax.f32 %v3325, %v3329
      %v3390 = vmax.f32 %v3327, %v3331
      %v3391 = vmax.f32 %v3389, %v3333
      %v3392 = vmax.f32 %v3390, %v3335
      %v3393 = vmax.f32 %v3391, %v3337
      %v3394 = vmax.f32 %v3392, %v3339
      %v3395 = vmax.f32 %v3393, %v3341
      %v3396 = vmax.f32 %v3394, %v3343
      %v3397 = vmax.f32 %v3395, %v3345
      %v3398 = vmax.f32 %v3396, %v3347
      %v3399 = vmax.f32 %v3397, %v3349
      %v3400 = vmax.f32 %v3398, %v3351
      %v3401 = vmax.f32 %v3399, %v3353
      %v3402 = vmax.f32 %v3400, %v3355
      %v3403 = vmax.f32 %v3401, %v3357
      %v3404 = vmax.f32 %v3402, %v3359
      %v3405 = vmax.f32 %v3403, %v3361
      %v3406 = vmax.f32 %v3404, %v3363
      %v3407 = vmax.f32 %v3405, %v3365
      %v3408 = vmax.f32 %v3406, %v3367
      %v3409 = vmax.f32 %v3407, %v3369
      %v3410 = vmax.f32 %v3408, %v3371
      %v3411 = vmax.f32 %v3409, %v3373
      %v3412 = vmax.f32 %v3410, %v3375
      %v3413 = vmax.f32 %v3411, %v3377
      %v3414 = vmax.f32 %v3412, %v3379
      %v3415 = vmax.f32 %v3413, %v3381
      %v3416 = vmax.f32 %v3414, %v3383
      %v3417 = vmax.f32 %v3415, %v3385
      %v3418 = vmax.f32 %v3416, %v3387
      %v3419 = vmax.f32 %v3417, %v3418
      %v3420 = vrot.slane %v3419, 4
      %v3421 = vmax.f32 %v3419, %v3420
      %v3422 = vrot.slane %v3421, 2
      %v3423 = vmax.f32 %v3421, %v3422
      %v3424 = vrot.slane %v3423, 1
      %v3425 = vmax.f32 %v3423, %v3424
      %v3426 = vmax.f32 %v3326, %v3330
      %v3427 = vmax.f32 %v3328, %v3332
      %v3428 = vmax.f32 %v3426, %v3334
      %v3429 = vmax.f32 %v3427, %v3336
      %v3430 = vmax.f32 %v3428, %v3338
      %v3431 = vmax.f32 %v3429, %v3340
      %v3432 = vmax.f32 %v3430, %v3342
      %v3433 = vmax.f32 %v3431, %v3344
      %v3434 = vmax.f32 %v3432, %v3346
      %v3435 = vmax.f32 %v3433, %v3348
      %v3436 = vmax.f32 %v3434, %v3350
      %v3437 = vmax.f32 %v3435, %v3352
      %v3438 = vmax.f32 %v3436, %v3354
      %v3439 = vmax.f32 %v3437, %v3356
      %v3440 = vmax.f32 %v3438, %v3358
      %v3441 = vmax.f32 %v3439, %v3360
      %v3442 = vmax.f32 %v3440, %v3362
      %v3443 = vmax.f32 %v3441, %v3364
      %v3444 = vmax.f32 %v3442, %v3366
      %v3445 = vmax.f32 %v3443, %v3368
      %v3446 = vmax.f32 %v3444, %v3370
      %v3447 = vmax.f32 %v3445, %v3372
      %v3448 = vmax.f32 %v3446, %v3374
      %v3449 = vmax.f32 %v3447, %v3376
      %v3450 = vmax.f32 %v3448, %v3378
      %v3451 = vmax.f32 %v3449, %v3380
      %v3452 = vmax.f32 %v3450, %v3382
      %v3453 = vmax.f32 %v3451, %v3384
      %v3454 = vmax.f32 %v3452, %v3386
      %v3455 = vmax.f32 %v3453, %v3388
      %v3456 = vmax.f32 %v3454, %v3455
      %v3457 = vrot.slane %v3456, 4
      %v3458 = vmax.f32 %v3456, %v3457
      %v3459 = vrot.slane %v3458, 2
      %v3460 = vmax.f32 %v3458, %v3459
      %v3461 = vrot.slane %v3460, 1
      %v3462 = vmax.f32 %v3460, %v3461
      %v3463 = vpack.c.bf16 %v3462, %v3425
      %v3464 = vunpack.c.l.bf16 %v3463
      %v3465 = vunpack.c.h.bf16 %v3463
      %v3466 = vsub.f32 %v3325, %v3464
      %v3467 = vsub.f32 %v3326, %v3465
      %v3468 = vsub.f32 %v3327, %v3464
      %v3469 = vsub.f32 %v3328, %v3465
      %v3470 = vsub.f32 %v3329, %v3464
      %v3471 = vsub.f32 %v3330, %v3465
      %v3472 = vsub.f32 %v3331, %v3464
      %v3473 = vsub.f32 %v3332, %v3465
      %v3474 = vsub.f32 %v3333, %v3464
      %v3475 = vsub.f32 %v3334, %v3465
      %v3476 = vsub.f32 %v3335, %v3464
      %v3477 = vsub.f32 %v3336, %v3465
      %v3478 = vsub.f32 %v3337, %v3464
      %v3479 = vsub.f32 %v3338, %v3465
      %v3480 = vsub.f32 %v3339, %v3464
      %v3481 = vsub.f32 %v3340, %v3465
      %v3482 = vsub.f32 %v3341, %v3464
      %v3483 = vsub.f32 %v3342, %v3465
      %v3484 = vsub.f32 %v3343, %v3464
      %v3485 = vsub.f32 %v3344, %v3465
      %v3486 = vsub.f32 %v3345, %v3464
      %v3487 = vsub.f32 %v3346, %v3465
      %v3488 = vsub.f32 %v3347, %v3464
      %v3489 = vsub.f32 %v3348, %v3465
      %v3490 = vsub.f32 %v3349, %v3464
      %v3491 = vsub.f32 %v3350, %v3465
      %v3492 = vsub.f32 %v3351, %v3464
      %v3493 = vsub.f32 %v3352, %v3465
      %v3494 = vsub.f32 %v3353, %v3464
      %v3495 = vsub.f32 %v3354, %v3465
      %v3496 = vsub.f32 %v3355, %v3464
      %v3497 = vsub.f32 %v3356, %v3465
      %v3498 = vsub.f32 %v3357, %v3464
      %v3499 = vsub.f32 %v3358, %v3465
      %v3500 = vsub.f32 %v3359, %v3464
      %v3501 = vsub.f32 %v3360, %v3465
      %v3502 = vsub.f32 %v3361, %v3464
      %v3503 = vsub.f32 %v3362, %v3465
      %v3504 = vsub.f32 %v3363, %v3464
      %v3505 = vsub.f32 %v3364, %v3465
      %v3506 = vsub.f32 %v3365, %v3464
      %v3507 = vsub.f32 %v3366, %v3465
      %v3508 = vsub.f32 %v3367, %v3464
      %v3509 = vsub.f32 %v3368, %v3465
      %v3510 = vsub.f32 %v3369, %v3464
      %v3511 = vsub.f32 %v3370, %v3465
      %v3512 = vsub.f32 %v3371, %v3464
      %v3513 = vsub.f32 %v3372, %v3465
      %v3514 = vsub.f32 %v3373, %v3464
      %v3515 = vsub.f32 %v3374, %v3465
      %v3516 = vsub.f32 %v3375, %v3464
      %v3517 = vsub.f32 %v3376, %v3465
      %v3518 = vsub.f32 %v3377, %v3464
      %v3519 = vsub.f32 %v3378, %v3465
      %v3520 = vsub.f32 %v3379, %v3464
      %v3521 = vsub.f32 %v3380, %v3465
      %v3522 = vsub.f32 %v3381, %v3464
      %v3523 = vsub.f32 %v3382, %v3465
      %v3524 = vsub.f32 %v3383, %v3464
      %v3525 = vsub.f32 %v3384, %v3465
      %v3526 = vsub.f32 %v3385, %v3464
      %v3527 = vsub.f32 %v3386, %v3465
      %v3528 = vsub.f32 %v3387, %v3464
      %v3529 = vsub.f32 %v3388, %v3465
      %v3530 = vpack.c.bf16 %v3468, %v3466
      %v3531 = vpack.c.bf16 %v3469, %v3467
      %v3532 = vpack.c.bf16 %v3472, %v3470
      %v3533 = vpack.c.bf16 %v3473, %v3471
      %v3534 = vpack.c.bf16 %v3476, %v3474
      %v3535 = vpack.c.bf16 %v3477, %v3475
      %v3536 = vpack.c.bf16 %v3480, %v3478
      %v3537 = vpack.c.bf16 %v3481, %v3479
      %v3538 = vpack.c.bf16 %v3484, %v3482
      %v3539 = vpack.c.bf16 %v3485, %v3483
      %v3540 = vpack.c.bf16 %v3488, %v3486
      %v3541 = vpack.c.bf16 %v3489, %v3487
      %v3542 = vpack.c.bf16 %v3492, %v3490
      %v3543 = vpack.c.bf16 %v3493, %v3491
      %v3544 = vpack.c.bf16 %v3496, %v3494
      %v3545 = vpack.c.bf16 %v3497, %v3495
      %v3546 = vpack.c.bf16 %v3500, %v3498
      %v3547 = vpack.c.bf16 %v3501, %v3499
      %v3548 = vpack.c.bf16 %v3504, %v3502
      %v3549 = vpack.c.bf16 %v3505, %v3503
      %v3550 = vpack.c.bf16 %v3508, %v3506
      %v3551 = vpack.c.bf16 %v3509, %v3507
      %v3552 = vpack.c.bf16 %v3512, %v3510
      %v3553 = vpack.c.bf16 %v3513, %v3511
      %v3554 = vpack.c.bf16 %v3516, %v3514
      %v3555 = vpack.c.bf16 %v3517, %v3515
      %v3556 = vpack.c.bf16 %v3520, %v3518
      %v3557 = vpack.c.bf16 %v3521, %v3519
      %v3558 = vpack.c.bf16 %v3524, %v3522
      %v3559 = vpack.c.bf16 %v3525, %v3523
      %v3560 = vpack.c.bf16 %v3528, %v3526
      %v3561 = vpack.c.bf16 %v3529, %v3527
      %v3562 = vunpack.c.l.bf16 %v3530
      %v3563 = vunpack.c.l.bf16 %v3531
      %v3564 = vunpack.c.h.bf16 %v3530
      %v3565 = vunpack.c.h.bf16 %v3531
      %v3566 = vunpack.c.l.bf16 %v3532
      %v3567 = vunpack.c.l.bf16 %v3533
      %v3568 = vunpack.c.h.bf16 %v3532
      %v3569 = vunpack.c.h.bf16 %v3533
      %v3570 = vunpack.c.l.bf16 %v3534
      %v3571 = vunpack.c.l.bf16 %v3535
      %v3572 = vunpack.c.h.bf16 %v3534
      %v3573 = vunpack.c.h.bf16 %v3535
      %v3574 = vunpack.c.l.bf16 %v3536
      %v3575 = vunpack.c.l.bf16 %v3537
      %v3576 = vunpack.c.h.bf16 %v3536
      %v3577 = vunpack.c.h.bf16 %v3537
      %v3578 = vunpack.c.l.bf16 %v3538
      %v3579 = vunpack.c.l.bf16 %v3539
      %v3580 = vunpack.c.h.bf16 %v3538
      %v3581 = vunpack.c.h.bf16 %v3539
      %v3582 = vunpack.c.l.bf16 %v3540
      %v3583 = vunpack.c.l.bf16 %v3541
      %v3584 = vunpack.c.h.bf16 %v3540
      %v3585 = vunpack.c.h.bf16 %v3541
      %v3586 = vunpack.c.l.bf16 %v3542
      %v3587 = vunpack.c.l.bf16 %v3543
      %v3588 = vunpack.c.h.bf16 %v3542
      %v3589 = vunpack.c.h.bf16 %v3543
      %v3590 = vunpack.c.l.bf16 %v3544
      %v3591 = vunpack.c.l.bf16 %v3545
      %v3592 = vunpack.c.h.bf16 %v3544
      %v3593 = vunpack.c.h.bf16 %v3545
      %v3594 = vunpack.c.l.bf16 %v3546
      %v3595 = vunpack.c.l.bf16 %v3547
      %v3596 = vunpack.c.h.bf16 %v3546
      %v3597 = vunpack.c.h.bf16 %v3547
      %v3598 = vunpack.c.l.bf16 %v3548
      %v3599 = vunpack.c.l.bf16 %v3549
      %v3600 = vunpack.c.h.bf16 %v3548
      %v3601 = vunpack.c.h.bf16 %v3549
      %v3602 = vunpack.c.l.bf16 %v3550
      %v3603 = vunpack.c.l.bf16 %v3551
      %v3604 = vunpack.c.h.bf16 %v3550
      %v3605 = vunpack.c.h.bf16 %v3551
      %v3606 = vunpack.c.l.bf16 %v3552
      %v3607 = vunpack.c.l.bf16 %v3553
      %v3608 = vunpack.c.h.bf16 %v3552
      %v3609 = vunpack.c.h.bf16 %v3553
      %v3610 = vunpack.c.l.bf16 %v3554
      %v3611 = vunpack.c.l.bf16 %v3555
      %v3612 = vunpack.c.h.bf16 %v3554
      %v3613 = vunpack.c.h.bf16 %v3555
      %v3614 = vunpack.c.l.bf16 %v3556
      %v3615 = vunpack.c.l.bf16 %v3557
      %v3616 = vunpack.c.h.bf16 %v3556
      %v3617 = vunpack.c.h.bf16 %v3557
      %v3618 = vunpack.c.l.bf16 %v3558
      %v3619 = vunpack.c.l.bf16 %v3559
      %v3620 = vunpack.c.h.bf16 %v3558
      %v3621 = vunpack.c.h.bf16 %v3559
      %v3622 = vunpack.c.l.bf16 %v3560
      %v3623 = vunpack.c.l.bf16 %v3561
      %v3624 = vunpack.c.h.bf16 %v3560
      %v3625 = vunpack.c.h.bf16 %v3561
      %v3626 = vmul.f32 %v3562, 1.442695
      %v3627 = vpow.pop %v3626
      %v3628 = vmul.f32 %v3563, 1.442695
      %v3629 = vpow.pop %v3628
      %v3630 = vmul.f32 %v3564, 1.442695
      %v3631 = vpow.pop %v3630
      %v3632 = vmul.f32 %v3565, 1.442695
      %v3633 = vpow.pop %v3632
      %v3634 = vmul.f32 %v3566, 1.442695
      %v3635 = vpow.pop %v3634
      %v3636 = vmul.f32 %v3567, 1.442695
      %v3637 = vpow.pop %v3636
      %v3638 = vmul.f32 %v3568, 1.442695
      %v3639 = vpow.pop %v3638
      %v3640 = vmul.f32 %v3569, 1.442695
      %v3641 = vpow.pop %v3640
      %v3642 = vmul.f32 %v3570, 1.442695
      %v3643 = vpow.pop %v3642
      %v3644 = vmul.f32 %v3571, 1.442695
      %v3645 = vpow.pop %v3644
      %v3646 = vmul.f32 %v3572, 1.442695
      %v3647 = vpow.pop %v3646
      %v3648 = vmul.f32 %v3573, 1.442695
      %v3649 = vpow.pop %v3648
      %v3650 = vmul.f32 %v3574, 1.442695
      %v3651 = vpow.pop %v3650
      %v3652 = vmul.f32 %v3575, 1.442695
      %v3653 = vpow.pop %v3652
      %v3654 = vmul.f32 %v3576, 1.442695
      %v3655 = vpow.pop %v3654
      %v3656 = vmul.f32 %v3577, 1.442695
      %v3657 = vpow.pop %v3656
      %v3658 = vmul.f32 %v3578, 1.442695
      %v3659 = vpow.pop %v3658
      %v3660 = vmul.f32 %v3579, 1.442695
      %v3661 = vpow.pop %v3660
      %v3662 = vmul.f32 %v3580, 1.442695
      %v3663 = vpow.pop %v3662
      %v3664 = vmul.f32 %v3581, 1.442695
      %v3665 = vpow.pop %v3664
      %v3666 = vmul.f32 %v3582, 1.442695
      %v3667 = vpow.pop %v3666
      %v3668 = vmul.f32 %v3583, 1.442695
      %v3669 = vpow.pop %v3668
      %v3670 = vmul.f32 %v3584, 1.442695
      %v3671 = vpow.pop %v3670
      %v3672 = vmul.f32 %v3585, 1.442695
      %v3673 = vpow.pop %v3672
      %v3674 = vmul.f32 %v3586, 1.442695
      %v3675 = vpow.pop %v3674
      %v3676 = vmul.f32 %v3587, 1.442695
      %v3677 = vpow.pop %v3676
      %v3678 = vmul.f32 %v3588, 1.442695
      %v3679 = vpow.pop %v3678
      %v3680 = vmul.f32 %v3589, 1.442695
      %v3681 = vpow.pop %v3680
      %v3682 = vmul.f32 %v3590, 1.442695
      %v3683 = vpow.pop %v3682
      %v3684 = vmul.f32 %v3591, 1.442695
      %v3685 = vpow.pop %v3684
      %v3686 = vmul.f32 %v3592, 1.442695
      %v3687 = vpow.pop %v3686
      %v3688 = vmul.f32 %v3593, 1.442695
      %v3689 = vpow.pop %v3688
      %v3690 = vmul.f32 %v3594, 1.442695
      %v3691 = vpow.pop %v3690
      %v3692 = vmul.f32 %v3595, 1.442695
      %v3693 = vpow.pop %v3692
      %v3694 = vmul.f32 %v3596, 1.442695
      %v3695 = vpow.pop %v3694
      %v3696 = vmul.f32 %v3597, 1.442695
      %v3697 = vpow.pop %v3696
      %v3698 = vmul.f32 %v3598, 1.442695
      %v3699 = vpow.pop %v3698
      %v3700 = vmul.f32 %v3599, 1.442695
      %v3701 = vpow.pop %v3700
      %v3702 = vmul.f32 %v3600, 1.442695
      %v3703 = vpow.pop %v3702
      %v3704 = vmul.f32 %v3601, 1.442695
      %v3705 = vpow.pop %v3704
      %v3706 = vmul.f32 %v3602, 1.442695
      %v3707 = vpow.pop %v3706
      %v3708 = vmul.f32 %v3603, 1.442695
      %v3709 = vpow.pop %v3708
      %v3710 = vmul.f32 %v3604, 1.442695
      %v3711 = vpow.pop %v3710
      %v3712 = vmul.f32 %v3605, 1.442695
      %v3713 = vpow.pop %v3712
      %v3714 = vmul.f32 %v3606, 1.442695
      %v3715 = vpow.pop %v3714
      %v3716 = vmul.f32 %v3607, 1.442695
      %v3717 = vpow.pop %v3716
      %v3718 = vmul.f32 %v3608, 1.442695
      %v3719 = vpow.pop %v3718
      %v3720 = vmul.f32 %v3609, 1.442695
      %v3721 = vpow.pop %v3720
      %v3722 = vmul.f32 %v3610, 1.442695
      %v3723 = vpow.pop %v3722
      %v3724 = vmul.f32 %v3611, 1.442695
      %v3725 = vpow.pop %v3724
      %v3726 = vmul.f32 %v3612, 1.442695
      %v3727 = vpow.pop %v3726
      %v3728 = vmul.f32 %v3613, 1.442695
      %v3729 = vpow.pop %v3728
      %v3730 = vmul.f32 %v3614, 1.442695
      %v3731 = vpow.pop %v3730
      %v3732 = vmul.f32 %v3615, 1.442695
      %v3733 = vpow.pop %v3732
      %v3734 = vmul.f32 %v3616, 1.442695
      %v3735 = vpow.pop %v3734
      %v3736 = vmul.f32 %v3617, 1.442695
      %v3737 = vpow.pop %v3736
      %v3738 = vmul.f32 %v3618, 1.442695
      %v3739 = vpow.pop %v3738
      %v3740 = vmul.f32 %v3619, 1.442695
      %v3741 = vpow.pop %v3740
      %v3742 = vmul.f32 %v3620, 1.442695
      %v3743 = vpow.pop %v3742
      %v3744 = vmul.f32 %v3621, 1.442695
      %v3745 = vpow.pop %v3744
      %v3746 = vmul.f32 %v3622, 1.442695
      %v3747 = vpow.pop %v3746
      %v3748 = vmul.f32 %v3623, 1.442695
      %v3749 = vpow.pop %v3748
      %v3750 = vmul.f32 %v3624, 1.442695
      %v3751 = vpow.pop %v3750
      %v3752 = vmul.f32 %v3625, 1.442695
      %v3753 = vpow.pop %v3752
      %v3754 = vpack.c.bf16 %v3631, %v3627
      %v3755 = vpack.c.bf16 %v3633, %v3629
      %v3756 = vpack.c.bf16 %v3639, %v3635
      %v3757 = vpack.c.bf16 %v3641, %v3637
      %v3758 = vpack.c.bf16 %v3647, %v3643
      %v3759 = vpack.c.bf16 %v3649, %v3645
      %v3760 = vpack.c.bf16 %v3655, %v3651
      %v3761 = vpack.c.bf16 %v3657, %v3653
      %v3762 = vpack.c.bf16 %v3663, %v3659
      %v3763 = vpack.c.bf16 %v3665, %v3661
      %v3764 = vpack.c.bf16 %v3671, %v3667
      %v3765 = vpack.c.bf16 %v3673, %v3669
      %v3766 = vpack.c.bf16 %v3679, %v3675
      %v3767 = vpack.c.bf16 %v3681, %v3677
      %v3768 = vpack.c.bf16 %v3687, %v3683
      %v3769 = vpack.c.bf16 %v3689, %v3685
      %v3770 = vpack.c.bf16 %v3695, %v3691
      %v3771 = vpack.c.bf16 %v3697, %v3693
      %v3772 = vpack.c.bf16 %v3703, %v3699
      %v3773 = vpack.c.bf16 %v3705, %v3701
      %v3774 = vpack.c.bf16 %v3711, %v3707
      %v3775 = vpack.c.bf16 %v3713, %v3709
      %v3776 = vpack.c.bf16 %v3719, %v3715
      %v3777 = vpack.c.bf16 %v3721, %v3717
      %v3778 = vpack.c.bf16 %v3727, %v3723
      %v3779 = vpack.c.bf16 %v3729, %v3725
      %v3780 = vpack.c.bf16 %v3735, %v3731
      %v3781 = vpack.c.bf16 %v3737, %v3733
      %v3782 = vpack.c.bf16 %v3743, %v3739
      %v3783 = vpack.c.bf16 %v3745, %v3741
      %v3784 = vpack.c.bf16 %v3751, %v3747
      %v3785 = vpack.c.bf16 %v3753, %v3749
      %v3786 = vunpack.c.l.bf16 %v3754
      %v3787 = vunpack.c.l.bf16 %v3755
      %v3788 = vunpack.c.h.bf16 %v3754
      %v3789 = vunpack.c.h.bf16 %v3755
      %v3790 = vunpack.c.l.bf16 %v3756
      %v3791 = vunpack.c.l.bf16 %v3757
      %v3792 = vunpack.c.h.bf16 %v3756
      %v3793 = vunpack.c.h.bf16 %v3757
      %v3794 = vunpack.c.l.bf16 %v3758
      %v3795 = vunpack.c.l.bf16 %v3759
      %v3796 = vunpack.c.h.bf16 %v3758
      %v3797 = vunpack.c.h.bf16 %v3759
      %v3798 = vunpack.c.l.bf16 %v3760
      %v3799 = vunpack.c.l.bf16 %v3761
      %v3800 = vunpack.c.h.bf16 %v3760
      %v3801 = vunpack.c.h.bf16 %v3761
      %v3802 = vunpack.c.l.bf16 %v3762
      %v3803 = vunpack.c.l.bf16 %v3763
      %v3804 = vunpack.c.h.bf16 %v3762
      %v3805 = vunpack.c.h.bf16 %v3763
      %v3806 = vunpack.c.l.bf16 %v3764
      %v3807 = vunpack.c.l.bf16 %v3765
      %v3808 = vunpack.c.h.bf16 %v3764
      %v3809 = vunpack.c.h.bf16 %v3765
      %v3810 = vunpack.c.l.bf16 %v3766
      %v3811 = vunpack.c.l.bf16 %v3767
      %v3812 = vunpack.c.h.bf16 %v3766
      %v3813 = vunpack.c.h.bf16 %v3767
      %v3814 = vunpack.c.l.bf16 %v3768
      %v3815 = vunpack.c.l.bf16 %v3769
      %v3816 = vunpack.c.h.bf16 %v3768
      %v3817 = vunpack.c.h.bf16 %v3769
      %v3818 = vunpack.c.l.bf16 %v3770
      %v3819 = vunpack.c.l.bf16 %v3771
      %v3820 = vunpack.c.h.bf16 %v3770
      %v3821 = vunpack.c.h.bf16 %v3771
      %v3822 = vunpack.c.l.bf16 %v3772
      %v3823 = vunpack.c.l.bf16 %v3773
      %v3824 = vunpack.c.h.bf16 %v3772
      %v3825 = vunpack.c.h.bf16 %v3773
      %v3826 = vunpack.c.l.bf16 %v3774
      %v3827 = vunpack.c.l.bf16 %v3775
      %v3828 = vunpack.c.h.bf16 %v3774
      %v3829 = vunpack.c.h.bf16 %v3775
      %v3830 = vunpack.c.l.bf16 %v3776
      %v3831 = vunpack.c.l.bf16 %v3777
      %v3832 = vunpack.c.h.bf16 %v3776
      %v3833 = vunpack.c.h.bf16 %v3777
      %v3834 = vunpack.c.l.bf16 %v3778
      %v3835 = vunpack.c.l.bf16 %v3779
      %v3836 = vunpack.c.h.bf16 %v3778
      %v3837 = vunpack.c.h.bf16 %v3779
      %v3838 = vunpack.c.l.bf16 %v3780
      %v3839 = vunpack.c.l.bf16 %v3781
      %v3840 = vunpack.c.h.bf16 %v3780
      %v3841 = vunpack.c.h.bf16 %v3781
      %v3842 = vunpack.c.l.bf16 %v3782
      %v3843 = vunpack.c.l.bf16 %v3783
      %v3844 = vunpack.c.h.bf16 %v3782
      %v3845 = vunpack.c.h.bf16 %v3783
      %v3846 = vunpack.c.l.bf16 %v3784
      %v3847 = vunpack.c.l.bf16 %v3785
      %v3848 = vunpack.c.h.bf16 %v3784
      %v3849 = vunpack.c.h.bf16 %v3785
      %v3850 = vadd.f32 %v3786, %v3788
      %v3851 = vadd.f32 %v3850, %v3790
      %v3852 = vadd.f32 %v3851, %v3792
      %v3853 = vadd.f32 %v3852, %v3794
      %v3854 = vadd.f32 %v3853, %v3796
      %v3855 = vadd.f32 %v3854, %v3798
      %v3856 = vadd.f32 %v3855, %v3800
      %v3857 = vadd.f32 %v3856, %v3802
      %v3858 = vadd.f32 %v3857, %v3804
      %v3859 = vadd.f32 %v3858, %v3806
      %v3860 = vadd.f32 %v3859, %v3808
      %v3861 = vadd.f32 %v3860, %v3810
      %v3862 = vadd.f32 %v3861, %v3812
      %v3863 = vadd.f32 %v3862, %v3814
      %v3864 = vadd.f32 %v3863, %v3816
      %v3865 = vadd.f32 %v3864, %v3818
      %v3866 = vadd.f32 %v3865, %v3820
      %v3867 = vadd.f32 %v3866, %v3822
      %v3868 = vadd.f32 %v3867, %v3824
      %v3869 = vadd.f32 %v3868, %v3826
      %v3870 = vadd.f32 %v3869, %v3828
      %v3871 = vadd.f32 %v3870, %v3830
      %v3872 = vadd.f32 %v3871, %v3832
      %v3873 = vadd.f32 %v3872, %v3834
      %v3874 = vadd.f32 %v3873, %v3836
      %v3875 = vadd.f32 %v3874, %v3838
      %v3876 = vadd.f32 %v3875, %v3840
      %v3877 = vadd.f32 %v3876, %v3842
      %v3878 = vadd.f32 %v3877, %v3844
      %v3879 = vadd.f32 %v3878, %v3846
      %v3880 = vadd.f32 %v3879, %v3848
      %v3881 = vrot.slane %v3880, 4
      %v3882 = vadd.f32 %v3880, %v3881
      %v3883 = vrot.slane %v3882, 2
      %v3884 = vadd.f32 %v3882, %v3883
      %v3885 = vrot.slane %v3884, 1
      %v3886 = vadd.f32 %v3884, %v3885
      %v3887 = vadd.f32 %v3787, %v3789
      %v3888 = vadd.f32 %v3887, %v3791
      %v3889 = vadd.f32 %v3888, %v3793
      %v3890 = vadd.f32 %v3889, %v3795
      %v3891 = vadd.f32 %v3890, %v3797
      %v3892 = vadd.f32 %v3891, %v3799
      %v3893 = vadd.f32 %v3892, %v3801
      %v3894 = vadd.f32 %v3893, %v3803
      %v3895 = vadd.f32 %v3894, %v3805
      %v3896 = vadd.f32 %v3895, %v3807
      %v3897 = vadd.f32 %v3896, %v3809
      %v3898 = vadd.f32 %v3897, %v3811
      %v3899 = vadd.f32 %v3898, %v3813
      %v3900 = vadd.f32 %v3899, %v3815
      %v3901 = vadd.f32 %v3900, %v3817
      %v3902 = vadd.f32 %v3901, %v3819
      %v3903 = vadd.f32 %v3902, %v3821
      %v3904 = vadd.f32 %v3903, %v3823
      %v3905 = vadd.f32 %v3904, %v3825
      %v3906 = vadd.f32 %v3905, %v3827
      %v3907 = vadd.f32 %v3906, %v3829
      %v3908 = vadd.f32 %v3907, %v3831
      %v3909 = vadd.f32 %v3908, %v3833
      %v3910 = vadd.f32 %v3909, %v3835
      %v3911 = vadd.f32 %v3910, %v3837
      %v3912 = vadd.f32 %v3911, %v3839
      %v3913 = vadd.f32 %v3912, %v3841
      %v3914 = vadd.f32 %v3913, %v3843
      %v3915 = vadd.f32 %v3914, %v3845
      %v3916 = vadd.f32 %v3915, %v3847
      %v3917 = vadd.f32 %v3916, %v3849
      %v3918 = vrot.slane %v3917, 4
      %v3919 = vadd.f32 %v3917, %v3918
      %v3920 = vrot.slane %v3919, 2
      %v3921 = vadd.f32 %v3919, %v3920
      %v3922 = vrot.slane %v3921, 1
      %v3923 = vadd.f32 %v3921, %v3922
      %v3924 = vrcp.pop %v3886
      %v3925 = vrcp.pop %v3923
      %v3930 = vunpack.c.l.b16 %v2999
      %v3931 = vunpack.c.h.b16 %v2999
      %v3932 = vunpack.c.l.b16 %v3000
      %v3933 = vunpack.c.h.b16 %v3000
      %v3934 = vunpack.c.l.b16 %v3001
      %v3935 = vunpack.c.h.b16 %v3001
      %v3936 = vunpack.c.l.b16 %v3002
      %v3937 = vunpack.c.h.b16 %v3002
      %v3938 = vpack.c.b16 %v3932, %v3930
      %v3939 = vpack.c.b16 %v3933, %v3931
      %v3940 = vpack.c.b16 %v3936, %v3934
      %v3941 = vpack.c.b16 %v3937, %v3935
      %3946 = vmatpush.bf16.msra.mxu0 %v3768
      %3947 = vmatpush.bf16.msra.mxu0 %v3766
      %3948 = vmatpush.bf16.msra.mxu0 %v3764
      %3949 = vmatpush.bf16.msra.mxu0 %v3762
      %3950 = vmatpush.bf16.msra.mxu0 %v3760
      %3951 = vmatpush.bf16.msra.mxu0 %v3758
      %3952 = vmatpush.bf16.msra.mxu0 %v3756
      %3953 = vmatpush.bf16.msra.mxu0 %v3754
      %3954 = vmatmul.bf16.gmra.mxu0 %v3938
      %v3955 = vpop.f32.mrf.mxu0
      %v3956 = vadd.f32 0.0, %v3955
      %v3957 = vpop.f32.mrf.mxu0
      %v3958 = vadd.f32 0.0, %v3957
      %3959 = vmatmul.bf16.gmra.mxu0 %v3940
      %v3960 = vpop.f32.mrf.mxu0
      %v3961 = vadd.f32 0.0, %v3960
      %v3962 = vpop.f32.mrf.mxu0
      %v3963 = vadd.f32 0.0, %v3962
      %3964 = vdwg.mxu0
      %3965 = vmatpush.bf16.msra.mxu0 %v3784
      %3966 = vmatpush.bf16.msra.mxu0 %v3782
      %3967 = vmatpush.bf16.msra.mxu0 %v3780
      %3968 = vmatpush.bf16.msra.mxu0 %v3778
      %3969 = vmatpush.bf16.msra.mxu0 %v3776
      %3970 = vmatpush.bf16.msra.mxu0 %v3774
      %3971 = vmatpush.bf16.msra.mxu0 %v3772
      %3972 = vmatpush.bf16.msra.mxu0 %v3770
      %3973 = vmatmul.bf16.gmra.mxu0 %v3939
      %v3974 = vpop.f32.mrf.mxu0
      %v3975 = vadd.f32 %v3956, %v3974
      %v3976 = vpop.f32.mrf.mxu0
      %v3977 = vadd.f32 %v3958, %v3976
      %3978 = vmatmul.bf16.gmra.mxu0 %v3941
      %v3979 = vpop.f32.mrf.mxu0
      %v3980 = vadd.f32 %v3961, %v3979
      %v3981 = vpop.f32.mrf.mxu0
      %v3982 = vadd.f32 %v3963, %v3981
      %3983 = vdwg.mxu0
      %3984 = vmatpush.bf16.msra.mxu0 %v3769
      %3985 = vmatpush.bf16.msra.mxu0 %v3767
      %3986 = vmatpush.bf16.msra.mxu0 %v3765
      %3987 = vmatpush.bf16.msra.mxu0 %v3763
      %3988 = vmatpush.bf16.msra.mxu0 %v3761
      %3989 = vmatpush.bf16.msra.mxu0 %v3759
      %3990 = vmatpush.bf16.msra.mxu0 %v3757
      %3991 = vmatpush.bf16.msra.mxu0 %v3755
      %3992 = vmatmul.bf16.gmra.mxu0 %v3938
      %v3993 = vpop.f32.mrf.mxu0
      %v3994 = vadd.f32 0.0, %v3993
      %v3995 = vpop.f32.mrf.mxu0
      %v3996 = vadd.f32 0.0, %v3995
      %3997 = vmatmul.bf16.gmra.mxu0 %v3940
      %v3998 = vpop.f32.mrf.mxu0
      %v3999 = vadd.f32 0.0, %v3998
      %v4000 = vpop.f32.mrf.mxu0
      %v4001 = vadd.f32 0.0, %v4000
      %4002 = vdwg.mxu0
      %4003 = vmatpush.bf16.msra.mxu0 %v3785
      %4004 = vmatpush.bf16.msra.mxu0 %v3783
      %4005 = vmatpush.bf16.msra.mxu0 %v3781
      %4006 = vmatpush.bf16.msra.mxu0 %v3779
      %4007 = vmatpush.bf16.msra.mxu0 %v3777
      %4008 = vmatpush.bf16.msra.mxu0 %v3775
      %4009 = vmatpush.bf16.msra.mxu0 %v3773
      %4010 = vmatpush.bf16.msra.mxu0 %v3771
      %4011 = vmatmul.bf16.gmra.mxu0 %v3939
      %v4012 = vpop.f32.mrf.mxu0
      %v4013 = vadd.f32 %v3994, %v4012
      %v4014 = vpop.f32.mrf.mxu0
      %v4015 = vadd.f32 %v3996, %v4014
      %4016 = vmatmul.bf16.gmra.mxu0 %v3941
      %v4017 = vpop.f32.mrf.mxu0
      %v4018 = vadd.f32 %v3999, %v4017
      %v4019 = vpop.f32.mrf.mxu0
      %v4020 = vadd.f32 %v4001, %v4019
      %4021 = vdwg.mxu0
      %v4022 = vmul.f32 %v3975, %v3924
      %v4023 = vmul.f32 %v4013, %v3925
      %v4024 = vmul.f32 %v3977, %v3924
      %v4025 = vmul.f32 %v4015, %v3925
      %v4026 = vmul.f32 %v3980, %v3924
      %v4027 = vmul.f32 %v4018, %v3925
      %v4028 = vmul.f32 %v3982, %v3924
      %v4029 = vmul.f32 %v4020, %v3925
      %v4030 = vpack.c.bf16 %v4024, %v4022
      %v4031 = vpack.c.bf16 %v4025, %v4023
      %v4032 = vpack.c.bf16 %v4028, %v4026
      %v4033 = vpack.c.bf16 %v4029, %v4027
      %s4034 = scalar_lea.vmem %s2, 8
      %v4035 = vld [vmem:[%s4034] sm:$0xf]
      %v4037 = vsel %vm919, %v4035, 0
      %4039 = vmatpush.bf16.msra.mxu0 0
      %4040 = vmatpush.bf16.msra.mxu0 0
      %4041 = vmatpush.bf16.msra.mxu0 0
      %4042 = vmatpush.bf16.msra.mxu0 0
      %4043 = vmatpush.bf16.msra.mxu0 0
      %4044 = vmatpush.bf16.msra.mxu0 0
      %4045 = vmatpush.bf16.msra.mxu0 %v4032
      %4046 = vmatpush.bf16.msra.mxu0 %v4030
      %4047 = vmatmul.bf16.gmra.mxu0 %v4037
      %v4048 = vpop.f32.mrf.mxu0
      %v4049 = vadd.f32 0.0, %v4048
      %v4050 = vpop.f32.mrf.mxu0
      %4051 = vdwg.mxu0
      %4052 = vmatpush.bf16.msra.mxu0 0
      %4053 = vmatpush.bf16.msra.mxu0 0
      %4054 = vmatpush.bf16.msra.mxu0 0
      %4055 = vmatpush.bf16.msra.mxu0 0
      %4056 = vmatpush.bf16.msra.mxu0 0
      %4057 = vmatpush.bf16.msra.mxu0 0
      %4058 = vmatpush.bf16.msra.mxu0 %v4033
      %4059 = vmatpush.bf16.msra.mxu0 %v4031
      %4060 = vmatmul.bf16.gmra.mxu0 %v4037
      %v4061 = vpop.f32.mrf.mxu0
      %v4062 = vadd.f32 0.0, %v4061
      %v4063 = vpop.f32.mrf.mxu0
      %4064 = vdwg.mxu0
      %v4065 = vadd.f32 %v2975, %v4049
      %v4066 = vadd.f32 %v2988, %v4062
      %v4067 = vld [vmem:[#allocation2 + $0x60] sm:$0xff]
      %v4068 = vld [vmem:[#allocation2 + $0x68] sm:$0xff]
      %v4069 = vld [vmem:[#allocation2 + $0x70] sm:$0xff]
      %v4070 = vld [vmem:[#allocation2 + $0x78] sm:$0xff]
      %v4071 = vld [vmem:[#allocation2 + $0xe0] sm:$0xff]
      %v4072 = vld [vmem:[#allocation2 + $0xe8] sm:$0xff]
      %v4073 = vld [vmem:[#allocation2 + $0xf0] sm:$0xff]
      %v4074 = vld [vmem:[#allocation2 + $0xf8] sm:$0xff]
      %v4075 = vld [vmem:[#allocation2 + $0x160] sm:$0xff]
      %v4076 = vld [vmem:[#allocation2 + $0x168] sm:$0xff]
      %v4077 = vld [vmem:[#allocation2 + $0x170] sm:$0xff]
      %v4078 = vld [vmem:[#allocation2 + $0x178] sm:$0xff]
      %v4083 = vunpack.c.l.b16 %v4071
      %v4084 = vunpack.c.h.b16 %v4071
      %v4085 = vunpack.c.l.b16 %v4072
      %v4086 = vunpack.c.h.b16 %v4072
      %v4087 = vunpack.c.l.b16 %v4073
      %v4088 = vunpack.c.h.b16 %v4073
      %v4089 = vunpack.c.l.b16 %v4074
      %v4090 = vunpack.c.h.b16 %v4074
      %v4091 = vpack.c.b16 %v4085, %v4083
      %v4092 = vpack.c.b16 %v4086, %v4084
      %v4093 = vpack.c.b16 %v4089, %v4087
      %v4094 = vpack.c.b16 %v4090, %v4088
      %4099 = vxpose.binary.xlu0.c.b16.start [1/16] %v4092, %v4091, 128
      %4100 = vxpose.binary.xlu0.c.b16.cont [2/16] %v4094, %v4093, 128
      %4101 = vxpose.binary.xlu0.c.b16.cont [3/16] 0, 0, 128
      %4102 = vxpose.binary.xlu0.c.b16.cont [4/16] 0, 0, 128
      %4103 = vxpose.binary.xlu0.c.b16.cont [5/16] 0, 0, 128
      %4104 = vxpose.binary.xlu0.c.b16.cont [6/16] 0, 0, 128
      %4105 = vxpose.binary.xlu0.c.b16.cont [7/16] 0, 0, 128
      %4106 = vxpose.binary.xlu0.c.b16.end [8/16] 0, 0, 128
      %v4107 = vpop.trf.xlu0
      %v4108 = vpop.trf.xlu0
      %v4109 = vpop.trf.xlu0
      %v4110 = vpop.trf.xlu0
      %v4111 = vpop.trf.xlu0
      %v4112 = vpop.trf.xlu0
      %v4113 = vpop.trf.xlu0
      %v4114 = vpop.trf.xlu0
      %v4115 = vpop.trf.xlu0
      %v4116 = vpop.trf.xlu0
      %v4117 = vpop.trf.xlu0
      %v4118 = vpop.trf.xlu0
      %v4119 = vpop.trf.xlu0
      %v4120 = vpop.trf.xlu0
      %v4121 = vpop.trf.xlu0
      %v4122 = vpop.trf.xlu0
      %v4127 = vunpack.c.l.b16 %v4067
      %v4128 = vunpack.c.h.b16 %v4067
      %v4129 = vunpack.c.l.b16 %v4068
      %v4130 = vunpack.c.h.b16 %v4068
      %v4131 = vunpack.c.l.b16 %v4069
      %v4132 = vunpack.c.h.b16 %v4069
      %v4133 = vunpack.c.l.b16 %v4070
      %v4134 = vunpack.c.h.b16 %v4070
      %v4135 = vpack.c.b16 %v4129, %v4127
      %v4136 = vpack.c.b16 %v4130, %v4128
      %v4137 = vpack.c.b16 %v4133, %v4131
      %v4138 = vpack.c.b16 %v4134, %v4132
      %v4144 = vsel %vm919, %v4107, 0
      %v4147 = vsel %vm919, %v4109, 0
      %v4150 = vsel %vm919, %v4111, 0
      %v4153 = vsel %vm919, %v4113, 0
      %v4156 = vsel %vm919, %v4115, 0
      %v4159 = vsel %vm919, %v4117, 0
      %v4162 = vsel %vm919, %v4119, 0
      %v4165 = vsel %vm919, %v4121, 0
      %v4168 = vsel %vm919, %v4108, 0
      %v4171 = vsel %vm919, %v4110, 0
      %v4174 = vsel %vm919, %v4112, 0
      %v4177 = vsel %vm919, %v4114, 0
      %v4180 = vsel %vm919, %v4116, 0
      %v4183 = vsel %vm919, %v4118, 0
      %v4186 = vsel %vm919, %v4120, 0
      %v4189 = vsel %vm919, %v4122, 0
      %4191 = vmatpush.bf16.msra.mxu0 0
      %4192 = vmatpush.bf16.msra.mxu0 0
      %4193 = vmatpush.bf16.msra.mxu0 0
      %4194 = vmatpush.bf16.msra.mxu0 0
      %4195 = vmatpush.bf16.msra.mxu0 0
      %4196 = vmatpush.bf16.msra.mxu0 0
      %4197 = vmatpush.bf16.msra.mxu0 %v4137
      %4198 = vmatpush.bf16.msra.mxu0 %v4135
      %4199 = vmatmul.bf16.gmra.mxu0 %v4144
      %v4200 = vpop.f32.mrf.mxu0
      %v4201 = vadd.f32 0.0, %v4200
      %v4202 = vpop.f32.mrf.mxu0
      %v4203 = vadd.f32 0.0, %v4202
      %4204 = vmatmul.bf16.gmra.mxu0 %v4147
      %v4205 = vpop.f32.mrf.mxu0
      %v4206 = vadd.f32 0.0, %v4205
      %v4207 = vpop.f32.mrf.mxu0
      %v4208 = vadd.f32 0.0, %v4207
      %4209 = vmatmul.bf16.gmra.mxu0 %v4150
      %v4210 = vpop.f32.mrf.mxu0
      %v4211 = vadd.f32 0.0, %v4210
      %v4212 = vpop.f32.mrf.mxu0
      %v4213 = vadd.f32 0.0, %v4212
      %4214 = vmatmul.bf16.gmra.mxu0 %v4153
      %v4215 = vpop.f32.mrf.mxu0
      %v4216 = vadd.f32 0.0, %v4215
      %v4217 = vpop.f32.mrf.mxu0
      %v4218 = vadd.f32 0.0, %v4217
      %4219 = vmatmul.bf16.gmra.mxu0 %v4156
      %v4220 = vpop.f32.mrf.mxu0
      %v4221 = vadd.f32 0.0, %v4220
      %v4222 = vpop.f32.mrf.mxu0
      %v4223 = vadd.f32 0.0, %v4222
      %4224 = vmatmul.bf16.gmra.mxu0 %v4159
      %v4225 = vpop.f32.mrf.mxu0
      %v4226 = vadd.f32 0.0, %v4225
      %v4227 = vpop.f32.mrf.mxu0
      %v4228 = vadd.f32 0.0, %v4227
      %4229 = vmatmul.bf16.gmra.mxu0 %v4162
      %v4230 = vpop.f32.mrf.mxu0
      %v4231 = vadd.f32 0.0, %v4230
      %v4232 = vpop.f32.mrf.mxu0
      %v4233 = vadd.f32 0.0, %v4232
      %4234 = vmatmul.bf16.gmra.mxu0 %v4165
      %v4235 = vpop.f32.mrf.mxu0
      %v4236 = vadd.f32 0.0, %v4235
      %v4237 = vpop.f32.mrf.mxu0
      %v4238 = vadd.f32 0.0, %v4237
      %4239 = vmatmul.bf16.gmra.mxu0 %v4168
      %v4240 = vpop.f32.mrf.mxu0
      %v4241 = vadd.f32 0.0, %v4240
      %v4242 = vpop.f32.mrf.mxu0
      %v4243 = vadd.f32 0.0, %v4242
      %4244 = vmatmul.bf16.gmra.mxu0 %v4171
      %v4245 = vpop.f32.mrf.mxu0
      %v4246 = vadd.f32 0.0, %v4245
      %v4247 = vpop.f32.mrf.mxu0
      %v4248 = vadd.f32 0.0, %v4247
      %4249 = vmatmul.bf16.gmra.mxu0 %v4174
      %v4250 = vpop.f32.mrf.mxu0
      %v4251 = vadd.f32 0.0, %v4250
      %v4252 = vpop.f32.mrf.mxu0
      %v4253 = vadd.f32 0.0, %v4252
      %4254 = vmatmul.bf16.gmra.mxu0 %v4177
      %v4255 = vpop.f32.mrf.mxu0
      %v4256 = vadd.f32 0.0, %v4255
      %v4257 = vpop.f32.mrf.mxu0
      %v4258 = vadd.f32 0.0, %v4257
      %4259 = vmatmul.bf16.gmra.mxu0 %v4180
      %v4260 = vpop.f32.mrf.mxu0
      %v4261 = vadd.f32 0.0, %v4260
      %v4262 = vpop.f32.mrf.mxu0
      %v4263 = vadd.f32 0.0, %v4262
      %4264 = vmatmul.bf16.gmra.mxu0 %v4183
      %v4265 = vpop.f32.mrf.mxu0
      %v4266 = vadd.f32 0.0, %v4265
      %v4267 = vpop.f32.mrf.mxu0
      %v4268 = vadd.f32 0.0, %v4267
      %4269 = vmatmul.bf16.gmra.mxu0 %v4186
      %v4270 = vpop.f32.mrf.mxu0
      %v4271 = vadd.f32 0.0, %v4270
      %v4272 = vpop.f32.mrf.mxu0
      %v4273 = vadd.f32 0.0, %v4272
      %4274 = vmatmul.bf16.gmra.mxu0 %v4189
      %v4275 = vpop.f32.mrf.mxu0
      %v4276 = vadd.f32 0.0, %v4275
      %v4277 = vpop.f32.mrf.mxu0
      %v4278 = vadd.f32 0.0, %v4277
      %4279 = vdwg.mxu0
      %4280 = vmatpush.bf16.msra.mxu0 0
      %4281 = vmatpush.bf16.msra.mxu0 0
      %4282 = vmatpush.bf16.msra.mxu0 0
      %4283 = vmatpush.bf16.msra.mxu0 0
      %4284 = vmatpush.bf16.msra.mxu0 0
      %4285 = vmatpush.bf16.msra.mxu0 0
      %4286 = vmatpush.bf16.msra.mxu0 %v4138
      %4287 = vmatpush.bf16.msra.mxu0 %v4136
      %4288 = vmatmul.bf16.gmra.mxu0 %v4144
      %v4289 = vpop.f32.mrf.mxu0
      %v4290 = vadd.f32 0.0, %v4289
      %v4291 = vpop.f32.mrf.mxu0
      %v4292 = vadd.f32 0.0, %v4291
      %4293 = vmatmul.bf16.gmra.mxu0 %v4147
      %v4294 = vpop.f32.mrf.mxu0
      %v4295 = vadd.f32 0.0, %v4294
      %v4296 = vpop.f32.mrf.mxu0
      %v4297 = vadd.f32 0.0, %v4296
      %4298 = vmatmul.bf16.gmra.mxu0 %v4150
      %v4299 = vpop.f32.mrf.mxu0
      %v4300 = vadd.f32 0.0, %v4299
      %v4301 = vpop.f32.mrf.mxu0
      %v4302 = vadd.f32 0.0, %v4301
      %4303 = vmatmul.bf16.gmra.mxu0 %v4153
      %v4304 = vpop.f32.mrf.mxu0
      %v4305 = vadd.f32 0.0, %v4304
      %v4306 = vpop.f32.mrf.mxu0
      %v4307 = vadd.f32 0.0, %v4306
      %4308 = vmatmul.bf16.gmra.mxu0 %v4156
      %v4309 = vpop.f32.mrf.mxu0
      %v4310 = vadd.f32 0.0, %v4309
      %v4311 = vpop.f32.mrf.mxu0
      %v4312 = vadd.f32 0.0, %v4311
      %4313 = vmatmul.bf16.gmra.mxu0 %v4159
      %v4314 = vpop.f32.mrf.mxu0
      %v4315 = vadd.f32 0.0, %v4314
      %v4316 = vpop.f32.mrf.mxu0
      %v4317 = vadd.f32 0.0, %v4316
      %4318 = vmatmul.bf16.gmra.mxu0 %v4162
      %v4319 = vpop.f32.mrf.mxu0
      %v4320 = vadd.f32 0.0, %v4319
      %v4321 = vpop.f32.mrf.mxu0
      %v4322 = vadd.f32 0.0, %v4321
      %4323 = vmatmul.bf16.gmra.mxu0 %v4165
      %v4324 = vpop.f32.mrf.mxu0
      %v4325 = vadd.f32 0.0, %v4324
      %v4326 = vpop.f32.mrf.mxu0
      %v4327 = vadd.f32 0.0, %v4326
      %4328 = vmatmul.bf16.gmra.mxu0 %v4168
      %v4329 = vpop.f32.mrf.mxu0
      %v4330 = vadd.f32 0.0, %v4329
      %v4331 = vpop.f32.mrf.mxu0
      %v4332 = vadd.f32 0.0, %v4331
      %4333 = vmatmul.bf16.gmra.mxu0 %v4171
      %v4334 = vpop.f32.mrf.mxu0
      %v4335 = vadd.f32 0.0, %v4334
      %v4336 = vpop.f32.mrf.mxu0
      %v4337 = vadd.f32 0.0, %v4336
      %4338 = vmatmul.bf16.gmra.mxu0 %v4174
      %v4339 = vpop.f32.mrf.mxu0
      %v4340 = vadd.f32 0.0, %v4339
      %v4341 = vpop.f32.mrf.mxu0
      %v4342 = vadd.f32 0.0, %v4341
      %4343 = vmatmul.bf16.gmra.mxu0 %v4177
      %v4344 = vpop.f32.mrf.mxu0
      %v4345 = vadd.f32 0.0, %v4344
      %v4346 = vpop.f32.mrf.mxu0
      %v4347 = vadd.f32 0.0, %v4346
      %4348 = vmatmul.bf16.gmra.mxu0 %v4180
      %v4349 = vpop.f32.mrf.mxu0
      %v4350 = vadd.f32 0.0, %v4349
      %v4351 = vpop.f32.mrf.mxu0
      %v4352 = vadd.f32 0.0, %v4351
      %4353 = vmatmul.bf16.gmra.mxu0 %v4183
      %v4354 = vpop.f32.mrf.mxu0
      %v4355 = vadd.f32 0.0, %v4354
      %v4356 = vpop.f32.mrf.mxu0
      %v4357 = vadd.f32 0.0, %v4356
      %4358 = vmatmul.bf16.gmra.mxu0 %v4186
      %v4359 = vpop.f32.mrf.mxu0
      %v4360 = vadd.f32 0.0, %v4359
      %v4361 = vpop.f32.mrf.mxu0
      %v4362 = vadd.f32 0.0, %v4361
      %4363 = vmatmul.bf16.gmra.mxu0 %v4189
      %v4364 = vpop.f32.mrf.mxu0
      %v4365 = vadd.f32 0.0, %v4364
      %v4366 = vpop.f32.mrf.mxu0
      %v4367 = vadd.f32 0.0, %v4366
      %4368 = vdwg.mxu0
      %v4369 = vpack.c.bf16 %v4290, %v4201
      %v4370 = vpack.c.bf16 %v4292, %v4203
      %v4371 = vpack.c.bf16 %v4295, %v4206
      %v4372 = vpack.c.bf16 %v4297, %v4208
      %v4373 = vpack.c.bf16 %v4300, %v4211
      %v4374 = vpack.c.bf16 %v4302, %v4213
      %v4375 = vpack.c.bf16 %v4305, %v4216
      %v4376 = vpack.c.bf16 %v4307, %v4218
      %v4377 = vpack.c.bf16 %v4310, %v4221
      %v4378 = vpack.c.bf16 %v4312, %v4223
      %v4379 = vpack.c.bf16 %v4315, %v4226
      %v4380 = vpack.c.bf16 %v4317, %v4228
      %v4381 = vpack.c.bf16 %v4320, %v4231
      %v4382 = vpack.c.bf16 %v4322, %v4233
      %v4383 = vpack.c.bf16 %v4325, %v4236
      %v4384 = vpack.c.bf16 %v4327, %v4238
      %v4385 = vpack.c.bf16 %v4330, %v4241
      %v4386 = vpack.c.bf16 %v4332, %v4243
      %v4387 = vpack.c.bf16 %v4335, %v4246
      %v4388 = vpack.c.bf16 %v4337, %v4248
      %v4389 = vpack.c.bf16 %v4340, %v4251
      %v4390 = vpack.c.bf16 %v4342, %v4253
      %v4391 = vpack.c.bf16 %v4345, %v4256
      %v4392 = vpack.c.bf16 %v4347, %v4258
      %v4393 = vpack.c.bf16 %v4350, %v4261
      %v4394 = vpack.c.bf16 %v4352, %v4263
      %v4395 = vpack.c.bf16 %v4355, %v4266
      %v4396 = vpack.c.bf16 %v4357, %v4268
      %v4397 = vpack.c.bf16 %v4360, %v4271
      %v4398 = vpack.c.bf16 %v4362, %v4273
      %v4399 = vpack.c.bf16 %v4365, %v4276
      %v4400 = vpack.c.bf16 %v4367, %v4278
      %v4401 = vunpack.c.l.bf16 %v4369
      %v4402 = vunpack.c.h.bf16 %v4369
      %v4403 = vunpack.c.l.bf16 %v4370
      %v4404 = vunpack.c.h.bf16 %v4370
      %v4405 = vunpack.c.l.bf16 %v4371
      %v4406 = vunpack.c.h.bf16 %v4371
      %v4407 = vunpack.c.l.bf16 %v4372
      %v4408 = vunpack.c.h.bf16 %v4372
      %v4409 = vunpack.c.l.bf16 %v4373
      %v4410 = vunpack.c.h.bf16 %v4373
      %v4411 = vunpack.c.l.bf16 %v4374
      %v4412 = vunpack.c.h.bf16 %v4374
      %v4413 = vunpack.c.l.bf16 %v4375
      %v4414 = vunpack.c.h.bf16 %v4375
      %v4415 = vunpack.c.l.bf16 %v4376
      %v4416 = vunpack.c.h.bf16 %v4376
      %v4417 = vunpack.c.l.bf16 %v4377
      %v4418 = vunpack.c.h.bf16 %v4377
      %v4419 = vunpack.c.l.bf16 %v4378
      %v4420 = vunpack.c.h.bf16 %v4378
      %v4421 = vunpack.c.l.bf16 %v4379
      %v4422 = vunpack.c.h.bf16 %v4379
      %v4423 = vunpack.c.l.bf16 %v4380
      %v4424 = vunpack.c.h.bf16 %v4380
      %v4425 = vunpack.c.l.bf16 %v4381
      %v4426 = vunpack.c.h.bf16 %v4381
      %v4427 = vunpack.c.l.bf16 %v4382
      %v4428 = vunpack.c.h.bf16 %v4382
      %v4429 = vunpack.c.l.bf16 %v4383
      %v4430 = vunpack.c.h.bf16 %v4383
      %v4431 = vunpack.c.l.bf16 %v4384
      %v4432 = vunpack.c.h.bf16 %v4384
      %v4433 = vunpack.c.l.bf16 %v4385
      %v4434 = vunpack.c.h.bf16 %v4385
      %v4435 = vunpack.c.l.bf16 %v4386
      %v4436 = vunpack.c.h.bf16 %v4386
      %v4437 = vunpack.c.l.bf16 %v4387
      %v4438 = vunpack.c.h.bf16 %v4387
      %v4439 = vunpack.c.l.bf16 %v4388
      %v4440 = vunpack.c.h.bf16 %v4388
      %v4441 = vunpack.c.l.bf16 %v4389
      %v4442 = vunpack.c.h.bf16 %v4389
      %v4443 = vunpack.c.l.bf16 %v4390
      %v4444 = vunpack.c.h.bf16 %v4390
      %v4445 = vunpack.c.l.bf16 %v4391
      %v4446 = vunpack.c.h.bf16 %v4391
      %v4447 = vunpack.c.l.bf16 %v4392
      %v4448 = vunpack.c.h.bf16 %v4392
      %v4449 = vunpack.c.l.bf16 %v4393
      %v4450 = vunpack.c.h.bf16 %v4393
      %v4451 = vunpack.c.l.bf16 %v4394
      %v4452 = vunpack.c.h.bf16 %v4394
      %v4453 = vunpack.c.l.bf16 %v4395
      %v4454 = vunpack.c.h.bf16 %v4395
      %v4455 = vunpack.c.l.bf16 %v4396
      %v4456 = vunpack.c.h.bf16 %v4396
      %v4457 = vunpack.c.l.bf16 %v4397
      %v4458 = vunpack.c.h.bf16 %v4397
      %v4459 = vunpack.c.l.bf16 %v4398
      %v4460 = vunpack.c.h.bf16 %v4398
      %v4461 = vunpack.c.l.bf16 %v4399
      %v4462 = vunpack.c.h.bf16 %v4399
      %v4463 = vunpack.c.l.bf16 %v4400
      %v4464 = vunpack.c.h.bf16 %v4400
      %v4465 = vmax.f32 %v4401, %v4405
      %v4466 = vmax.f32 %v4403, %v4407
      %v4467 = vmax.f32 %v4465, %v4409
      %v4468 = vmax.f32 %v4466, %v4411
      %v4469 = vmax.f32 %v4467, %v4413
      %v4470 = vmax.f32 %v4468, %v4415
      %v4471 = vmax.f32 %v4469, %v4417
      %v4472 = vmax.f32 %v4470, %v4419
      %v4473 = vmax.f32 %v4471, %v4421
      %v4474 = vmax.f32 %v4472, %v4423
      %v4475 = vmax.f32 %v4473, %v4425
      %v4476 = vmax.f32 %v4474, %v4427
      %v4477 = vmax.f32 %v4475, %v4429
      %v4478 = vmax.f32 %v4476, %v4431
      %v4479 = vmax.f32 %v4477, %v4433
      %v4480 = vmax.f32 %v4478, %v4435
      %v4481 = vmax.f32 %v4479, %v4437
      %v4482 = vmax.f32 %v4480, %v4439
      %v4483 = vmax.f32 %v4481, %v4441
      %v4484 = vmax.f32 %v4482, %v4443
      %v4485 = vmax.f32 %v4483, %v4445
      %v4486 = vmax.f32 %v4484, %v4447
      %v4487 = vmax.f32 %v4485, %v4449
      %v4488 = vmax.f32 %v4486, %v4451
      %v4489 = vmax.f32 %v4487, %v4453
      %v4490 = vmax.f32 %v4488, %v4455
      %v4491 = vmax.f32 %v4489, %v4457
      %v4492 = vmax.f32 %v4490, %v4459
      %v4493 = vmax.f32 %v4491, %v4461
      %v4494 = vmax.f32 %v4492, %v4463
      %v4495 = vmax.f32 %v4493, %v4494
      %v4496 = vrot.slane %v4495, 4
      %v4497 = vmax.f32 %v4495, %v4496
      %v4498 = vrot.slane %v4497, 2
      %v4499 = vmax.f32 %v4497, %v4498
      %v4500 = vrot.slane %v4499, 1
      %v4501 = vmax.f32 %v4499, %v4500
      %v4502 = vmax.f32 %v4402, %v4406
      %v4503 = vmax.f32 %v4404, %v4408
      %v4504 = vmax.f32 %v4502, %v4410
      %v4505 = vmax.f32 %v4503, %v4412
      %v4506 = vmax.f32 %v4504, %v4414
      %v4507 = vmax.f32 %v4505, %v4416
      %v4508 = vmax.f32 %v4506, %v4418
      %v4509 = vmax.f32 %v4507, %v4420
      %v4510 = vmax.f32 %v4508, %v4422
      %v4511 = vmax.f32 %v4509, %v4424
      %v4512 = vmax.f32 %v4510, %v4426
      %v4513 = vmax.f32 %v4511, %v4428
      %v4514 = vmax.f32 %v4512, %v4430
      %v4515 = vmax.f32 %v4513, %v4432
      %v4516 = vmax.f32 %v4514, %v4434
      %v4517 = vmax.f32 %v4515, %v4436
      %v4518 = vmax.f32 %v4516, %v4438
      %v4519 = vmax.f32 %v4517, %v4440
      %v4520 = vmax.f32 %v4518, %v4442
      %v4521 = vmax.f32 %v4519, %v4444
      %v4522 = vmax.f32 %v4520, %v4446
      %v4523 = vmax.f32 %v4521, %v4448
      %v4524 = vmax.f32 %v4522, %v4450
      %v4525 = vmax.f32 %v4523, %v4452
      %v4526 = vmax.f32 %v4524, %v4454
      %v4527 = vmax.f32 %v4525, %v4456
      %v4528 = vmax.f32 %v4526, %v4458
      %v4529 = vmax.f32 %v4527, %v4460
      %v4530 = vmax.f32 %v4528, %v4462
      %v4531 = vmax.f32 %v4529, %v4464
      %v4532 = vmax.f32 %v4530, %v4531
      %v4533 = vrot.slane %v4532, 4
      %v4534 = vmax.f32 %v4532, %v4533
      %v4535 = vrot.slane %v4534, 2
      %v4536 = vmax.f32 %v4534, %v4535
      %v4537 = vrot.slane %v4536, 1
      %v4538 = vmax.f32 %v4536, %v4537
      %v4539 = vpack.c.bf16 %v4538, %v4501
      %v4540 = vunpack.c.l.bf16 %v4539
      %v4541 = vunpack.c.h.bf16 %v4539
      %v4542 = vsub.f32 %v4401, %v4540
      %v4543 = vsub.f32 %v4402, %v4541
      %v4544 = vsub.f32 %v4403, %v4540
      %v4545 = vsub.f32 %v4404, %v4541
      %v4546 = vsub.f32 %v4405, %v4540
      %v4547 = vsub.f32 %v4406, %v4541
      %v4548 = vsub.f32 %v4407, %v4540
      %v4549 = vsub.f32 %v4408, %v4541
      %v4550 = vsub.f32 %v4409, %v4540
      %v4551 = vsub.f32 %v4410, %v4541
      %v4552 = vsub.f32 %v4411, %v4540
      %v4553 = vsub.f32 %v4412, %v4541
      %v4554 = vsub.f32 %v4413, %v4540
      %v4555 = vsub.f32 %v4414, %v4541
      %v4556 = vsub.f32 %v4415, %v4540
      %v4557 = vsub.f32 %v4416, %v4541
      %v4558 = vsub.f32 %v4417, %v4540
      %v4559 = vsub.f32 %v4418, %v4541
      %v4560 = vsub.f32 %v4419, %v4540
      %v4561 = vsub.f32 %v4420, %v4541
      %v4562 = vsub.f32 %v4421, %v4540
      %v4563 = vsub.f32 %v4422, %v4541
      %v4564 = vsub.f32 %v4423, %v4540
      %v4565 = vsub.f32 %v4424, %v4541
      %v4566 = vsub.f32 %v4425, %v4540
      %v4567 = vsub.f32 %v4426, %v4541
      %v4568 = vsub.f32 %v4427, %v4540
      %v4569 = vsub.f32 %v4428, %v4541
      %v4570 = vsub.f32 %v4429, %v4540
      %v4571 = vsub.f32 %v4430, %v4541
      %v4572 = vsub.f32 %v4431, %v4540
      %v4573 = vsub.f32 %v4432, %v4541
      %v4574 = vsub.f32 %v4433, %v4540
      %v4575 = vsub.f32 %v4434, %v4541
      %v4576 = vsub.f32 %v4435, %v4540
      %v4577 = vsub.f32 %v4436, %v4541
      %v4578 = vsub.f32 %v4437, %v4540
      %v4579 = vsub.f32 %v4438, %v4541
      %v4580 = vsub.f32 %v4439, %v4540
      %v4581 = vsub.f32 %v4440, %v4541
      %v4582 = vsub.f32 %v4441, %v4540
      %v4583 = vsub.f32 %v4442, %v4541
      %v4584 = vsub.f32 %v4443, %v4540
      %v4585 = vsub.f32 %v4444, %v4541
      %v4586 = vsub.f32 %v4445, %v4540
      %v4587 = vsub.f32 %v4446, %v4541
      %v4588 = vsub.f32 %v4447, %v4540
      %v4589 = vsub.f32 %v4448, %v4541
      %v4590 = vsub.f32 %v4449, %v4540
      %v4591 = vsub.f32 %v4450, %v4541
      %v4592 = vsub.f32 %v4451, %v4540
      %v4593 = vsub.f32 %v4452, %v4541
      %v4594 = vsub.f32 %v4453, %v4540
      %v4595 = vsub.f32 %v4454, %v4541
      %v4596 = vsub.f32 %v4455, %v4540
      %v4597 = vsub.f32 %v4456, %v4541
      %v4598 = vsub.f32 %v4457, %v4540
      %v4599 = vsub.f32 %v4458, %v4541
      %v4600 = vsub.f32 %v4459, %v4540
      %v4601 = vsub.f32 %v4460, %v4541
      %v4602 = vsub.f32 %v4461, %v4540
      %v4603 = vsub.f32 %v4462, %v4541
      %v4604 = vsub.f32 %v4463, %v4540
      %v4605 = vsub.f32 %v4464, %v4541
      %v4606 = vpack.c.bf16 %v4544, %v4542
      %v4607 = vpack.c.bf16 %v4545, %v4543
      %v4608 = vpack.c.bf16 %v4548, %v4546
      %v4609 = vpack.c.bf16 %v4549, %v4547
      %v4610 = vpack.c.bf16 %v4552, %v4550
      %v4611 = vpack.c.bf16 %v4553, %v4551
      %v4612 = vpack.c.bf16 %v4556, %v4554
      %v4613 = vpack.c.bf16 %v4557, %v4555
      %v4614 = vpack.c.bf16 %v4560, %v4558
      %v4615 = vpack.c.bf16 %v4561, %v4559
      %v4616 = vpack.c.bf16 %v4564, %v4562
      %v4617 = vpack.c.bf16 %v4565, %v4563
      %v4618 = vpack.c.bf16 %v4568, %v4566
      %v4619 = vpack.c.bf16 %v4569, %v4567
      %v4620 = vpack.c.bf16 %v4572, %v4570
      %v4621 = vpack.c.bf16 %v4573, %v4571
      %v4622 = vpack.c.bf16 %v4576, %v4574
      %v4623 = vpack.c.bf16 %v4577, %v4575
      %v4624 = vpack.c.bf16 %v4580, %v4578
      %v4625 = vpack.c.bf16 %v4581, %v4579
      %v4626 = vpack.c.bf16 %v4584, %v4582
      %v4627 = vpack.c.bf16 %v4585, %v4583
      %v4628 = vpack.c.bf16 %v4588, %v4586
      %v4629 = vpack.c.bf16 %v4589, %v4587
      %v4630 = vpack.c.bf16 %v4592, %v4590
      %v4631 = vpack.c.bf16 %v4593, %v4591
      %v4632 = vpack.c.bf16 %v4596, %v4594
      %v4633 = vpack.c.bf16 %v4597, %v4595
      %v4634 = vpack.c.bf16 %v4600, %v4598
      %v4635 = vpack.c.bf16 %v4601, %v4599
      %v4636 = vpack.c.bf16 %v4604, %v4602
      %v4637 = vpack.c.bf16 %v4605, %v4603
      %v4638 = vunpack.c.l.bf16 %v4606
      %v4639 = vunpack.c.l.bf16 %v4607
      %v4640 = vunpack.c.h.bf16 %v4606
      %v4641 = vunpack.c.h.bf16 %v4607
      %v4642 = vunpack.c.l.bf16 %v4608
      %v4643 = vunpack.c.l.bf16 %v4609
      %v4644 = vunpack.c.h.bf16 %v4608
      %v4645 = vunpack.c.h.bf16 %v4609
      %v4646 = vunpack.c.l.bf16 %v4610
      %v4647 = vunpack.c.l.bf16 %v4611
      %v4648 = vunpack.c.h.bf16 %v4610
      %v4649 = vunpack.c.h.bf16 %v4611
      %v4650 = vunpack.c.l.bf16 %v4612
      %v4651 = vunpack.c.l.bf16 %v4613
      %v4652 = vunpack.c.h.bf16 %v4612
      %v4653 = vunpack.c.h.bf16 %v4613
      %v4654 = vunpack.c.l.bf16 %v4614
      %v4655 = vunpack.c.l.bf16 %v4615
      %v4656 = vunpack.c.h.bf16 %v4614
      %v4657 = vunpack.c.h.bf16 %v4615
      %v4658 = vunpack.c.l.bf16 %v4616
      %v4659 = vunpack.c.l.bf16 %v4617
      %v4660 = vunpack.c.h.bf16 %v4616
      %v4661 = vunpack.c.h.bf16 %v4617
      %v4662 = vunpack.c.l.bf16 %v4618
      %v4663 = vunpack.c.l.bf16 %v4619
      %v4664 = vunpack.c.h.bf16 %v4618
      %v4665 = vunpack.c.h.bf16 %v4619
      %v4666 = vunpack.c.l.bf16 %v4620
      %v4667 = vunpack.c.l.bf16 %v4621
      %v4668 = vunpack.c.h.bf16 %v4620
      %v4669 = vunpack.c.h.bf16 %v4621
      %v4670 = vunpack.c.l.bf16 %v4622
      %v4671 = vunpack.c.l.bf16 %v4623
      %v4672 = vunpack.c.h.bf16 %v4622
      %v4673 = vunpack.c.h.bf16 %v4623
      %v4674 = vunpack.c.l.bf16 %v4624
      %v4675 = vunpack.c.l.bf16 %v4625
      %v4676 = vunpack.c.h.bf16 %v4624
      %v4677 = vunpack.c.h.bf16 %v4625
      %v4678 = vunpack.c.l.bf16 %v4626
      %v4679 = vunpack.c.l.bf16 %v4627
      %v4680 = vunpack.c.h.bf16 %v4626
      %v4681 = vunpack.c.h.bf16 %v4627
      %v4682 = vunpack.c.l.bf16 %v4628
      %v4683 = vunpack.c.l.bf16 %v4629
      %v4684 = vunpack.c.h.bf16 %v4628
      %v4685 = vunpack.c.h.bf16 %v4629
      %v4686 = vunpack.c.l.bf16 %v4630
      %v4687 = vunpack.c.l.bf16 %v4631
      %v4688 = vunpack.c.h.bf16 %v4630
      %v4689 = vunpack.c.h.bf16 %v4631
      %v4690 = vunpack.c.l.bf16 %v4632
      %v4691 = vunpack.c.l.bf16 %v4633
      %v4692 = vunpack.c.h.bf16 %v4632
      %v4693 = vunpack.c.h.bf16 %v4633
      %v4694 = vunpack.c.l.bf16 %v4634
      %v4695 = vunpack.c.l.bf16 %v4635
      %v4696 = vunpack.c.h.bf16 %v4634
      %v4697 = vunpack.c.h.bf16 %v4635
      %v4698 = vunpack.c.l.bf16 %v4636
      %v4699 = vunpack.c.l.bf16 %v4637
      %v4700 = vunpack.c.h.bf16 %v4636
      %v4701 = vunpack.c.h.bf16 %v4637
      %v4702 = vmul.f32 %v4638, 1.442695
      %v4703 = vpow.pop %v4702
      %v4704 = vmul.f32 %v4639, 1.442695
      %v4705 = vpow.pop %v4704
      %v4706 = vmul.f32 %v4640, 1.442695
      %v4707 = vpow.pop %v4706
      %v4708 = vmul.f32 %v4641, 1.442695
      %v4709 = vpow.pop %v4708
      %v4710 = vmul.f32 %v4642, 1.442695
      %v4711 = vpow.pop %v4710
      %v4712 = vmul.f32 %v4643, 1.442695
      %v4713 = vpow.pop %v4712
      %v4714 = vmul.f32 %v4644, 1.442695
      %v4715 = vpow.pop %v4714
      %v4716 = vmul.f32 %v4645, 1.442695
      %v4717 = vpow.pop %v4716
      %v4718 = vmul.f32 %v4646, 1.442695
      %v4719 = vpow.pop %v4718
      %v4720 = vmul.f32 %v4647, 1.442695
      %v4721 = vpow.pop %v4720
      %v4722 = vmul.f32 %v4648, 1.442695
      %v4723 = vpow.pop %v4722
      %v4724 = vmul.f32 %v4649, 1.442695
      %v4725 = vpow.pop %v4724
      %v4726 = vmul.f32 %v4650, 1.442695
      %v4727 = vpow.pop %v4726
      %v4728 = vmul.f32 %v4651, 1.442695
      %v4729 = vpow.pop %v4728
      %v4730 = vmul.f32 %v4652, 1.442695
      %v4731 = vpow.pop %v4730
      %v4732 = vmul.f32 %v4653, 1.442695
      %v4733 = vpow.pop %v4732
      %v4734 = vmul.f32 %v4654, 1.442695
      %v4735 = vpow.pop %v4734
      %v4736 = vmul.f32 %v4655, 1.442695
      %v4737 = vpow.pop %v4736
      %v4738 = vmul.f32 %v4656, 1.442695
      %v4739 = vpow.pop %v4738
      %v4740 = vmul.f32 %v4657, 1.442695
      %v4741 = vpow.pop %v4740
      %v4742 = vmul.f32 %v4658, 1.442695
      %v4743 = vpow.pop %v4742
      %v4744 = vmul.f32 %v4659, 1.442695
      %v4745 = vpow.pop %v4744
      %v4746 = vmul.f32 %v4660, 1.442695
      %v4747 = vpow.pop %v4746
      %v4748 = vmul.f32 %v4661, 1.442695
      %v4749 = vpow.pop %v4748
      %v4750 = vmul.f32 %v4662, 1.442695
      %v4751 = vpow.pop %v4750
      %v4752 = vmul.f32 %v4663, 1.442695
      %v4753 = vpow.pop %v4752
      %v4754 = vmul.f32 %v4664, 1.442695
      %v4755 = vpow.pop %v4754
      %v4756 = vmul.f32 %v4665, 1.442695
      %v4757 = vpow.pop %v4756
      %v4758 = vmul.f32 %v4666, 1.442695
      %v4759 = vpow.pop %v4758
      %v4760 = vmul.f32 %v4667, 1.442695
      %v4761 = vpow.pop %v4760
      %v4762 = vmul.f32 %v4668, 1.442695
      %v4763 = vpow.pop %v4762
      %v4764 = vmul.f32 %v4669, 1.442695
      %v4765 = vpow.pop %v4764
      %v4766 = vmul.f32 %v4670, 1.442695
      %v4767 = vpow.pop %v4766
      %v4768 = vmul.f32 %v4671, 1.442695
      %v4769 = vpow.pop %v4768
      %v4770 = vmul.f32 %v4672, 1.442695
      %v4771 = vpow.pop %v4770
      %v4772 = vmul.f32 %v4673, 1.442695
      %v4773 = vpow.pop %v4772
      %v4774 = vmul.f32 %v4674, 1.442695
      %v4775 = vpow.pop %v4774
      %v4776 = vmul.f32 %v4675, 1.442695
      %v4777 = vpow.pop %v4776
      %v4778 = vmul.f32 %v4676, 1.442695
      %v4779 = vpow.pop %v4778
      %v4780 = vmul.f32 %v4677, 1.442695
      %v4781 = vpow.pop %v4780
      %v4782 = vmul.f32 %v4678, 1.442695
      %v4783 = vpow.pop %v4782
      %v4784 = vmul.f32 %v4679, 1.442695
      %v4785 = vpow.pop %v4784
      %v4786 = vmul.f32 %v4680, 1.442695
      %v4787 = vpow.pop %v4786
      %v4788 = vmul.f32 %v4681, 1.442695
      %v4789 = vpow.pop %v4788
      %v4790 = vmul.f32 %v4682, 1.442695
      %v4791 = vpow.pop %v4790
      %v4792 = vmul.f32 %v4683, 1.442695
      %v4793 = vpow.pop %v4792
      %v4794 = vmul.f32 %v4684, 1.442695
      %v4795 = vpow.pop %v4794
      %v4796 = vmul.f32 %v4685, 1.442695
      %v4797 = vpow.pop %v4796
      %v4798 = vmul.f32 %v4686, 1.442695
      %v4799 = vpow.pop %v4798
      %v4800 = vmul.f32 %v4687, 1.442695
      %v4801 = vpow.pop %v4800
      %v4802 = vmul.f32 %v4688, 1.442695
      %v4803 = vpow.pop %v4802
      %v4804 = vmul.f32 %v4689, 1.442695
      %v4805 = vpow.pop %v4804
      %v4806 = vmul.f32 %v4690, 1.442695
      %v4807 = vpow.pop %v4806
      %v4808 = vmul.f32 %v4691, 1.442695
      %v4809 = vpow.pop %v4808
      %v4810 = vmul.f32 %v4692, 1.442695
      %v4811 = vpow.pop %v4810
      %v4812 = vmul.f32 %v4693, 1.442695
      %v4813 = vpow.pop %v4812
      %v4814 = vmul.f32 %v4694, 1.442695
      %v4815 = vpow.pop %v4814
      %v4816 = vmul.f32 %v4695, 1.442695
      %v4817 = vpow.pop %v4816
      %v4818 = vmul.f32 %v4696, 1.442695
      %v4819 = vpow.pop %v4818
      %v4820 = vmul.f32 %v4697, 1.442695
      %v4821 = vpow.pop %v4820
      %v4822 = vmul.f32 %v4698, 1.442695
      %v4823 = vpow.pop %v4822
      %v4824 = vmul.f32 %v4699, 1.442695
      %v4825 = vpow.pop %v4824
      %v4826 = vmul.f32 %v4700, 1.442695
      %v4827 = vpow.pop %v4826
      %v4828 = vmul.f32 %v4701, 1.442695
      %v4829 = vpow.pop %v4828
      %v4830 = vpack.c.bf16 %v4707, %v4703
      %v4831 = vpack.c.bf16 %v4709, %v4705
      %v4832 = vpack.c.bf16 %v4715, %v4711
      %v4833 = vpack.c.bf16 %v4717, %v4713
      %v4834 = vpack.c.bf16 %v4723, %v4719
      %v4835 = vpack.c.bf16 %v4725, %v4721
      %v4836 = vpack.c.bf16 %v4731, %v4727
      %v4837 = vpack.c.bf16 %v4733, %v4729
      %v4838 = vpack.c.bf16 %v4739, %v4735
      %v4839 = vpack.c.bf16 %v4741, %v4737
      %v4840 = vpack.c.bf16 %v4747, %v4743
      %v4841 = vpack.c.bf16 %v4749, %v4745
      %v4842 = vpack.c.bf16 %v4755, %v4751
      %v4843 = vpack.c.bf16 %v4757, %v4753
      %v4844 = vpack.c.bf16 %v4763, %v4759
      %v4845 = vpack.c.bf16 %v4765, %v4761
      %v4846 = vpack.c.bf16 %v4771, %v4767
      %v4847 = vpack.c.bf16 %v4773, %v4769
      %v4848 = vpack.c.bf16 %v4779, %v4775
      %v4849 = vpack.c.bf16 %v4781, %v4777
      %v4850 = vpack.c.bf16 %v4787, %v4783
      %v4851 = vpack.c.bf16 %v4789, %v4785
      %v4852 = vpack.c.bf16 %v4795, %v4791
      %v4853 = vpack.c.bf16 %v4797, %v4793
      %v4854 = vpack.c.bf16 %v4803, %v4799
      %v4855 = vpack.c.bf16 %v4805, %v4801
      %v4856 = vpack.c.bf16 %v4811, %v4807
      %v4857 = vpack.c.bf16 %v4813, %v4809
      %v4858 = vpack.c.bf16 %v4819, %v4815
      %v4859 = vpack.c.bf16 %v4821, %v4817
      %v4860 = vpack.c.bf16 %v4827, %v4823
      %v4861 = vpack.c.bf16 %v4829, %v4825
      %v4862 = vunpack.c.l.bf16 %v4830
      %v4863 = vunpack.c.l.bf16 %v4831
      %v4864 = vunpack.c.h.bf16 %v4830
      %v4865 = vunpack.c.h.bf16 %v4831
      %v4866 = vunpack.c.l.bf16 %v4832
      %v4867 = vunpack.c.l.bf16 %v4833
      %v4868 = vunpack.c.h.bf16 %v4832
      %v4869 = vunpack.c.h.bf16 %v4833
      %v4870 = vunpack.c.l.bf16 %v4834
      %v4871 = vunpack.c.l.bf16 %v4835
      %v4872 = vunpack.c.h.bf16 %v4834
      %v4873 = vunpack.c.h.bf16 %v4835
      %v4874 = vunpack.c.l.bf16 %v4836
      %v4875 = vunpack.c.l.bf16 %v4837
      %v4876 = vunpack.c.h.bf16 %v4836
      %v4877 = vunpack.c.h.bf16 %v4837
      %v4878 = vunpack.c.l.bf16 %v4838
      %v4879 = vunpack.c.l.bf16 %v4839
      %v4880 = vunpack.c.h.bf16 %v4838
      %v4881 = vunpack.c.h.bf16 %v4839
      %v4882 = vunpack.c.l.bf16 %v4840
      %v4883 = vunpack.c.l.bf16 %v4841
      %v4884 = vunpack.c.h.bf16 %v4840
      %v4885 = vunpack.c.h.bf16 %v4841
      %v4886 = vunpack.c.l.bf16 %v4842
      %v4887 = vunpack.c.l.bf16 %v4843
      %v4888 = vunpack.c.h.bf16 %v4842
      %v4889 = vunpack.c.h.bf16 %v4843
      %v4890 = vunpack.c.l.bf16 %v4844
      %v4891 = vunpack.c.l.bf16 %v4845
      %v4892 = vunpack.c.h.bf16 %v4844
      %v4893 = vunpack.c.h.bf16 %v4845
      %v4894 = vunpack.c.l.bf16 %v4846
      %v4895 = vunpack.c.l.bf16 %v4847
      %v4896 = vunpack.c.h.bf16 %v4846
      %v4897 = vunpack.c.h.bf16 %v4847
      %v4898 = vunpack.c.l.bf16 %v4848
      %v4899 = vunpack.c.l.bf16 %v4849
      %v4900 = vunpack.c.h.bf16 %v4848
      %v4901 = vunpack.c.h.bf16 %v4849
      %v4902 = vunpack.c.l.bf16 %v4850
      %v4903 = vunpack.c.l.bf16 %v4851
      %v4904 = vunpack.c.h.bf16 %v4850
      %v4905 = vunpack.c.h.bf16 %v4851
      %v4906 = vunpack.c.l.bf16 %v4852
      %v4907 = vunpack.c.l.bf16 %v4853
      %v4908 = vunpack.c.h.bf16 %v4852
      %v4909 = vunpack.c.h.bf16 %v4853
      %v4910 = vunpack.c.l.bf16 %v4854
      %v4911 = vunpack.c.l.bf16 %v4855
      %v4912 = vunpack.c.h.bf16 %v4854
      %v4913 = vunpack.c.h.bf16 %v4855
      %v4914 = vunpack.c.l.bf16 %v4856
      %v4915 = vunpack.c.l.bf16 %v4857
      %v4916 = vunpack.c.h.bf16 %v4856
      %v4917 = vunpack.c.h.bf16 %v4857
      %v4918 = vunpack.c.l.bf16 %v4858
      %v4919 = vunpack.c.l.bf16 %v4859
      %v4920 = vunpack.c.h.bf16 %v4858
      %v4921 = vunpack.c.h.bf16 %v4859
      %v4922 = vunpack.c.l.bf16 %v4860
      %v4923 = vunpack.c.l.bf16 %v4861
      %v4924 = vunpack.c.h.bf16 %v4860
      %v4925 = vunpack.c.h.bf16 %v4861
      %v4926 = vadd.f32 %v4862, %v4864
      %v4927 = vadd.f32 %v4926, %v4866
      %v4928 = vadd.f32 %v4927, %v4868
      %v4929 = vadd.f32 %v4928, %v4870
      %v4930 = vadd.f32 %v4929, %v4872
      %v4931 = vadd.f32 %v4930, %v4874
      %v4932 = vadd.f32 %v4931, %v4876
      %v4933 = vadd.f32 %v4932, %v4878
      %v4934 = vadd.f32 %v4933, %v4880
      %v4935 = vadd.f32 %v4934, %v4882
      %v4936 = vadd.f32 %v4935, %v4884
      %v4937 = vadd.f32 %v4936, %v4886
      %v4938 = vadd.f32 %v4937, %v4888
      %v4939 = vadd.f32 %v4938, %v4890
      %v4940 = vadd.f32 %v4939, %v4892
      %v4941 = vadd.f32 %v4940, %v4894
      %v4942 = vadd.f32 %v4941, %v4896
      %v4943 = vadd.f32 %v4942, %v4898
      %v4944 = vadd.f32 %v4943, %v4900
      %v4945 = vadd.f32 %v4944, %v4902
      %v4946 = vadd.f32 %v4945, %v4904
      %v4947 = vadd.f32 %v4946, %v4906
      %v4948 = vadd.f32 %v4947, %v4908
      %v4949 = vadd.f32 %v4948, %v4910
      %v4950 = vadd.f32 %v4949, %v4912
      %v4951 = vadd.f32 %v4950, %v4914
      %v4952 = vadd.f32 %v4951, %v4916
      %v4953 = vadd.f32 %v4952, %v4918
      %v4954 = vadd.f32 %v4953, %v4920
      %v4955 = vadd.f32 %v4954, %v4922
      %v4956 = vadd.f32 %v4955, %v4924
      %v4957 = vrot.slane %v4956, 4
      %v4958 = vadd.f32 %v4956, %v4957
      %v4959 = vrot.slane %v4958, 2
      %v4960 = vadd.f32 %v4958, %v4959
      %v4961 = vrot.slane %v4960, 1
      %v4962 = vadd.f32 %v4960, %v4961
      %v4963 = vadd.f32 %v4863, %v4865
      %v4964 = vadd.f32 %v4963, %v4867
      %v4965 = vadd.f32 %v4964, %v4869
      %v4966 = vadd.f32 %v4965, %v4871
      %v4967 = vadd.f32 %v4966, %v4873
      %v4968 = vadd.f32 %v4967, %v4875
      %v4969 = vadd.f32 %v4968, %v4877
      %v4970 = vadd.f32 %v4969, %v4879
      %v4971 = vadd.f32 %v4970, %v4881
      %v4972 = vadd.f32 %v4971, %v4883
      %v4973 = vadd.f32 %v4972, %v4885
      %v4974 = vadd.f32 %v4973, %v4887
      %v4975 = vadd.f32 %v4974, %v4889
      %v4976 = vadd.f32 %v4975, %v4891
      %v4977 = vadd.f32 %v4976, %v4893
      %v4978 = vadd.f32 %v4977, %v4895
      %v4979 = vadd.f32 %v4978, %v4897
      %v4980 = vadd.f32 %v4979, %v4899
      %v4981 = vadd.f32 %v4980, %v4901
      %v4982 = vadd.f32 %v4981, %v4903
      %v4983 = vadd.f32 %v4982, %v4905
      %v4984 = vadd.f32 %v4983, %v4907
      %v4985 = vadd.f32 %v4984, %v4909
      %v4986 = vadd.f32 %v4985, %v4911
      %v4987 = vadd.f32 %v4986, %v4913
      %v4988 = vadd.f32 %v4987, %v4915
      %v4989 = vadd.f32 %v4988, %v4917
      %v4990 = vadd.f32 %v4989, %v4919
      %v4991 = vadd.f32 %v4990, %v4921
      %v4992 = vadd.f32 %v4991, %v4923
      %v4993 = vadd.f32 %v4992, %v4925
      %v4994 = vrot.slane %v4993, 4
      %v4995 = vadd.f32 %v4993, %v4994
      %v4996 = vrot.slane %v4995, 2
      %v4997 = vadd.f32 %v4995, %v4996
      %v4998 = vrot.slane %v4997, 1
      %v4999 = vadd.f32 %v4997, %v4998
      %v5000 = vrcp.pop %v4962
      %v5001 = vrcp.pop %v4999
      %v5006 = vunpack.c.l.b16 %v4075
      %v5007 = vunpack.c.h.b16 %v4075
      %v5008 = vunpack.c.l.b16 %v4076
      %v5009 = vunpack.c.h.b16 %v4076
      %v5010 = vunpack.c.l.b16 %v4077
      %v5011 = vunpack.c.h.b16 %v4077
      %v5012 = vunpack.c.l.b16 %v4078
      %v5013 = vunpack.c.h.b16 %v4078
      %v5014 = vpack.c.b16 %v5008, %v5006
      %v5015 = vpack.c.b16 %v5009, %v5007
      %v5016 = vpack.c.b16 %v5012, %v5010
      %v5017 = vpack.c.b16 %v5013, %v5011
      %5022 = vmatpush.bf16.msra.mxu0 %v4844
      %5023 = vmatpush.bf16.msra.mxu0 %v4842
      %5024 = vmatpush.bf16.msra.mxu0 %v4840
      %5025 = vmatpush.bf16.msra.mxu0 %v4838
      %5026 = vmatpush.bf16.msra.mxu0 %v4836
      %5027 = vmatpush.bf16.msra.mxu0 %v4834
      %5028 = vmatpush.bf16.msra.mxu0 %v4832
      %5029 = vmatpush.bf16.msra.mxu0 %v4830
      %5030 = vmatmul.bf16.gmra.mxu0 %v5014
      %v5031 = vpop.f32.mrf.mxu0
      %v5032 = vadd.f32 0.0, %v5031
      %v5033 = vpop.f32.mrf.mxu0
      %v5034 = vadd.f32 0.0, %v5033
      %5035 = vmatmul.bf16.gmra.mxu0 %v5016
      %v5036 = vpop.f32.mrf.mxu0
      %v5037 = vadd.f32 0.0, %v5036
      %v5038 = vpop.f32.mrf.mxu0
      %v5039 = vadd.f32 0.0, %v5038
      %5040 = vdwg.mxu0
      %5041 = vmatpush.bf16.msra.mxu0 %v4860
      %5042 = vmatpush.bf16.msra.mxu0 %v4858
      %5043 = vmatpush.bf16.msra.mxu0 %v4856
      %5044 = vmatpush.bf16.msra.mxu0 %v4854
      %5045 = vmatpush.bf16.msra.mxu0 %v4852
      %5046 = vmatpush.bf16.msra.mxu0 %v4850
      %5047 = vmatpush.bf16.msra.mxu0 %v4848
      %5048 = vmatpush.bf16.msra.mxu0 %v4846
      %5049 = vmatmul.bf16.gmra.mxu0 %v5015
      %v5050 = vpop.f32.mrf.mxu0
      %v5051 = vadd.f32 %v5032, %v5050
      %v5052 = vpop.f32.mrf.mxu0
      %v5053 = vadd.f32 %v5034, %v5052
      %5054 = vmatmul.bf16.gmra.mxu0 %v5017
      %v5055 = vpop.f32.mrf.mxu0
      %v5056 = vadd.f32 %v5037, %v5055
      %v5057 = vpop.f32.mrf.mxu0
      %v5058 = vadd.f32 %v5039, %v5057
      %5059 = vdwg.mxu0
      %5060 = vmatpush.bf16.msra.mxu0 %v4845
      %5061 = vmatpush.bf16.msra.mxu0 %v4843
      %5062 = vmatpush.bf16.msra.mxu0 %v4841
      %5063 = vmatpush.bf16.msra.mxu0 %v4839
      %5064 = vmatpush.bf16.msra.mxu0 %v4837
      %5065 = vmatpush.bf16.msra.mxu0 %v4835
      %5066 = vmatpush.bf16.msra.mxu0 %v4833
      %5067 = vmatpush.bf16.msra.mxu0 %v4831
      %5068 = vmatmul.bf16.gmra.mxu0 %v5014
      %v5069 = vpop.f32.mrf.mxu0
      %v5070 = vadd.f32 0.0, %v5069
      %v5071 = vpop.f32.mrf.mxu0
      %v5072 = vadd.f32 0.0, %v5071
      %5073 = vmatmul.bf16.gmra.mxu0 %v5016
      %v5074 = vpop.f32.mrf.mxu0
      %v5075 = vadd.f32 0.0, %v5074
      %v5076 = vpop.f32.mrf.mxu0
      %v5077 = vadd.f32 0.0, %v5076
      %5078 = vdwg.mxu0
      %5079 = vmatpush.bf16.msra.mxu0 %v4861
      %5080 = vmatpush.bf16.msra.mxu0 %v4859
      %5081 = vmatpush.bf16.msra.mxu0 %v4857
      %5082 = vmatpush.bf16.msra.mxu0 %v4855
      %5083 = vmatpush.bf16.msra.mxu0 %v4853
      %5084 = vmatpush.bf16.msra.mxu0 %v4851
      %5085 = vmatpush.bf16.msra.mxu0 %v4849
      %5086 = vmatpush.bf16.msra.mxu0 %v4847
      %5087 = vmatmul.bf16.gmra.mxu0 %v5015
      %v5088 = vpop.f32.mrf.mxu0
      %v5089 = vadd.f32 %v5070, %v5088
      %v5090 = vpop.f32.mrf.mxu0
      %v5091 = vadd.f32 %v5072, %v5090
      %5092 = vmatmul.bf16.gmra.mxu0 %v5017
      %v5093 = vpop.f32.mrf.mxu0
      %v5094 = vadd.f32 %v5075, %v5093
      %v5095 = vpop.f32.mrf.mxu0
      %v5096 = vadd.f32 %v5077, %v5095
      %5097 = vdwg.mxu0
      %v5098 = vmul.f32 %v5051, %v5000
      %v5099 = vmul.f32 %v5089, %v5001
      %v5100 = vmul.f32 %v5053, %v5000
      %v5101 = vmul.f32 %v5091, %v5001
      %v5102 = vmul.f32 %v5056, %v5000
      %v5103 = vmul.f32 %v5094, %v5001
      %v5104 = vmul.f32 %v5058, %v5000
      %v5105 = vmul.f32 %v5096, %v5001
      %v5106 = vpack.c.bf16 %v5100, %v5098
      %v5107 = vpack.c.bf16 %v5101, %v5099
      %v5108 = vpack.c.bf16 %v5104, %v5102
      %v5109 = vpack.c.bf16 %v5105, %v5103
      %s5110 = scalar_lea.vmem %s2, 12
      %v5111 = vld [vmem:[%s5110] sm:$0xf]
      %v5113 = vsel %vm919, %v5111, 0
      %5115 = vmatpush.bf16.msra.mxu0 0
      %5116 = vmatpush.bf16.msra.mxu0 0
      %5117 = vmatpush.bf16.msra.mxu0 0
      %5118 = vmatpush.bf16.msra.mxu0 0
      %5119 = vmatpush.bf16.msra.mxu0 0
      %5120 = vmatpush.bf16.msra.mxu0 0
      %5121 = vmatpush.bf16.msra.mxu0 %v5108
      %5122 = vmatpush.bf16.msra.mxu0 %v5106
      %5123 = vmatmul.bf16.gmra.mxu0 %v5113
      %v5124 = vpop.f32.mrf.mxu0
      %v5125 = vadd.f32 0.0, %v5124
      %v5126 = vpop.f32.mrf.mxu0
      %5127 = vdwg.mxu0
      %5128 = vmatpush.bf16.msra.mxu0 0
      %5129 = vmatpush.bf16.msra.mxu0 0
      %5130 = vmatpush.bf16.msra.mxu0 0
      %5131 = vmatpush.bf16.msra.mxu0 0
      %5132 = vmatpush.bf16.msra.mxu0 0
      %5133 = vmatpush.bf16.msra.mxu0 0
      %5134 = vmatpush.bf16.msra.mxu0 %v5109
      %5135 = vmatpush.bf16.msra.mxu0 %v5107
      %5136 = vmatmul.bf16.gmra.mxu0 %v5113
      %v5137 = vpop.f32.mrf.mxu0
      %v5138 = vadd.f32 0.0, %v5137
      %v5139 = vpop.f32.mrf.mxu0
      %5140 = vdwg.mxu0
      %v5141 = vadd.f32 %v4065, %v5125
      %v5142 = vadd.f32 %v4066, %v5138
      %v5143 = vld [vmem:[%s3] sm:$0xff]
      %5145 = vset.pattern.permute.xlu0 0
      %5146 = vperm.xlu0 %5145, %v5143
      %v5147 = vpop.permute.xlu0 %5146
      %v5149 = vadd.f32 %v5141, %v5147
      %v5150 = vadd.f32 %v5142, %v5147
      %5151 = vst [vmem:[%s197] sm:$0xff] %v5149
      %5152 = vst [vmem:[%s197 + $0x8] sm:$0xff] %v5150
      %p5153 = scmp.lt.s32.totalorder %s15, 1
      %s5154 = scalar_select %p5153, %s15, 1
      %s5155 = smul.addr %s5154, 2
      %s5156 = smul.addr %s5155, 8
      %s5157 = scalar_lea.vmem %s4, %s5156
      // Predicated region
      $region37: #{attention_forward.1} parent=35 // pred_check
        %p5158 = pneg %p122
      $region38: #{attention_forward.1} parent=35 // pred_check_branch
        %5160 = sbr.rel (%p5158) target = $region40
      $region39: #{attention_forward.1} parent=35 // pred_region
        _
      $region40: #{attention_forward.1} parent=35 // pred_fallthru
        _
    $region36: #{attention_forward.1} parent=5 // pred_fallthru
      _
    %p5161 = scmp.le.s32.totalorder 2, %s10
    // Predicated region
    $region41: #{attention_forward.1} parent=5 // pred_check
      %p5162 = pneg %p5161
    $region42: #{attention_forward.1} parent=5 // pred_check_branch
      %5164 = sbr.rel (%p5162) target = $region44
    $region43: #{attention_forward.1} parent=5 // pred_region
      %s5165 = ssub.s32 %s10, 2
      // Predicated region
      $region45: #{attention_forward.1} parent=43 // pred_check
        %p5166 = pneg %p128
      $region46: #{attention_forward.1} parent=43 // pred_check_branch
        %5168 = sbr.rel (%p5166) target = $region48
      $region47: #{attention_forward.1} parent=43 // pred_region
        %p5169 = scmp.lt.s32.totalorder %s16, 1
        %s5170 = scalar_select %p5169, %s16, 1
        %s5171 = smul.addr %s5170, 2
        %s5172 = smul.addr %s5171, 8
        %s5173 = scalar_lea.vmem %s4, %s5172
      $region48: #{attention_forward.1} parent=43 // pred_fallthru
        _
    $region44: #{attention_forward.1} parent=5 // pred_fallthru
      _
  $region6: #{attention_forward.1} parent=0 // loop_footer
    %s14 = sadd.s32 1, %s10
  $region7: #{attention_forward.1} parent=0 // loop_footer_branch
    %9 = sbr.rel target = $region3
  $region8: #{attention_forward.1} parent=0 // loop_exit
    _

</llo_original>
